<compile_context>
chip_gen: v7x
topology: tpu7x:2x2x1
jax: 0.10.0
libtpu: 0.0.40
codegen_flags: <defaults>
</compile_context>

<pallas_src>
import functools

import jax
import jax.numpy as jnp
from jax.experimental import pallas as pl
from jax.experimental.pallas import tpu as pltpu


# ---------------------------------------------------------------------------
# helpers
# ---------------------------------------------------------------------------
def _round_up(n, m):
    return ((n + m - 1) // m) * m


def _pad_gate_cols(mat, H, Hp):
    """(K, 4H) -> (K, 4Hp): zero-pad each of the 4 gate column-blocks to Hp columns."""
    if Hp == H:
        return mat
    blocks = [mat[:, g * H:(g + 1) * H] for g in range(4)]
    blocks = [jnp.pad(b, ((0, 0), (0, Hp - H))) for b in blocks]
    return jnp.concatenate(blocks, axis=1)


def _sigmoid_via_tanh(x):
    # sigmoid(x) = 0.5 * (1 + tanh(0.5 * x)): single EUP transcendental per gate.
    return 0.5 * (1.0 + jnp.tanh(0.5 * x))


def _device_kind():
    try:
        return (jax.devices()[0].device_kind or "").lower()
    except Exception:  # pragma: no cover - defensive
        return ""


# ---------------------------------------------------------------------------
# fused kernel: per-chunk x-projection + sequential LSTM recurrence
# grid = (batch_tiles ["parallel"], time_chunks ["arbitrary"])
# ---------------------------------------------------------------------------
def lstm_fused_kernel(x_ref, wih_ref, whh_ref, b_ref,
                      out_ref, hid_ref, cell_ref,
                      h_sc, c_sc,
                      *, s_true, tail_mask, gate_dtype, unroll):
    t = pl.program_id(1)

    # zero initial state at the start of every batch tile's time loop
    @pl.when(t == 0)
    def _():
        h_sc[...] = jnp.zeros_like(h_sc)
        c_sc[...] = jnp.zeros_like(c_sc)

    Hp = whh_ref.shape[0]
    Tc = x_ref.shape[0]

    def step(tc, carry):
        h_prev = h_sc[...]                       # (TB, Hp) f32
        c_prev = c_sc[...]                       # (TB, Hp) f32

        # gates = x_t @ W_ih^T + b + h_{t-1} @ W_hh^T
        #   * x / W_ih in bf16 (f32 accumulation) -- independent of the h chain,
        #     so the scheduler can issue it early; no HBM round-trip of pre-activations.
        #   * h / W_hh in f32 (MXU idle here; avoids recurrent bf16 rounding drift).
        gates = (
            jnp.dot(x_ref[tc], wih_ref[...], preferred_element_type=jnp.float32)
            + b_ref[...]
            + jnp.dot(h_prev, whh_ref[...], preferred_element_type=jnp.float32)
        )

        g = gates.astype(gate_dtype)             # bf16 gate math on v6e/v7x, f32 on v5e
        i_g = _sigmoid_via_tanh(g[:, 0 * Hp:1 * Hp]).astype(jnp.float32)
        f_g = _sigmoid_via_tanh(g[:, 1 * Hp:2 * Hp]).astype(jnp.float32)
        g_g = jnp.tanh(g[:, 2 * Hp:3 * Hp]).astype(jnp.float32)
        o_g = _sigmoid_via_tanh(g[:, 3 * Hp:4 * Hp]).astype(jnp.float32)

        c_t = f_g * c_prev + i_g * g_g           # f32 cell state
        h_t = o_g * jnp.tanh(c_t)                # f32 hidden state

        if tail_mask:
            # padded (beyond-S) timesteps must not advance the state
            valid = (t * Tc + tc) < s_true
            c_t = jnp.where(valid, c_t, c_prev)
            h_t = jnp.where(valid, h_t, h_prev)

        h_sc[...] = h_t
        c_sc[...] = c_t
        out_ref[tc] = h_t.astype(out_ref.dtype)  # bf16 output stream
        return carry

    jax.lax.fori_loop(0, Tc, step, 0, unroll=unroll)

    # final hidden / cell state written once, on the last time chunk
    @pl.when(t == pl.num_programs(1) - 1)
    def _():
        hid_ref[0] = h_sc[...].astype(hid_ref.dtype)
        cell_ref[0] = c_sc[...].astype(cell_ref.dtype)


# ---------------------------------------------------------------------------
# wrapper
# ---------------------------------------------------------------------------
def lstm_encoder(x, w_ih, w_hh, b_ih, b_hh, *, time_chunk=None):
    """x: (S, B, D) float32. Returns (outputs (S,B,H), hidden (1,B,H), cell (1,B,H))."""
    S, B, D = x.shape
    H = w_hh.shape[1]
    out_dtype = x.dtype

    Hp = _round_up(H, 128)            # lane-dense hidden dim
    Bp = _round_up(B, 8)              # sublane-aligned batch

    kind = _device_kind()
    two_tc = ("v7" in kind) or ("7x" in kind)          # 2 TensorCores per chip
    has_bf16_vpu = two_tc or ("v6" in kind)            # bf16 EUP/VPU on v6e/v7x
    gate_dtype = jnp.bfloat16 if has_bf16_vpu else jnp.float32

    # Larger time chunks on 128 MiB-VMEM parts (v5e/v6e); smaller on v7x (64 MiB).
    if time_chunk is None:
        time_chunk = 16 if two_tc else 32

    # Chunking: pad S minimally (< num_chunks extra steps), never fall back to Tc=1.
    num_chunks = max(1, -(-S // time_chunk))
    Tc = -(-S // num_chunks)
    Sp = Tc * num_chunks

    # Batch tiling: only split across TensorCores on 2-TC parts and when tiles stay big.
    num_bt = 2 if (two_tc and Bp % 16 == 0 and (Bp // 2) >= 16) else 1
    TB = Bp // num_bt

    # ---- parameter prep (gate-blockwise zero padding keeps padded lanes at 0) ----
    wih_t = _pad_gate_cols(jnp.asarray(w_ih).T, H, Hp).astype(jnp.bfloat16)   # (D, 4Hp)
    whh_t = _pad_gate_cols(jnp.asarray(w_hh).T, H, Hp)                        # (H, 4Hp)
    whh_t = jnp.pad(whh_t, ((0, Hp - H), (0, 0))).astype(jnp.float32)         # (Hp, 4Hp)
    bias = _pad_gate_cols((b_ih + b_hh).reshape(1, 4 * H), H, Hp)             # (1, 4Hp)
    bias = bias.astype(jnp.float32)

    x_bf = x.astype(jnp.bfloat16)
    if (Sp != S) or (Bp != B):
        x_bf = jnp.pad(x_bf, ((0, Sp - S), (0, Bp - B), (0, 0)))

    kernel = functools.partial(
        lstm_fused_kernel,
        s_true=S,
        tail_mask=(Sp != S),
        gate_dtype=gate_dtype,
        unroll=min(Tc, 8),            # cap unroll to bound live vregs at large Hp
    )

    outputs, hidden, cell = pl.pallas_call(
        kernel,
        out_shape=(jax.ShapeDtypeStruct((Sp, Bp, Hp), jnp.bfloat16),
                   jax.ShapeDtypeStruct((1, Bp, Hp), jnp.float32),
                   jax.ShapeDtypeStruct((1, Bp, Hp), jnp.float32)),
        grid_spec=pltpu.PrefetchScalarGridSpec(
            num_scalar_prefetch=0,
            grid=(num_bt, num_chunks),
            in_specs=[
                pl.BlockSpec((Tc, TB, D), lambda b, t: (t, b, 0)),   # x chunk (bf16)
                pl.BlockSpec((D, 4 * Hp), lambda b, t: (0, 0)),      # W_ih^T (resident)
                pl.BlockSpec((Hp, 4 * Hp), lambda b, t: (0, 0)),     # W_hh^T (resident)
                pl.BlockSpec((1, 4 * Hp), lambda b, t: (0, 0)),      # bias   (resident)
            ],
            out_specs=[
                pl.BlockSpec((Tc, TB, Hp), lambda b, t: (t, b, 0)),  # outputs chunk
                pl.BlockSpec((1, TB, Hp), lambda b, t: (0, b, 0)),   # hidden (final)
                pl.BlockSpec((1, TB, Hp), lambda b, t: (0, b, 0)),   # cell   (final)
            ],
            scratch_shapes=[pltpu.VMEM((TB, Hp), jnp.float32),       # h state
                            pltpu.VMEM((TB, Hp), jnp.float32)],      # c state
        ),
        compiler_params=pltpu.CompilerParams(
            dimension_semantics=("parallel", "arbitrary")),          # time is sequential
    )(x_bf, wih_t, whh_t, bias)

    outputs = outputs[:S, :B, :H].astype(out_dtype)
    hidden = hidden[:, :B, :H].astype(out_dtype)
    cell = cell[:, :B, :H].astype(out_dtype)
    return outputs, hidden, cell


# ---------------------------------------------------------------------------
# pure-JAX reference (matches torch.nn.LSTM forward, zero initial state, f32)
# ---------------------------------------------------------------------------
def lstm_reference(x, w_ih, w_hh, b_ih, b_hh):
    S, B, D = x.shape
    H = w_hh.shape[1]
    b = b_ih + b_hh

    def step(carry, x_t):
        h, c = carry
        gates = x_t @ w_ih.T + h @ w_hh.T + b
        i = jax.nn.sigmoid(gates[:, 0 * H:1 * H])
        f = jax.nn.sigmoid(gates[:, 1 * H:2 * H])
        g = jnp.tanh(gates[:, 2 * H:3 * H])
        o = jax.nn.sigmoid(gates[:, 3 * H:4 * H])
        c_new = f * c + i * g
        h_new = o * jnp.tanh(c_new)
        return (h_new, c_new), h_new

    (h_f, c_f), outs = jax.lax.scan(step, (jnp.zeros((B, H), x.dtype),
                                           jnp.zeros((B, H), x.dtype)), x)
    return outs, h_f[None], c_f[None]


if __name__ == "__main__":
    SEQ, BATCH, INPUT_DIM, HID_DIM = 8, 8, 16, 32

    key = jax.random.PRNGKey(0)
    k_x, k_wih, k_whh, k_bih, k_bhh = jax.random.split(key, 5)

    # PyTorch-style U(-1/sqrt(H), 1/sqrt(H)) init.
    bound = 1.0 / (HID_DIM ** 0.5)
    w_ih = jax.random.uniform(k_wih, (4 * HID_DIM, INPUT_DIM), jnp.float32, -bound, bound)
    w_hh = jax.random.uniform(k_whh, (4 * HID_DIM, HID_DIM), jnp.float32, -bound, bound)
    b_ih = jax.random.uniform(k_bih, (4 * HID_DIM,), jnp.float32, -bound, bound)
    b_hh = jax.random.uniform(k_bhh, (4 * HID_DIM,), jnp.float32, -bound, bound)

    x = jax.random.normal(k_x, (SEQ, BATCH, INPUT_DIM), jnp.float32)

    outputs, hidden, cell = lstm_encoder(x, w_ih, w_hh, b_ih, b_hh)
    jax.block_until_ready((outputs, hidden, cell))

    ref_out, ref_h, ref_c = lstm_reference(x, w_ih, w_hh, b_ih, b_hh)
    assert outputs.shape == (SEQ, BATCH, HID_DIM)
    assert hidden.shape == (1, BATCH, HID_DIM)
    assert cell.shape == (1, BATCH, HID_DIM)
    # bf16 input-projection operands, bf16 output stream (and bf16 gate math on v6e/v7x)
    # with f32 accumulation / f32 recurrent state -> loosened tolerance vs f32 reference.
    assert jnp.allclose(outputs, ref_out, atol=3e-2, rtol=3e-2)
    assert jnp.allclose(hidden, ref_h, atol=3e-2, rtol=3e-2)
    assert jnp.allclose(cell, ref_c, atol=3e-2, rtol=3e-2)

    print("KERNEL_OK")
</pallas_src>

<mosaic_0001>
module attributes {stable_mosaic.version = 11 : i64} {
  func.func @lstm_fused_kernel(%arg0: i32, %arg1: i32, %arg2: memref<8x8x16xbf16, #tpu.memory_space<vmem>>, %arg3: memref<16x512xbf16, #tpu.memory_space<vmem>>, %arg4: memref<128x512xf32, #tpu.memory_space<vmem>>, %arg5: memref<1x512xf32, #tpu.memory_space<vmem>>, %arg6: memref<8x8x128xbf16, #tpu.memory_space<vmem>>, %arg7: memref<1x8x128xf32, #tpu.memory_space<vmem>>, %arg8: memref<1x8x128xf32, #tpu.memory_space<vmem>>, %arg9: memref<8x128xf32, #tpu.memory_space<vmem>>, %arg10: memref<8x128xf32, #tpu.memory_space<vmem>>) attributes {dimension_semantics = [#tpu.dimension_semantics<parallel>, #tpu.dimension_semantics<arbitrary>], iteration_bounds = array<i64: 1, 1>, scalar_prefetch = 0 : i64, scratch_operands = 2 : i64, tpu.core_type = #tpu.core_type<tc>, window_params = [{transform_indices = @transform_0, window_bounds = array<i64: 8, 8, 16>}, {pipeline_mode = #tpu.pipeline_mode<synchronous>, transform_indices = @transform_1, window_bounds = array<i64: 16, 512>}, {pipeline_mode = #tpu.pipeline_mode<synchronous>, transform_indices = @transform_2, window_bounds = array<i64: 128, 512>}, {pipeline_mode = #tpu.pipeline_mode<synchronous>, transform_indices = @transform_3, window_bounds = array<i64: 1, 512>}, {transform_indices = @transform_4, window_bounds = array<i64: 8, 8, 128>}, {transform_indices = @transform_5, window_bounds = array<i64: 1, 8, 128>}, {transform_indices = @transform_6, window_bounds = array<i64: 1, 8, 128>}]} {
    %c0_i32 = arith.constant 0 : i32
    %0 = arith.cmpi eq, %arg1, %c0_i32 : i32
    %1 = arith.extui %0 : i1 to i32
    %c0_i32_0 = arith.constant 0 : i32
    %2 = arith.cmpi ne, %1, %c0_i32_0 : i32
    scf.if %2 {
      %cst_234 = arith.constant 0.000000e+00 : f32
      %414 = vector.broadcast %cst_234 : f32 to vector<8x128xf32>
      %c0_235 = arith.constant 0 : index
      %c0_236 = arith.constant 0 : index
      %415 = vector.load %arg9[%c0_235, %c0_236] : memref<8x128xf32, #tpu.memory_space<vmem>>, vector<8x128xf32>
      tpu.vector_store %arg9[%c0_235, %c0_236], %414 {strides = array<i32>} : memref<8x128xf32, #tpu.memory_space<vmem>>, vector<8x128xf32>,
      %cst_237 = arith.constant 0.000000e+00 : f32
      %416 = vector.broadcast %cst_237 : f32 to vector<8x128xf32>
      %c0_238 = arith.constant 0 : index
      %c0_239 = arith.constant 0 : index
      %417 = vector.load %arg10[%c0_238, %c0_239] : memref<8x128xf32, #tpu.memory_space<vmem>>, vector<8x128xf32>
      tpu.vector_store %arg10[%c0_238, %c0_239], %416 {strides = array<i32>} : memref<8x128xf32, #tpu.memory_space<vmem>>, vector<8x128xf32>,
    } else {
    }
    %c0_i32_1 = arith.constant 0 : i32
    %c0 = arith.constant 0 : index
    %c0_2 = arith.constant 0 : index
    %3 = vector.load %arg9[%c0, %c0_2] : memref<8x128xf32, #tpu.memory_space<vmem>>, vector<8x128xf32>
    %c0_3 = arith.constant 0 : index
    %c0_4 = arith.constant 0 : index
    %4 = vector.load %arg10[%c0_3, %c0_4] : memref<8x128xf32, #tpu.memory_space<vmem>>, vector<8x128xf32>
    %5 = arith.index_cast %c0_i32_1 : i32 to index
    %c0_5 = arith.constant 0 : index
    %c0_6 = arith.constant 0 : index
    %6 = vector.load %arg2[%5, %c0_5, %c0_6] : memref<8x8x16xbf16, #tpu.memory_space<vmem>>, vector<1x8x16xbf16>
    %7 = vector.shape_cast %6 : vector<1x8x16xbf16> to vector<8x16xbf16>
    %c0_7 = arith.constant 0 : index
    %c0_8 = arith.constant 0 : index
    %8 = vector.load %arg3[%c0_7, %c0_8] : memref<16x512xbf16, #tpu.memory_space<vmem>>, vector<16x512xbf16>
    %cst = arith.constant dense<0.000000e+00> : vector<8x512xf32>
    %9 = tpu.matmul %7, %8, %cst {dimension_numbers = #tpu.dot_dimension_numbers<[1], [0], [0], [1], [0, 0, 1, 1], [], []>} : vector<8x16xbf16>, vector<16x512xbf16>, vector<8x512xf32> -> vector<8x512xf32>
    %c0_9 = arith.constant 0 : index
    %c0_10 = arith.constant 0 : index
    %10 = vector.load %arg5[%c0_9, %c0_10] : memref<1x512xf32, #tpu.memory_space<vmem>>, vector<1x512xf32>
    %11 = vector.broadcast %10 : vector<1x512xf32> to vector<8x512xf32>
    %12 = arith.addf %9, %11 : vector<8x512xf32>
    %c0_11 = arith.constant 0 : index
    %c0_12 = arith.constant 0 : index
    %13 = vector.load %arg4[%c0_11, %c0_12] : memref<128x512xf32, #tpu.memory_space<vmem>>, vector<128x512xf32>
    %cst_13 = arith.constant dense<0.000000e+00> : vector<8x512xf32>
    %14 = tpu.matmul %3, %13, %cst_13 {dimension_numbers = #tpu.dot_dimension_numbers<[1], [0], [0], [1], [0, 0, 1, 1], [], []>} : vector<8x128xf32>, vector<128x512xf32>, vector<8x512xf32> -> vector<8x512xf32>
    %15 = arith.addf %12, %14 : vector<8x512xf32>
    %16 = vector.extract_strided_slice %15 {offsets = [0, 0], sizes = [8, 128], strides = [1, 1]} : vector<8x512xf32> to vector<8x128xf32>
    %cst_14 = arith.constant 5.000000e-01 : f32
    %17 = vector.broadcast %cst_14 : f32 to vector<8x128xf32>
    %18 = arith.mulf %17, %16 : vector<8x128xf32>
    %19 = math.tanh %18 : vector<8x128xf32>
    %cst_15 = arith.constant 1.000000e+00 : f32
    %20 = vector.broadcast %cst_15 : f32 to vector<8x128xf32>
    %21 = arith.addf %20, %19 : vector<8x128xf32>
    %cst_16 = arith.constant 5.000000e-01 : f32
    %22 = vector.broadcast %cst_16 : f32 to vector<8x128xf32>
    %23 = arith.mulf %22, %21 : vector<8x128xf32>
    %24 = vector.extract_strided_slice %15 {offsets = [0, 128], sizes = [8, 128], strides = [1, 1]} : vector<8x512xf32> to vector<8x128xf32>
    %cst_17 = arith.constant 5.000000e-01 : f32
    %25 = vector.broadcast %cst_17 : f32 to vector<8x128xf32>
    %26 = arith.mulf %25, %24 : vector<8x128xf32>
    %27 = math.tanh %26 : vector<8x128xf32>
    %cst_18 = arith.constant 1.000000e+00 : f32
    %28 = vector.broadcast %cst_18 : f32 to vector<8x128xf32>
    %29 = arith.addf %28, %27 : vector<8x128xf32>
    %cst_19 = arith.constant 5.000000e-01 : f32
    %30 = vector.broadcast %cst_19 : f32 to vector<8x128xf32>
    %31 = arith.mulf %30, %29 : vector<8x128xf32>
    %32 = vector.extract_strided_slice %15 {offsets = [0, 256], sizes = [8, 128], strides = [1, 1]} : vector<8x512xf32> to vector<8x128xf32>
    %33 = math.tanh %32 : vector<8x128xf32>
    %34 = vector.extract_strided_slice %15 {offsets = [0, 384], sizes = [8, 128], strides = [1, 1]} : vector<8x512xf32> to vector<8x128xf32>
    %cst_20 = arith.constant 5.000000e-01 : f32
    %35 = vector.broadcast %cst_20 : f32 to vector<8x128xf32>
    %36 = arith.mulf %35, %34 : vector<8x128xf32>
    %37 = math.tanh %36 : vector<8x128xf32>
    %cst_21 = arith.constant 1.000000e+00 : f32
    %38 = vector.broadcast %cst_21 : f32 to vector<8x128xf32>
    %39 = arith.addf %38, %37 : vector<8x128xf32>
    %cst_22 = arith.constant 5.000000e-01 : f32
    %40 = vector.broadcast %cst_22 : f32 to vector<8x128xf32>
    %41 = arith.mulf %40, %39 : vector<8x128xf32>
    %42 = arith.mulf %31, %4 : vector<8x128xf32>
    %43 = arith.mulf %23, %33 : vector<8x128xf32>
    %44 = arith.addf %42, %43 : vector<8x128xf32>
    %45 = math.tanh %44 : vector<8x128xf32>
    %46 = arith.mulf %41, %45 : vector<8x128xf32>
    %c0_23 = arith.constant 0 : index
    %c0_24 = arith.constant 0 : index
    %47 = vector.load %arg9[%c0_23, %c0_24] : memref<8x128xf32, #tpu.memory_space<vmem>>, vector<8x128xf32>
    tpu.vector_store %arg9[%c0_23, %c0_24], %46 {strides = array<i32>} : memref<8x128xf32, #tpu.memory_space<vmem>>, vector<8x128xf32>,
    %c0_25 = arith.constant 0 : index
    %c0_26 = arith.constant 0 : index
    %48 = vector.load %arg10[%c0_25, %c0_26] : memref<8x128xf32, #tpu.memory_space<vmem>>, vector<8x128xf32>
    tpu.vector_store %arg10[%c0_25, %c0_26], %44 {strides = array<i32>} : memref<8x128xf32, #tpu.memory_space<vmem>>, vector<8x128xf32>,
    %49 = arith.truncf %46 : vector<8x128xf32> to vector<8x128xbf16>
    %50 = arith.index_cast %c0_i32_1 : i32 to index
    %c0_27 = arith.constant 0 : index
    %c0_28 = arith.constant 0 : index
    %51 = vector.load %arg6[%50, %c0_27, %c0_28] : memref<8x8x128xbf16, #tpu.memory_space<vmem>>, vector<1x8x128xbf16>
    %52 = vector.shape_cast %51 : vector<1x8x128xbf16> to vector<8x128xbf16>
    %53 = vector.shape_cast %49 : vector<8x128xbf16> to vector<1x8x128xbf16>
    tpu.vector_store %arg6[%50, %c0_27, %c0_28], %53 {strides = array<i32>} : memref<8x8x128xbf16, #tpu.memory_space<vmem>>, vector<1x8x128xbf16>,
    %c1_i32 = arith.constant 1 : i32
    %c0_29 = arith.constant 0 : index
    %c0_30 = arith.constant 0 : index
    %54 = vector.load %arg9[%c0_29, %c0_30] : memref<8x128xf32, #tpu.memory_space<vmem>>, vector<8x128xf32>
    %c0_31 = arith.constant 0 : index
    %c0_32 = arith.constant 0 : index
    %55 = vector.load %arg10[%c0_31, %c0_32] : memref<8x128xf32, #tpu.memory_space<vmem>>, vector<8x128xf32>
    %56 = arith.index_cast %c1_i32 : i32 to index
    %c0_33 = arith.constant 0 : index
    %c0_34 = arith.constant 0 : index
    %57 = vector.load %arg2[%56, %c0_33, %c0_34] : memref<8x8x16xbf16, #tpu.memory_space<vmem>>, vector<1x8x16xbf16>
    %58 = vector.shape_cast %57 : vector<1x8x16xbf16> to vector<8x16xbf16>
    %c0_35 = arith.constant 0 : index
    %c0_36 = arith.constant 0 : index
    %59 = vector.load %arg3[%c0_35, %c0_36] : memref<16x512xbf16, #tpu.memory_space<vmem>>, vector<16x512xbf16>
    %cst_37 = arith.constant dense<0.000000e+00> : vector<8x512xf32>
    %60 = tpu.matmul %58, %59, %cst_37 {dimension_numbers = #tpu.dot_dimension_numbers<[1], [0], [0], [1], [0, 0, 1, 1], [], []>} : vector<8x16xbf16>, vector<16x512xbf16>, vector<8x512xf32> -> vector<8x512xf32>
    %c0_38 = arith.constant 0 : index
    %c0_39 = arith.constant 0 : index
    %61 = vector.load %arg5[%c0_38, %c0_39] : memref<1x512xf32, #tpu.memory_space<vmem>>, vector<1x512xf32>
    %62 = vector.broadcast %61 : vector<1x512xf32> to vector<8x512xf32>
    %63 = arith.addf %60, %62 : vector<8x512xf32>
    %c0_40 = arith.constant 0 : index
    %c0_41 = arith.constant 0 : index
    %64 = vector.load %arg4[%c0_40, %c0_41] : memref<128x512xf32, #tpu.memory_space<vmem>>, vector<128x512xf32>
    %cst_42 = arith.constant dense<0.000000e+00> : vector<8x512xf32>
    %65 = tpu.matmul %54, %64, %cst_42 {dimension_numbers = #tpu.dot_dimension_numbers<[1], [0], [0], [1], [0, 0, 1, 1], [], []>} : vector<8x128xf32>, vector<128x512xf32>, vector<8x512xf32> -> vector<8x512xf32>
    %66 = arith.addf %63, %65 : vector<8x512xf32>
    %67 = vector.extract_strided_slice %66 {offsets = [0, 0], sizes = [8, 128], strides = [1, 1]} : vector<8x512xf32> to vector<8x128xf32>
    %cst_43 = arith.constant 5.000000e-01 : f32
    %68 = vector.broadcast %cst_43 : f32 to vector<8x128xf32>
    %69 = arith.mulf %68, %67 : vector<8x128xf32>
    %70 = math.tanh %69 : vector<8x128xf32>
    %cst_44 = arith.constant 1.000000e+00 : f32
    %71 = vector.broadcast %cst_44 : f32 to vector<8x128xf32>
    %72 = arith.addf %71, %70 : vector<8x128xf32>
    %cst_45 = arith.constant 5.000000e-01 : f32
    %73 = vector.broadcast %cst_45 : f32 to vector<8x128xf32>
    %74 = arith.mulf %73, %72 : vector<8x128xf32>
    %75 = vector.extract_strided_slice %66 {offsets = [0, 128], sizes = [8, 128], strides = [1, 1]} : vector<8x512xf32> to vector<8x128xf32>
    %cst_46 = arith.constant 5.000000e-01 : f32
    %76 = vector.broadcast %cst_46 : f32 to vector<8x128xf32>
    %77 = arith.mulf %76, %75 : vector<8x128xf32>
    %78 = math.tanh %77 : vector<8x128xf32>
    %cst_47 = arith.constant 1.000000e+00 : f32
    %79 = vector.broadcast %cst_47 : f32 to vector<8x128xf32>
    %80 = arith.addf %79, %78 : vector<8x128xf32>
    %cst_48 = arith.constant 5.000000e-01 : f32
    %81 = vector.broadcast %cst_48 : f32 to vector<8x128xf32>
    %82 = arith.mulf %81, %80 : vector<8x128xf32>
    %83 = vector.extract_strided_slice %66 {offsets = [0, 256], sizes = [8, 128], strides = [1, 1]} : vector<8x512xf32> to vector<8x128xf32>
    %84 = math.tanh %83 : vector<8x128xf32>
    %85 = vector.extract_strided_slice %66 {offsets = [0, 384], sizes = [8, 128], strides = [1, 1]} : vector<8x512xf32> to vector<8x128xf32>
    %cst_49 = arith.constant 5.000000e-01 : f32
    %86 = vector.broadcast %cst_49 : f32 to vector<8x128xf32>
    %87 = arith.mulf %86, %85 : vector<8x128xf32>
    %88 = math.tanh %87 : vector<8x128xf32>
    %cst_50 = arith.constant 1.000000e+00 : f32
    %89 = vector.broadcast %cst_50 : f32 to vector<8x128xf32>
    %90 = arith.addf %89, %88 : vector<8x128xf32>
    %cst_51 = arith.constant 5.000000e-01 : f32
    %91 = vector.broadcast %cst_51 : f32 to vector<8x128xf32>
    %92 = arith.mulf %91, %90 : vector<8x128xf32>
    %93 = arith.mulf %82, %55 : vector<8x128xf32>
    %94 = arith.mulf %74, %84 : vector<8x128xf32>
    %95 = arith.addf %93, %94 : vector<8x128xf32>
    %96 = math.tanh %95 : vector<8x128xf32>
    %97 = arith.mulf %92, %96 : vector<8x128xf32>
    %c0_52 = arith.constant 0 : index
    %c0_53 = arith.constant 0 : index
    %98 = vector.load %arg9[%c0_52, %c0_53] : memref<8x128xf32, #tpu.memory_space<vmem>>, vector<8x128xf32>
    tpu.vector_store %arg9[%c0_52, %c0_53], %97 {strides = array<i32>} : memref<8x128xf32, #tpu.memory_space<vmem>>, vector<8x128xf32>,
    %c0_54 = arith.constant 0 : index
    %c0_55 = arith.constant 0 : index
    %99 = vector.load %arg10[%c0_54, %c0_55] : memref<8x128xf32, #tpu.memory_space<vmem>>, vector<8x128xf32>
    tpu.vector_store %arg10[%c0_54, %c0_55], %95 {strides = array<i32>} : memref<8x128xf32, #tpu.memory_space<vmem>>, vector<8x128xf32>,
    %100 = arith.truncf %97 : vector<8x128xf32> to vector<8x128xbf16>
    %101 = arith.index_cast %c1_i32 : i32 to index
    %c0_56 = arith.constant 0 : index
    %c0_57 = arith.constant 0 : index
    %102 = vector.load %arg6[%101, %c0_56, %c0_57] : memref<8x8x128xbf16, #tpu.memory_space<vmem>>, vector<1x8x128xbf16>
    %103 = vector.shape_cast %102 : vector<1x8x128xbf16> to vector<8x128xbf16>
    %104 = vector.shape_cast %100 : vector<8x128xbf16> to vector<1x8x128xbf16>
    tpu.vector_store %arg6[%101, %c0_56, %c0_57], %104 {strides = array<i32>} : memref<8x8x128xbf16, #tpu.memory_space<vmem>>, vector<1x8x128xbf16>,
    %c2_i32 = arith.constant 2 : i32
    %c0_58 = arith.constant 0 : index
    %c0_59 = arith.constant 0 : index
    %105 = vector.load %arg9[%c0_58, %c0_59] : memref<8x128xf32, #tpu.memory_space<vmem>>, vector<8x128xf32>
    %c0_60 = arith.constant 0 : index
    %c0_61 = arith.constant 0 : index
    %106 = vector.load %arg10[%c0_60, %c0_61] : memref<8x128xf32, #tpu.memory_space<vmem>>, vector<8x128xf32>
    %107 = arith.index_cast %c2_i32 : i32 to index
    %c0_62 = arith.constant 0 : index
    %c0_63 = arith.constant 0 : index
    %108 = vector.load %arg2[%107, %c0_62, %c0_63] : memref<8x8x16xbf16, #tpu.memory_space<vmem>>, vector<1x8x16xbf16>
    %109 = vector.shape_cast %108 : vector<1x8x16xbf16> to vector<8x16xbf16>
    %c0_64 = arith.constant 0 : index
    %c0_65 = arith.constant 0 : index
    %110 = vector.load %arg3[%c0_64, %c0_65] : memref<16x512xbf16, #tpu.memory_space<vmem>>, vector<16x512xbf16>
    %cst_66 = arith.constant dense<0.000000e+00> : vector<8x512xf32>
    %111 = tpu.matmul %109, %110, %cst_66 {dimension_numbers = #tpu.dot_dimension_numbers<[1], [0], [0], [1], [0, 0, 1, 1], [], []>} : vector<8x16xbf16>, vector<16x512xbf16>, vector<8x512xf32> -> vector<8x512xf32>
    %c0_67 = arith.constant 0 : index
    %c0_68 = arith.constant 0 : index
    %112 = vector.load %arg5[%c0_67, %c0_68] : memref<1x512xf32, #tpu.memory_space<vmem>>, vector<1x512xf32>
    %113 = vector.broadcast %112 : vector<1x512xf32> to vector<8x512xf32>
    %114 = arith.addf %111, %113 : vector<8x512xf32>
    %c0_69 = arith.constant 0 : index
    %c0_70 = arith.constant 0 : index
    %115 = vector.load %arg4[%c0_69, %c0_70] : memref<128x512xf32, #tpu.memory_space<vmem>>, vector<128x512xf32>
    %cst_71 = arith.constant dense<0.000000e+00> : vector<8x512xf32>
    %116 = tpu.matmul %105, %115, %cst_71 {dimension_numbers = #tpu.dot_dimension_numbers<[1], [0], [0], [1], [0, 0, 1, 1], [], []>} : vector<8x128xf32>, vector<128x512xf32>, vector<8x512xf32> -> vector<8x512xf32>
    %117 = arith.addf %114, %116 : vector<8x512xf32>
    %118 = vector.extract_strided_slice %117 {offsets = [0, 0], sizes = [8, 128], strides = [1, 1]} : vector<8x512xf32> to vector<8x128xf32>
    %cst_72 = arith.constant 5.000000e-01 : f32
    %119 = vector.broadcast %cst_72 : f32 to vector<8x128xf32>
    %120 = arith.mulf %119, %118 : vector<8x128xf32>
    %121 = math.tanh %120 : vector<8x128xf32>
    %cst_73 = arith.constant 1.000000e+00 : f32
    %122 = vector.broadcast %cst_73 : f32 to vector<8x128xf32>
    %123 = arith.addf %122, %121 : vector<8x128xf32>
    %cst_74 = arith.constant 5.000000e-01 : f32
    %124 = vector.broadcast %cst_74 : f32 to vector<8x128xf32>
    %125 = arith.mulf %124, %123 : vector<8x128xf32>
    %126 = vector.extract_strided_slice %117 {offsets = [0, 128], sizes = [8, 128], strides = [1, 1]} : vector<8x512xf32> to vector<8x128xf32>
    %cst_75 = arith.constant 5.000000e-01 : f32
    %127 = vector.broadcast %cst_75 : f32 to vector<8x128xf32>
    %128 = arith.mulf %127, %126 : vector<8x128xf32>
    %129 = math.tanh %128 : vector<8x128xf32>
    %cst_76 = arith.constant 1.000000e+00 : f32
    %130 = vector.broadcast %cst_76 : f32 to vector<8x128xf32>
    %131 = arith.addf %130, %129 : vector<8x128xf32>
    %cst_77 = arith.constant 5.000000e-01 : f32
    %132 = vector.broadcast %cst_77 : f32 to vector<8x128xf32>
    %133 = arith.mulf %132, %131 : vector<8x128xf32>
    %134 = vector.extract_strided_slice %117 {offsets = [0, 256], sizes = [8, 128], strides = [1, 1]} : vector<8x512xf32> to vector<8x128xf32>
    %135 = math.tanh %134 : vector<8x128xf32>
    %136 = vector.extract_strided_slice %117 {offsets = [0, 384], sizes = [8, 128], strides = [1, 1]} : vector<8x512xf32> to vector<8x128xf32>
    %cst_78 = arith.constant 5.000000e-01 : f32
    %137 = vector.broadcast %cst_78 : f32 to vector<8x128xf32>
    %138 = arith.mulf %137, %136 : vector<8x128xf32>
    %139 = math.tanh %138 : vector<8x128xf32>
    %cst_79 = arith.constant 1.000000e+00 : f32
    %140 = vector.broadcast %cst_79 : f32 to vector<8x128xf32>
    %141 = arith.addf %140, %139 : vector<8x128xf32>
    %cst_80 = arith.constant 5.000000e-01 : f32
    %142 = vector.broadcast %cst_80 : f32 to vector<8x128xf32>
    %143 = arith.mulf %142, %141 : vector<8x128xf32>
    %144 = arith.mulf %133, %106 : vector<8x128xf32>
    %145 = arith.mulf %125, %135 : vector<8x128xf32>
    %146 = arith.addf %144, %145 : vector<8x128xf32>
    %147 = math.tanh %146 : vector<8x128xf32>
    %148 = arith.mulf %143, %147 : vector<8x128xf32>
    %c0_81 = arith.constant 0 : index
    %c0_82 = arith.constant 0 : index
    %149 = vector.load %arg9[%c0_81, %c0_82] : memref<8x128xf32, #tpu.memory_space<vmem>>, vector<8x128xf32>
    tpu.vector_store %arg9[%c0_81, %c0_82], %148 {strides = array<i32>} : memref<8x128xf32, #tpu.memory_space<vmem>>, vector<8x128xf32>,
    %c0_83 = arith.constant 0 : index
    %c0_84 = arith.constant 0 : index
    %150 = vector.load %arg10[%c0_83, %c0_84] : memref<8x128xf32, #tpu.memory_space<vmem>>, vector<8x128xf32>
    tpu.vector_store %arg10[%c0_83, %c0_84], %146 {strides = array<i32>} : memref<8x128xf32, #tpu.memory_space<vmem>>, vector<8x128xf32>,
    %151 = arith.truncf %148 : vector<8x128xf32> to vector<8x128xbf16>
    %152 = arith.index_cast %c2_i32 : i32 to index
    %c0_85 = arith.constant 0 : index
    %c0_86 = arith.constant 0 : index
    %153 = vector.load %arg6[%152, %c0_85, %c0_86] : memref<8x8x128xbf16, #tpu.memory_space<vmem>>, vector<1x8x128xbf16>
    %154 = vector.shape_cast %153 : vector<1x8x128xbf16> to vector<8x128xbf16>
    %155 = vector.shape_cast %151 : vector<8x128xbf16> to vector<1x8x128xbf16>
    tpu.vector_store %arg6[%152, %c0_85, %c0_86], %155 {strides = array<i32>} : memref<8x8x128xbf16, #tpu.memory_space<vmem>>, vector<1x8x128xbf16>,
    %c3_i32 = arith.constant 3 : i32
    %c0_87 = arith.constant 0 : index
    %c0_88 = arith.constant 0 : index
    %156 = vector.load %arg9[%c0_87, %c0_88] : memref<8x128xf32, #tpu.memory_space<vmem>>, vector<8x128xf32>
    %c0_89 = arith.constant 0 : index
    %c0_90 = arith.constant 0 : index
    %157 = vector.load %arg10[%c0_89, %c0_90] : memref<8x128xf32, #tpu.memory_space<vmem>>, vector<8x128xf32>
    %158 = arith.index_cast %c3_i32 : i32 to index
    %c0_91 = arith.constant 0 : index
    %c0_92 = arith.constant 0 : index
    %159 = vector.load %arg2[%158, %c0_91, %c0_92] : memref<8x8x16xbf16, #tpu.memory_space<vmem>>, vector<1x8x16xbf16>
    %160 = vector.shape_cast %159 : vector<1x8x16xbf16> to vector<8x16xbf16>
    %c0_93 = arith.constant 0 : index
    %c0_94 = arith.constant 0 : index
    %161 = vector.load %arg3[%c0_93, %c0_94] : memref<16x512xbf16, #tpu.memory_space<vmem>>, vector<16x512xbf16>
    %cst_95 = arith.constant dense<0.000000e+00> : vector<8x512xf32>
    %162 = tpu.matmul %160, %161, %cst_95 {dimension_numbers = #tpu.dot_dimension_numbers<[1], [0], [0], [1], [0, 0, 1, 1], [], []>} : vector<8x16xbf16>, vector<16x512xbf16>, vector<8x512xf32> -> vector<8x512xf32>
    %c0_96 = arith.constant 0 : index
    %c0_97 = arith.constant 0 : index
    %163 = vector.load %arg5[%c0_96, %c0_97] : memref<1x512xf32, #tpu.memory_space<vmem>>, vector<1x512xf32>
    %164 = vector.broadcast %163 : vector<1x512xf32> to vector<8x512xf32>
    %165 = arith.addf %162, %164 : vector<8x512xf32>
    %c0_98 = arith.constant 0 : index
    %c0_99 = arith.constant 0 : index
    %166 = vector.load %arg4[%c0_98, %c0_99] : memref<128x512xf32, #tpu.memory_space<vmem>>, vector<128x512xf32>
    %cst_100 = arith.constant dense<0.000000e+00> : vector<8x512xf32>
    %167 = tpu.matmul %156, %166, %cst_100 {dimension_numbers = #tpu.dot_dimension_numbers<[1], [0], [0], [1], [0, 0, 1, 1], [], []>} : vector<8x128xf32>, vector<128x512xf32>, vector<8x512xf32> -> vector<8x512xf32>
    %168 = arith.addf %165, %167 : vector<8x512xf32>
    %169 = vector.extract_strided_slice %168 {offsets = [0, 0], sizes = [8, 128], strides = [1, 1]} : vector<8x512xf32> to vector<8x128xf32>
    %cst_101 = arith.constant 5.000000e-01 : f32
    %170 = vector.broadcast %cst_101 : f32 to vector<8x128xf32>
    %171 = arith.mulf %170, %169 : vector<8x128xf32>
    %172 = math.tanh %171 : vector<8x128xf32>
    %cst_102 = arith.constant 1.000000e+00 : f32
    %173 = vector.broadcast %cst_102 : f32 to vector<8x128xf32>
    %174 = arith.addf %173, %172 : vector<8x128xf32>
    %cst_103 = arith.constant 5.000000e-01 : f32
    %175 = vector.broadcast %cst_103 : f32 to vector<8x128xf32>
    %176 = arith.mulf %175, %174 : vector<8x128xf32>
    %177 = vector.extract_strided_slice %168 {offsets = [0, 128], sizes = [8, 128], strides = [1, 1]} : vector<8x512xf32> to vector<8x128xf32>
    %cst_104 = arith.constant 5.000000e-01 : f32
    %178 = vector.broadcast %cst_104 : f32 to vector<8x128xf32>
    %179 = arith.mulf %178, %177 : vector<8x128xf32>
    %180 = math.tanh %179 : vector<8x128xf32>
    %cst_105 = arith.constant 1.000000e+00 : f32
    %181 = vector.broadcast %cst_105 : f32 to vector<8x128xf32>
    %182 = arith.addf %181, %180 : vector<8x128xf32>
    %cst_106 = arith.constant 5.000000e-01 : f32
    %183 = vector.broadcast %cst_106 : f32 to vector<8x128xf32>
    %184 = arith.mulf %183, %182 : vector<8x128xf32>
    %185 = vector.extract_strided_slice %168 {offsets = [0, 256], sizes = [8, 128], strides = [1, 1]} : vector<8x512xf32> to vector<8x128xf32>
    %186 = math.tanh %185 : vector<8x128xf32>
    %187 = vector.extract_strided_slice %168 {offsets = [0, 384], sizes = [8, 128], strides = [1, 1]} : vector<8x512xf32> to vector<8x128xf32>
    %cst_107 = arith.constant 5.000000e-01 : f32
    %188 = vector.broadcast %cst_107 : f32 to vector<8x128xf32>
    %189 = arith.mulf %188, %187 : vector<8x128xf32>
    %190 = math.tanh %189 : vector<8x128xf32>
    %cst_108 = arith.constant 1.000000e+00 : f32
    %191 = vector.broadcast %cst_108 : f32 to vector<8x128xf32>
    %192 = arith.addf %191, %190 : vector<8x128xf32>
    %cst_109 = arith.constant 5.000000e-01 : f32
    %193 = vector.broadcast %cst_109 : f32 to vector<8x128xf32>
    %194 = arith.mulf %193, %192 : vector<8x128xf32>
    %195 = arith.mulf %184, %157 : vector<8x128xf32>
    %196 = arith.mulf %176, %186 : vector<8x128xf32>
    %197 = arith.addf %195, %196 : vector<8x128xf32>
    %198 = math.tanh %197 : vector<8x128xf32>
    %199 = arith.mulf %194, %198 : vector<8x128xf32>
    %c0_110 = arith.constant 0 : index
    %c0_111 = arith.constant 0 : index
    %200 = vector.load %arg9[%c0_110, %c0_111] : memref<8x128xf32, #tpu.memory_space<vmem>>, vector<8x128xf32>
    tpu.vector_store %arg9[%c0_110, %c0_111], %199 {strides = array<i32>} : memref<8x128xf32, #tpu.memory_space<vmem>>, vector<8x128xf32>,
    %c0_112 = arith.constant 0 : index
    %c0_113 = arith.constant 0 : index
    %201 = vector.load %arg10[%c0_112, %c0_113] : memref<8x128xf32, #tpu.memory_space<vmem>>, vector<8x128xf32>
    tpu.vector_store %arg10[%c0_112, %c0_113], %197 {strides = array<i32>} : memref<8x128xf32, #tpu.memory_space<vmem>>, vector<8x128xf32>,
    %202 = arith.truncf %199 : vector<8x128xf32> to vector<8x128xbf16>
    %203 = arith.index_cast %c3_i32 : i32 to index
    %c0_114 = arith.constant 0 : index
    %c0_115 = arith.constant 0 : index
    %204 = vector.load %arg6[%203, %c0_114, %c0_115] : memref<8x8x128xbf16, #tpu.memory_space<vmem>>, vector<1x8x128xbf16>
    %205 = vector.shape_cast %204 : vector<1x8x128xbf16> to vector<8x128xbf16>
    %206 = vector.shape_cast %202 : vector<8x128xbf16> to vector<1x8x128xbf16>
    tpu.vector_store %arg6[%203, %c0_114, %c0_115], %206 {strides = array<i32>} : memref<8x8x128xbf16, #tpu.memory_space<vmem>>, vector<1x8x128xbf16>,
    %c4_i32 = arith.constant 4 : i32
    %c0_116 = arith.constant 0 : index
    %c0_117 = arith.constant 0 : index
    %207 = vector.load %arg9[%c0_116, %c0_117] : memref<8x128xf32, #tpu.memory_space<vmem>>, vector<8x128xf32>
    %c0_118 = arith.constant 0 : index
    %c0_119 = arith.constant 0 : index
    %208 = vector.load %arg10[%c0_118, %c0_119] : memref<8x128xf32, #tpu.memory_space<vmem>>, vector<8x128xf32>
    %209 = arith.index_cast %c4_i32 : i32 to index
    %c0_120 = arith.constant 0 : index
    %c0_121 = arith.constant 0 : index
    %210 = vector.load %arg2[%209, %c0_120, %c0_121] : memref<8x8x16xbf16, #tpu.memory_space<vmem>>, vector<1x8x16xbf16>
    %211 = vector.shape_cast %210 : vector<1x8x16xbf16> to vector<8x16xbf16>
    %c0_122 = arith.constant 0 : index
    %c0_123 = arith.constant 0 : index
    %212 = vector.load %arg3[%c0_122, %c0_123] : memref<16x512xbf16, #tpu.memory_space<vmem>>, vector<16x512xbf16>
    %cst_124 = arith.constant dense<0.000000e+00> : vector<8x512xf32>
    %213 = tpu.matmul %211, %212, %cst_124 {dimension_numbers = #tpu.dot_dimension_numbers<[1], [0], [0], [1], [0, 0, 1, 1], [], []>} : vector<8x16xbf16>, vector<16x512xbf16>, vector<8x512xf32> -> vector<8x512xf32>
    %c0_125 = arith.constant 0 : index
    %c0_126 = arith.constant 0 : index
    %214 = vector.load %arg5[%c0_125, %c0_126] : memref<1x512xf32, #tpu.memory_space<vmem>>, vector<1x512xf32>
    %215 = vector.broadcast %214 : vector<1x512xf32> to vector<8x512xf32>
    %216 = arith.addf %213, %215 : vector<8x512xf32>
    %c0_127 = arith.constant 0 : index
    %c0_128 = arith.constant 0 : index
    %217 = vector.load %arg4[%c0_127, %c0_128] : memref<128x512xf32, #tpu.memory_space<vmem>>, vector<128x512xf32>
    %cst_129 = arith.constant dense<0.000000e+00> : vector<8x512xf32>
    %218 = tpu.matmul %207, %217, %cst_129 {dimension_numbers = #tpu.dot_dimension_numbers<[1], [0], [0], [1], [0, 0, 1, 1], [], []>} : vector<8x128xf32>, vector<128x512xf32>, vector<8x512xf32> -> vector<8x512xf32>
    %219 = arith.addf %216, %218 : vector<8x512xf32>
    %220 = vector.extract_strided_slice %219 {offsets = [0, 0], sizes = [8, 128], strides = [1, 1]} : vector<8x512xf32> to vector<8x128xf32>
    %cst_130 = arith.constant 5.000000e-01 : f32
    %221 = vector.broadcast %cst_130 : f32 to vector<8x128xf32>
    %222 = arith.mulf %221, %220 : vector<8x128xf32>
    %223 = math.tanh %222 : vector<8x128xf32>
    %cst_131 = arith.constant 1.000000e+00 : f32
    %224 = vector.broadcast %cst_131 : f32 to vector<8x128xf32>
    %225 = arith.addf %224, %223 : vector<8x128xf32>
    %cst_132 = arith.constant 5.000000e-01 : f32
    %226 = vector.broadcast %cst_132 : f32 to vector<8x128xf32>
    %227 = arith.mulf %226, %225 : vector<8x128xf32>
    %228 = vector.extract_strided_slice %219 {offsets = [0, 128], sizes = [8, 128], strides = [1, 1]} : vector<8x512xf32> to vector<8x128xf32>
    %cst_133 = arith.constant 5.000000e-01 : f32
    %229 = vector.broadcast %cst_133 : f32 to vector<8x128xf32>
    %230 = arith.mulf %229, %228 : vector<8x128xf32>
    %231 = math.tanh %230 : vector<8x128xf32>
    %cst_134 = arith.constant 1.000000e+00 : f32
    %232 = vector.broadcast %cst_134 : f32 to vector<8x128xf32>
    %233 = arith.addf %232, %231 : vector<8x128xf32>
    %cst_135 = arith.constant 5.000000e-01 : f32
    %234 = vector.broadcast %cst_135 : f32 to vector<8x128xf32>
    %235 = arith.mulf %234, %233 : vector<8x128xf32>
    %236 = vector.extract_strided_slice %219 {offsets = [0, 256], sizes = [8, 128], strides = [1, 1]} : vector<8x512xf32> to vector<8x128xf32>
    %237 = math.tanh %236 : vector<8x128xf32>
    %238 = vector.extract_strided_slice %219 {offsets = [0, 384], sizes = [8, 128], strides = [1, 1]} : vector<8x512xf32> to vector<8x128xf32>
    %cst_136 = arith.constant 5.000000e-01 : f32
    %239 = vector.broadcast %cst_136 : f32 to vector<8x128xf32>
    %240 = arith.mulf %239, %238 : vector<8x128xf32>
    %241 = math.tanh %240 : vector<8x128xf32>
    %cst_137 = arith.constant 1.000000e+00 : f32
    %242 = vector.broadcast %cst_137 : f32 to vector<8x128xf32>
    %243 = arith.addf %242, %241 : vector<8x128xf32>
    %cst_138 = arith.constant 5.000000e-01 : f32
    %244 = vector.broadcast %cst_138 : f32 to vector<8x128xf32>
    %245 = arith.mulf %244, %243 : vector<8x128xf32>
    %246 = arith.mulf %235, %208 : vector<8x128xf32>
    %247 = arith.mulf %227, %237 : vector<8x128xf32>
    %248 = arith.addf %246, %247 : vector<8x128xf32>
    %249 = math.tanh %248 : vector<8x128xf32>
    %250 = arith.mulf %245, %249 : vector<8x128xf32>
    %c0_139 = arith.constant 0 : index
    %c0_140 = arith.constant 0 : index
    %251 = vector.load %arg9[%c0_139, %c0_140] : memref<8x128xf32, #tpu.memory_space<vmem>>, vector<8x128xf32>
    tpu.vector_store %arg9[%c0_139, %c0_140], %250 {strides = array<i32>} : memref<8x128xf32, #tpu.memory_space<vmem>>, vector<8x128xf32>,
    %c0_141 = arith.constant 0 : index
    %c0_142 = arith.constant 0 : index
    %252 = vector.load %arg10[%c0_141, %c0_142] : memref<8x128xf32, #tpu.memory_space<vmem>>, vector<8x128xf32>
    tpu.vector_store %arg10[%c0_141, %c0_142], %248 {strides = array<i32>} : memref<8x128xf32, #tpu.memory_space<vmem>>, vector<8x128xf32>,
    %253 = arith.truncf %250 : vector<8x128xf32> to vector<8x128xbf16>
    %254 = arith.index_cast %c4_i32 : i32 to index
    %c0_143 = arith.constant 0 : index
    %c0_144 = arith.constant 0 : index
    %255 = vector.load %arg6[%254, %c0_143, %c0_144] : memref<8x8x128xbf16, #tpu.memory_space<vmem>>, vector<1x8x128xbf16>
    %256 = vector.shape_cast %255 : vector<1x8x128xbf16> to vector<8x128xbf16>
    %257 = vector.shape_cast %253 : vector<8x128xbf16> to vector<1x8x128xbf16>
    tpu.vector_store %arg6[%254, %c0_143, %c0_144], %257 {strides = array<i32>} : memref<8x8x128xbf16, #tpu.memory_space<vmem>>, vector<1x8x128xbf16>,
    %c5_i32 = arith.constant 5 : i32
    %c0_145 = arith.constant 0 : index
    %c0_146 = arith.constant 0 : index
    %258 = vector.load %arg9[%c0_145, %c0_146] : memref<8x128xf32, #tpu.memory_space<vmem>>, vector<8x128xf32>
    %c0_147 = arith.constant 0 : index
    %c0_148 = arith.constant 0 : index
    %259 = vector.load %arg10[%c0_147, %c0_148] : memref<8x128xf32, #tpu.memory_space<vmem>>, vector<8x128xf32>
    %260 = arith.index_cast %c5_i32 : i32 to index
    %c0_149 = arith.constant 0 : index
    %c0_150 = arith.constant 0 : index
    %261 = vector.load %arg2[%260, %c0_149, %c0_150] : memref<8x8x16xbf16, #tpu.memory_space<vmem>>, vector<1x8x16xbf16>
    %262 = vector.shape_cast %261 : vector<1x8x16xbf16> to vector<8x16xbf16>
    %c0_151 = arith.constant 0 : index
    %c0_152 = arith.constant 0 : index
    %263 = vector.load %arg3[%c0_151, %c0_152] : memref<16x512xbf16, #tpu.memory_space<vmem>>, vector<16x512xbf16>
    %cst_153 = arith.constant dense<0.000000e+00> : vector<8x512xf32>
    %264 = tpu.matmul %262, %263, %cst_153 {dimension_numbers = #tpu.dot_dimension_numbers<[1], [0], [0], [1], [0, 0, 1, 1], [], []>} : vector<8x16xbf16>, vector<16x512xbf16>, vector<8x512xf32> -> vector<8x512xf32>
    %c0_154 = arith.constant 0 : index
    %c0_155 = arith.constant 0 : index
    %265 = vector.load %arg5[%c0_154, %c0_155] : memref<1x512xf32, #tpu.memory_space<vmem>>, vector<1x512xf32>
    %266 = vector.broadcast %265 : vector<1x512xf32> to vector<8x512xf32>
    %267 = arith.addf %264, %266 : vector<8x512xf32>
    %c0_156 = arith.constant 0 : index
    %c0_157 = arith.constant 0 : index
    %268 = vector.load %arg4[%c0_156, %c0_157] : memref<128x512xf32, #tpu.memory_space<vmem>>, vector<128x512xf32>
    %cst_158 = arith.constant dense<0.000000e+00> : vector<8x512xf32>
    %269 = tpu.matmul %258, %268, %cst_158 {dimension_numbers = #tpu.dot_dimension_numbers<[1], [0], [0], [1], [0, 0, 1, 1], [], []>} : vector<8x128xf32>, vector<128x512xf32>, vector<8x512xf32> -> vector<8x512xf32>
    %270 = arith.addf %267, %269 : vector<8x512xf32>
    %271 = vector.extract_strided_slice %270 {offsets = [0, 0], sizes = [8, 128], strides = [1, 1]} : vector<8x512xf32> to vector<8x128xf32>
    %cst_159 = arith.constant 5.000000e-01 : f32
    %272 = vector.broadcast %cst_159 : f32 to vector<8x128xf32>
    %273 = arith.mulf %272, %271 : vector<8x128xf32>
    %274 = math.tanh %273 : vector<8x128xf32>
    %cst_160 = arith.constant 1.000000e+00 : f32
    %275 = vector.broadcast %cst_160 : f32 to vector<8x128xf32>
    %276 = arith.addf %275, %274 : vector<8x128xf32>
    %cst_161 = arith.constant 5.000000e-01 : f32
    %277 = vector.broadcast %cst_161 : f32 to vector<8x128xf32>
    %278 = arith.mulf %277, %276 : vector<8x128xf32>
    %279 = vector.extract_strided_slice %270 {offsets = [0, 128], sizes = [8, 128], strides = [1, 1]} : vector<8x512xf32> to vector<8x128xf32>
    %cst_162 = arith.constant 5.000000e-01 : f32
    %280 = vector.broadcast %cst_162 : f32 to vector<8x128xf32>
    %281 = arith.mulf %280, %279 : vector<8x128xf32>
    %282 = math.tanh %281 : vector<8x128xf32>
    %cst_163 = arith.constant 1.000000e+00 : f32
    %283 = vector.broadcast %cst_163 : f32 to vector<8x128xf32>
    %284 = arith.addf %283, %282 : vector<8x128xf32>
    %cst_164 = arith.constant 5.000000e-01 : f32
    %285 = vector.broadcast %cst_164 : f32 to vector<8x128xf32>
    %286 = arith.mulf %285, %284 : vector<8x128xf32>
    %287 = vector.extract_strided_slice %270 {offsets = [0, 256], sizes = [8, 128], strides = [1, 1]} : vector<8x512xf32> to vector<8x128xf32>
    %288 = math.tanh %287 : vector<8x128xf32>
    %289 = vector.extract_strided_slice %270 {offsets = [0, 384], sizes = [8, 128], strides = [1, 1]} : vector<8x512xf32> to vector<8x128xf32>
    %cst_165 = arith.constant 5.000000e-01 : f32
    %290 = vector.broadcast %cst_165 : f32 to vector<8x128xf32>
    %291 = arith.mulf %290, %289 : vector<8x128xf32>
    %292 = math.tanh %291 : vector<8x128xf32>
    %cst_166 = arith.constant 1.000000e+00 : f32
    %293 = vector.broadcast %cst_166 : f32 to vector<8x128xf32>
    %294 = arith.addf %293, %292 : vector<8x128xf32>
    %cst_167 = arith.constant 5.000000e-01 : f32
    %295 = vector.broadcast %cst_167 : f32 to vector<8x128xf32>
    %296 = arith.mulf %295, %294 : vector<8x128xf32>
    %297 = arith.mulf %286, %259 : vector<8x128xf32>
    %298 = arith.mulf %278, %288 : vector<8x128xf32>
    %299 = arith.addf %297, %298 : vector<8x128xf32>
    %300 = math.tanh %299 : vector<8x128xf32>
    %301 = arith.mulf %296, %300 : vector<8x128xf32>
    %c0_168 = arith.constant 0 : index
    %c0_169 = arith.constant 0 : index
    %302 = vector.load %arg9[%c0_168, %c0_169] : memref<8x128xf32, #tpu.memory_space<vmem>>, vector<8x128xf32>
    tpu.vector_store %arg9[%c0_168, %c0_169], %301 {strides = array<i32>} : memref<8x128xf32, #tpu.memory_space<vmem>>, vector<8x128xf32>,
    %c0_170 = arith.constant 0 : index
    %c0_171 = arith.constant 0 : index
    %303 = vector.load %arg10[%c0_170, %c0_171] : memref<8x128xf32, #tpu.memory_space<vmem>>, vector<8x128xf32>
    tpu.vector_store %arg10[%c0_170, %c0_171], %299 {strides = array<i32>} : memref<8x128xf32, #tpu.memory_space<vmem>>, vector<8x128xf32>,
    %304 = arith.truncf %301 : vector<8x128xf32> to vector<8x128xbf16>
    %305 = arith.index_cast %c5_i32 : i32 to index
    %c0_172 = arith.constant 0 : index
    %c0_173 = arith.constant 0 : index
    %306 = vector.load %arg6[%305, %c0_172, %c0_173] : memref<8x8x128xbf16, #tpu.memory_space<vmem>>, vector<1x8x128xbf16>
    %307 = vector.shape_cast %306 : vector<1x8x128xbf16> to vector<8x128xbf16>
    %308 = vector.shape_cast %304 : vector<8x128xbf16> to vector<1x8x128xbf16>
    tpu.vector_store %arg6[%305, %c0_172, %c0_173], %308 {strides = array<i32>} : memref<8x8x128xbf16, #tpu.memory_space<vmem>>, vector<1x8x128xbf16>,
    %c6_i32 = arith.constant 6 : i32
    %c0_174 = arith.constant 0 : index
    %c0_175 = arith.constant 0 : index
    %309 = vector.load %arg9[%c0_174, %c0_175] : memref<8x128xf32, #tpu.memory_space<vmem>>, vector<8x128xf32>
    %c0_176 = arith.constant 0 : index
    %c0_177 = arith.constant 0 : index
    %310 = vector.load %arg10[%c0_176, %c0_177] : memref<8x128xf32, #tpu.memory_space<vmem>>, vector<8x128xf32>
    %311 = arith.index_cast %c6_i32 : i32 to index
    %c0_178 = arith.constant 0 : index
    %c0_179 = arith.constant 0 : index
    %312 = vector.load %arg2[%311, %c0_178, %c0_179] : memref<8x8x16xbf16, #tpu.memory_space<vmem>>, vector<1x8x16xbf16>
    %313 = vector.shape_cast %312 : vector<1x8x16xbf16> to vector<8x16xbf16>
    %c0_180 = arith.constant 0 : index
    %c0_181 = arith.constant 0 : index
    %314 = vector.load %arg3[%c0_180, %c0_181] : memref<16x512xbf16, #tpu.memory_space<vmem>>, vector<16x512xbf16>
    %cst_182 = arith.constant dense<0.000000e+00> : vector<8x512xf32>
    %315 = tpu.matmul %313, %314, %cst_182 {dimension_numbers = #tpu.dot_dimension_numbers<[1], [0], [0], [1], [0, 0, 1, 1], [], []>} : vector<8x16xbf16>, vector<16x512xbf16>, vector<8x512xf32> -> vector<8x512xf32>
    %c0_183 = arith.constant 0 : index
    %c0_184 = arith.constant 0 : index
    %316 = vector.load %arg5[%c0_183, %c0_184] : memref<1x512xf32, #tpu.memory_space<vmem>>, vector<1x512xf32>
    %317 = vector.broadcast %316 : vector<1x512xf32> to vector<8x512xf32>
    %318 = arith.addf %315, %317 : vector<8x512xf32>
    %c0_185 = arith.constant 0 : index
    %c0_186 = arith.constant 0 : index
    %319 = vector.load %arg4[%c0_185, %c0_186] : memref<128x512xf32, #tpu.memory_space<vmem>>, vector<128x512xf32>
    %cst_187 = arith.constant dense<0.000000e+00> : vector<8x512xf32>
    %320 = tpu.matmul %309, %319, %cst_187 {dimension_numbers = #tpu.dot_dimension_numbers<[1], [0], [0], [1], [0, 0, 1, 1], [], []>} : vector<8x128xf32>, vector<128x512xf32>, vector<8x512xf32> -> vector<8x512xf32>
    %321 = arith.addf %318, %320 : vector<8x512xf32>
    %322 = vector.extract_strided_slice %321 {offsets = [0, 0], sizes = [8, 128], strides = [1, 1]} : vector<8x512xf32> to vector<8x128xf32>
    %cst_188 = arith.constant 5.000000e-01 : f32
    %323 = vector.broadcast %cst_188 : f32 to vector<8x128xf32>
    %324 = arith.mulf %323, %322 : vector<8x128xf32>
    %325 = math.tanh %324 : vector<8x128xf32>
    %cst_189 = arith.constant 1.000000e+00 : f32
    %326 = vector.broadcast %cst_189 : f32 to vector<8x128xf32>
    %327 = arith.addf %326, %325 : vector<8x128xf32>
    %cst_190 = arith.constant 5.000000e-01 : f32
    %328 = vector.broadcast %cst_190 : f32 to vector<8x128xf32>
    %329 = arith.mulf %328, %327 : vector<8x128xf32>
    %330 = vector.extract_strided_slice %321 {offsets = [0, 128], sizes = [8, 128], strides = [1, 1]} : vector<8x512xf32> to vector<8x128xf32>
    %cst_191 = arith.constant 5.000000e-01 : f32
    %331 = vector.broadcast %cst_191 : f32 to vector<8x128xf32>
    %332 = arith.mulf %331, %330 : vector<8x128xf32>
    %333 = math.tanh %332 : vector<8x128xf32>
    %cst_192 = arith.constant 1.000000e+00 : f32
    %334 = vector.broadcast %cst_192 : f32 to vector<8x128xf32>
    %335 = arith.addf %334, %333 : vector<8x128xf32>
    %cst_193 = arith.constant 5.000000e-01 : f32
    %336 = vector.broadcast %cst_193 : f32 to vector<8x128xf32>
    %337 = arith.mulf %336, %335 : vector<8x128xf32>
    %338 = vector.extract_strided_slice %321 {offsets = [0, 256], sizes = [8, 128], strides = [1, 1]} : vector<8x512xf32> to vector<8x128xf32>
    %339 = math.tanh %338 : vector<8x128xf32>
    %340 = vector.extract_strided_slice %321 {offsets = [0, 384], sizes = [8, 128], strides = [1, 1]} : vector<8x512xf32> to vector<8x128xf32>
    %cst_194 = arith.constant 5.000000e-01 : f32
    %341 = vector.broadcast %cst_194 : f32 to vector<8x128xf32>
    %342 = arith.mulf %341, %340 : vector<8x128xf32>
    %343 = math.tanh %342 : vector<8x128xf32>
    %cst_195 = arith.constant 1.000000e+00 : f32
    %344 = vector.broadcast %cst_195 : f32 to vector<8x128xf32>
    %345 = arith.addf %344, %343 : vector<8x128xf32>
    %cst_196 = arith.constant 5.000000e-01 : f32
    %346 = vector.broadcast %cst_196 : f32 to vector<8x128xf32>
    %347 = arith.mulf %346, %345 : vector<8x128xf32>
    %348 = arith.mulf %337, %310 : vector<8x128xf32>
    %349 = arith.mulf %329, %339 : vector<8x128xf32>
    %350 = arith.addf %348, %349 : vector<8x128xf32>
    %351 = math.tanh %350 : vector<8x128xf32>
    %352 = arith.mulf %347, %351 : vector<8x128xf32>
    %c0_197 = arith.constant 0 : index
    %c0_198 = arith.constant 0 : index
    %353 = vector.load %arg9[%c0_197, %c0_198] : memref<8x128xf32, #tpu.memory_space<vmem>>, vector<8x128xf32>
    tpu.vector_store %arg9[%c0_197, %c0_198], %352 {strides = array<i32>} : memref<8x128xf32, #tpu.memory_space<vmem>>, vector<8x128xf32>,
    %c0_199 = arith.constant 0 : index
    %c0_200 = arith.constant 0 : index
    %354 = vector.load %arg10[%c0_199, %c0_200] : memref<8x128xf32, #tpu.memory_space<vmem>>, vector<8x128xf32>
    tpu.vector_store %arg10[%c0_199, %c0_200], %350 {strides = array<i32>} : memref<8x128xf32, #tpu.memory_space<vmem>>, vector<8x128xf32>,
    %355 = arith.truncf %352 : vector<8x128xf32> to vector<8x128xbf16>
    %356 = arith.index_cast %c6_i32 : i32 to index
    %c0_201 = arith.constant 0 : index
    %c0_202 = arith.constant 0 : index
    %357 = vector.load %arg6[%356, %c0_201, %c0_202] : memref<8x8x128xbf16, #tpu.memory_space<vmem>>, vector<1x8x128xbf16>
    %358 = vector.shape_cast %357 : vector<1x8x128xbf16> to vector<8x128xbf16>
    %359 = vector.shape_cast %355 : vector<8x128xbf16> to vector<1x8x128xbf16>
    tpu.vector_store %arg6[%356, %c0_201, %c0_202], %359 {strides = array<i32>} : memref<8x8x128xbf16, #tpu.memory_space<vmem>>, vector<1x8x128xbf16>,
    %c7_i32 = arith.constant 7 : i32
    %c0_203 = arith.constant 0 : index
    %c0_204 = arith.constant 0 : index
    %360 = vector.load %arg9[%c0_203, %c0_204] : memref<8x128xf32, #tpu.memory_space<vmem>>, vector<8x128xf32>
    %c0_205 = arith.constant 0 : index
    %c0_206 = arith.constant 0 : index
    %361 = vector.load %arg10[%c0_205, %c0_206] : memref<8x128xf32, #tpu.memory_space<vmem>>, vector<8x128xf32>
    %362 = arith.index_cast %c7_i32 : i32 to index
    %c0_207 = arith.constant 0 : index
    %c0_208 = arith.constant 0 : index
    %363 = vector.load %arg2[%362, %c0_207, %c0_208] : memref<8x8x16xbf16, #tpu.memory_space<vmem>>, vector<1x8x16xbf16>
    %364 = vector.shape_cast %363 : vector<1x8x16xbf16> to vector<8x16xbf16>
    %c0_209 = arith.constant 0 : index
    %c0_210 = arith.constant 0 : index
    %365 = vector.load %arg3[%c0_209, %c0_210] : memref<16x512xbf16, #tpu.memory_space<vmem>>, vector<16x512xbf16>
    %cst_211 = arith.constant dense<0.000000e+00> : vector<8x512xf32>
    %366 = tpu.matmul %364, %365, %cst_211 {dimension_numbers = #tpu.dot_dimension_numbers<[1], [0], [0], [1], [0, 0, 1, 1], [], []>} : vector<8x16xbf16>, vector<16x512xbf16>, vector<8x512xf32> -> vector<8x512xf32>
    %c0_212 = arith.constant 0 : index
    %c0_213 = arith.constant 0 : index
    %367 = vector.load %arg5[%c0_212, %c0_213] : memref<1x512xf32, #tpu.memory_space<vmem>>, vector<1x512xf32>
    %368 = vector.broadcast %367 : vector<1x512xf32> to vector<8x512xf32>
    %369 = arith.addf %366, %368 : vector<8x512xf32>
    %c0_214 = arith.constant 0 : index
    %c0_215 = arith.constant 0 : index
    %370 = vector.load %arg4[%c0_214, %c0_215] : memref<128x512xf32, #tpu.memory_space<vmem>>, vector<128x512xf32>
    %cst_216 = arith.constant dense<0.000000e+00> : vector<8x512xf32>
    %371 = tpu.matmul %360, %370, %cst_216 {dimension_numbers = #tpu.dot_dimension_numbers<[1], [0], [0], [1], [0, 0, 1, 1], [], []>} : vector<8x128xf32>, vector<128x512xf32>, vector<8x512xf32> -> vector<8x512xf32>
    %372 = arith.addf %369, %371 : vector<8x512xf32>
    %373 = vector.extract_strided_slice %372 {offsets = [0, 0], sizes = [8, 128], strides = [1, 1]} : vector<8x512xf32> to vector<8x128xf32>
    %cst_217 = arith.constant 5.000000e-01 : f32
    %374 = vector.broadcast %cst_217 : f32 to vector<8x128xf32>
    %375 = arith.mulf %374, %373 : vector<8x128xf32>
    %376 = math.tanh %375 : vector<8x128xf32>
    %cst_218 = arith.constant 1.000000e+00 : f32
    %377 = vector.broadcast %cst_218 : f32 to vector<8x128xf32>
    %378 = arith.addf %377, %376 : vector<8x128xf32>
    %cst_219 = arith.constant 5.000000e-01 : f32
    %379 = vector.broadcast %cst_219 : f32 to vector<8x128xf32>
    %380 = arith.mulf %379, %378 : vector<8x128xf32>
    %381 = vector.extract_strided_slice %372 {offsets = [0, 128], sizes = [8, 128], strides = [1, 1]} : vector<8x512xf32> to vector<8x128xf32>
    %cst_220 = arith.constant 5.000000e-01 : f32
    %382 = vector.broadcast %cst_220 : f32 to vector<8x128xf32>
    %383 = arith.mulf %382, %381 : vector<8x128xf32>
    %384 = math.tanh %383 : vector<8x128xf32>
    %cst_221 = arith.constant 1.000000e+00 : f32
    %385 = vector.broadcast %cst_221 : f32 to vector<8x128xf32>
    %386 = arith.addf %385, %384 : vector<8x128xf32>
    %cst_222 = arith.constant 5.000000e-01 : f32
    %387 = vector.broadcast %cst_222 : f32 to vector<8x128xf32>
    %388 = arith.mulf %387, %386 : vector<8x128xf32>
    %389 = vector.extract_strided_slice %372 {offsets = [0, 256], sizes = [8, 128], strides = [1, 1]} : vector<8x512xf32> to vector<8x128xf32>
    %390 = math.tanh %389 : vector<8x128xf32>
    %391 = vector.extract_strided_slice %372 {offsets = [0, 384], sizes = [8, 128], strides = [1, 1]} : vector<8x512xf32> to vector<8x128xf32>
    %cst_223 = arith.constant 5.000000e-01 : f32
    %392 = vector.broadcast %cst_223 : f32 to vector<8x128xf32>
    %393 = arith.mulf %392, %391 : vector<8x128xf32>
    %394 = math.tanh %393 : vector<8x128xf32>
    %cst_224 = arith.constant 1.000000e+00 : f32
    %395 = vector.broadcast %cst_224 : f32 to vector<8x128xf32>
    %396 = arith.addf %395, %394 : vector<8x128xf32>
    %cst_225 = arith.constant 5.000000e-01 : f32
    %397 = vector.broadcast %cst_225 : f32 to vector<8x128xf32>
    %398 = arith.mulf %397, %396 : vector<8x128xf32>
    %399 = arith.mulf %388, %361 : vector<8x128xf32>
    %400 = arith.mulf %380, %390 : vector<8x128xf32>
    %401 = arith.addf %399, %400 : vector<8x128xf32>
    %402 = math.tanh %401 : vector<8x128xf32>
    %403 = arith.mulf %398, %402 : vector<8x128xf32>
    %c0_226 = arith.constant 0 : index
    %c0_227 = arith.constant 0 : index
    %404 = vector.load %arg9[%c0_226, %c0_227] : memref<8x128xf32, #tpu.memory_space<vmem>>, vector<8x128xf32>
    tpu.vector_store %arg9[%c0_226, %c0_227], %403 {strides = array<i32>} : memref<8x128xf32, #tpu.memory_space<vmem>>, vector<8x128xf32>,
    %c0_228 = arith.constant 0 : index
    %c0_229 = arith.constant 0 : index
    %405 = vector.load %arg10[%c0_228, %c0_229] : memref<8x128xf32, #tpu.memory_space<vmem>>, vector<8x128xf32>
    tpu.vector_store %arg10[%c0_228, %c0_229], %401 {strides = array<i32>} : memref<8x128xf32, #tpu.memory_space<vmem>>, vector<8x128xf32>,
    %406 = arith.truncf %403 : vector<8x128xf32> to vector<8x128xbf16>
    %407 = arith.index_cast %c7_i32 : i32 to index
    %c0_230 = arith.constant 0 : index
    %c0_231 = arith.constant 0 : index
    %408 = vector.load %arg6[%407, %c0_230, %c0_231] : memref<8x8x128xbf16, #tpu.memory_space<vmem>>, vector<1x8x128xbf16>
    %409 = vector.shape_cast %408 : vector<1x8x128xbf16> to vector<8x128xbf16>
    %410 = vector.shape_cast %406 : vector<8x128xbf16> to vector<1x8x128xbf16>
    tpu.vector_store %arg6[%407, %c0_230, %c0_231], %410 {strides = array<i32>} : memref<8x8x128xbf16, #tpu.memory_space<vmem>>, vector<1x8x128xbf16>,
    %c8_i32 = arith.constant 8 : i32
    %c0_i32_232 = arith.constant 0 : i32
    %411 = arith.cmpi eq, %arg1, %c0_i32_232 : i32
    %412 = arith.extui %411 : i1 to i32
    %c0_i32_233 = arith.constant 0 : i32
    %413 = arith.cmpi ne, %412, %c0_i32_233 : i32
    scf.if %413 {
      %c0_234 = arith.constant 0 : index
      %c0_235 = arith.constant 0 : index
      %414 = vector.load %arg9[%c0_234, %c0_235] : memref<8x128xf32, #tpu.memory_space<vmem>>, vector<8x128xf32>
      %c0_236 = arith.constant 0 : index
      %c0_237 = arith.constant 0 : index
      %c0_238 = arith.constant 0 : index
      %415 = vector.load %arg7[%c0_236, %c0_237, %c0_238] : memref<1x8x128xf32, #tpu.memory_space<vmem>>, vector<1x8x128xf32>
      %416 = vector.shape_cast %415 : vector<1x8x128xf32> to vector<8x128xf32>
      %417 = vector.shape_cast %414 : vector<8x128xf32> to vector<1x8x128xf32>
      tpu.vector_store %arg7[%c0_236, %c0_237, %c0_238], %417 {strides = array<i32>} : memref<1x8x128xf32, #tpu.memory_space<vmem>>, vector<1x8x128xf32>,
      %c0_239 = arith.constant 0 : index
      %c0_240 = arith.constant 0 : index
      %418 = vector.load %arg10[%c0_239, %c0_240] : memref<8x128xf32, #tpu.memory_space<vmem>>, vector<8x128xf32>
      %c0_241 = arith.constant 0 : index
      %c0_242 = arith.constant 0 : index
      %c0_243 = arith.constant 0 : index
      %419 = vector.load %arg8[%c0_241, %c0_242, %c0_243] : memref<1x8x128xf32, #tpu.memory_space<vmem>>, vector<1x8x128xf32>
      %420 = vector.shape_cast %419 : vector<1x8x128xf32> to vector<8x128xf32>
      %421 = vector.shape_cast %418 : vector<8x128xf32> to vector<1x8x128xf32>
      tpu.vector_store %arg8[%c0_241, %c0_242, %c0_243], %421 {strides = array<i32>} : memref<1x8x128xf32, #tpu.memory_space<vmem>>, vector<1x8x128xf32>,
    } else {
    }
    return
  }
  func.func @transform_0(%arg0: i32, %arg1: i32) -> (i32, i32, i32) {
    %c0_i32 = arith.constant 0 : i32
    %c0_i32_0 = arith.constant 0 : i32
    return %arg1, %arg0, %c0_i32 : i32, i32, i32
  }
  func.func @transform_1(%arg0: i32, %arg1: i32) -> (i32, i32) {
    %c0_i32 = arith.constant 0 : i32
    %c0_i32_0 = arith.constant 0 : i32
    %c0_i32_1 = arith.constant 0 : i32
    return %c0_i32, %c0_i32_0 : i32, i32
  }
  func.func @transform_2(%arg0: i32, %arg1: i32) -> (i32, i32) {
    %c0_i32 = arith.constant 0 : i32
    %c0_i32_0 = arith.constant 0 : i32
    %c0_i32_1 = arith.constant 0 : i32
    return %c0_i32, %c0_i32_0 : i32, i32
  }
  func.func @transform_3(%arg0: i32, %arg1: i32) -> (i32, i32) {
    %c0_i32 = arith.constant 0 : i32
    %c0_i32_0 = arith.constant 0 : i32
    %c0_i32_1 = arith.constant 0 : i32
    return %c0_i32, %c0_i32_0 : i32, i32
  }
  func.func @transform_4(%arg0: i32, %arg1: i32) -> (i32, i32, i32) {
    %c0_i32 = arith.constant 0 : i32
    %c0_i32_0 = arith.constant 0 : i32
    return %arg1, %arg0, %c0_i32 : i32, i32, i32
  }
  func.func @transform_5(%arg0: i32, %arg1: i32) -> (i32, i32, i32) {
    %c0_i32 = arith.constant 0 : i32
    %c0_i32_0 = arith.constant 0 : i32
    %c0_i32_1 = arith.constant 0 : i32
    return %c0_i32, %arg0, %c0_i32_0 : i32, i32, i32
  }
  func.func @transform_6(%arg0: i32, %arg1: i32) -> (i32, i32, i32) {
    %c0_i32 = arith.constant 0 : i32
    %c0_i32_0 = arith.constant 0 : i32
    %c0_i32_1 = arith.constant 0 : i32
    return %c0_i32, %arg0, %c0_i32_0 : i32, i32, i32
  }
}

</mosaic_0001>

<llo_original>
// kernel: tpu_custom_call.1
$region0: #{tpu_custom_call.1}
  #allocation0 [shape = 'u32[]', space=smem, size = 0x4, offset = 0x4, fixed_abs, tag = 'smem constant byte address 0x4 - core index']
  #allocation1 [shape = 'u32[144,128]{1,0:T(1,128)}', space=vmem, size = 0x12000, scoped, tag = 'internal scratch']
  #allocation2 [shape = 'f32[8,128]{1,0:T(8,128)}', space=vmem, size = 0x1000, scoped, tag = 'scratch operand']
  #allocation3 [shape = 'f32[8,128]{1,0:T(8,128)}', space=vmem, size = 0x1000, scoped, tag = 'scratch operand']
  %s0 = inlined_call_operand.hbm [shape: bf16[8,8,16], index: 0, kind: input, shape index: {}]
  %s1 = inlined_call_operand.hbm [shape: bf16[16,512], index: 1, kind: input, shape index: {}]
  %s2 = inlined_call_operand.hbm [shape: f32[128,512], index: 2, kind: input, shape index: {}]
  %s3 = inlined_call_operand.vmem [shape: f32[1,512], index: 3, kind: input, shape index: {}]
  %s4 = inlined_call_operand.hbm [shape: bf16[8,8,128], index: 4, kind: output, shape index: {0}]
  %s5 = inlined_call_operand.hbm [shape: f32[1,8,128], index: 5, kind: output, shape index: {1}]
  %s6 = inlined_call_operand.hbm [shape: f32[1,8,128], index: 6, kind: output, shape index: {2}]
  %7 = xla_tuple %s4, %s5, %s6
  %s8 = sld [smem:[#allocation0]]
  $region62: #{tpu_custom_call.1} parent=0
    _
  %s10 = ssub.s32 1, %s8
  %s11 = scalar_select 0, %s10, %s8
  $region1: #{tpu_custom_call.1} parent=0
    #allocation4 [shape = 'u8[16384]{0}', space=vmem, size = 0x4000, scoped, tag = 'input window, operand 0, single buffered']
    #allocation5 [shape = 's32[1]{0}', space=sflag, size = 0x4, scoped, tag = 'scoped memory for tpu_custom_call.1']
    #allocation6 [shape = 's32[1]{0}', space=sflag, size = 0x4, scoped, tag = 'scoped memory for tpu_custom_call.1']
    #allocation7 [shape = 'u8[16384]{0}', space=vmem, size = 0x4000, scoped, tag = 'input window, operand 1, single buffered']
    #allocation8 [shape = 's32[1]{0}', space=sflag, size = 0x4, scoped, tag = 'scoped memory for tpu_custom_call.1']
    #allocation9 [shape = 'u8[262144]{0}', space=vmem, size = 0x40000, scoped, tag = 'input window, operand 2, single buffered']
    #allocation10 [shape = 'u8[16384]{0}', space=vmem, size = 0x4000, scoped, tag = 'output window, operand 0, single buffered']
    #allocation11 [shape = 'u8[4096]{0}', space=vmem, size = 0x1000, scoped, tag = 'output window, operand 1, single buffered']
    #allocation12 [shape = 's32[1]{0}', space=sflag, size = 0x4, scoped, tag = 'scoped memory for tpu_custom_call.1']
    #allocation13 [shape = 'u8[4096]{0}', space=vmem, size = 0x1000, scoped, tag = 'output window, operand 2, single buffered']
    %12 = vsyncpa [#allocation5], 0
    %13 = vsyncpa [#allocation8], 0
    %14 = vsyncpa [#allocation6], 0
    %15 = vsyncpa [#allocation12], 0
    // Predicated region
    $region2: #{tpu_custom_call.1} parent=1 // pred_check
      _
    $region3: #{tpu_custom_call.1} parent=1 // pred_check_branch
      %17 = sbr.rel (0) target = $region5
    $region4: #{tpu_custom_call.1} parent=1 // pred_region
      %s19 = ssub.s32 512, 512
      %20 = vsyncadd [#allocation5], %s19
      %s21 = sshll.u32 [#allocation4], 4
      %s22 = int_to_ptr.vmem [resolvable:$true] %s21
      %27 = dma.hbm_to_vmem [thread:$0]  %s0, 512, %s22, [#allocation5], 64, 64, 4
    $region5: #{tpu_custom_call.1} parent=1 // pred_fallthru
      _
    // Predicated region
    $region6: #{tpu_custom_call.1} parent=1 // pred_check
      _
    $region7: #{tpu_custom_call.1} parent=1 // pred_check_branch
      %29 = sbr.rel (0) target = $region9
    $region8: #{tpu_custom_call.1} parent=1 // pred_region
      %s31 = ssub.s32 512, 512
      %32 = vsyncadd [#allocation8], %s31
      %s33 = sshll.u32 [#allocation7], 4
      %s34 = int_to_ptr.vmem [resolvable:$true] %s33
      %39 = dma.hbm_to_vmem [thread:$0]  %s1, 512, %s34, [#allocation8], 256, 256, 16
    $region9: #{tpu_custom_call.1} parent=1 // pred_fallthru
      _
    // Predicated region
    $region10: #{tpu_custom_call.1} parent=1 // pred_check
      _
    $region11: #{tpu_custom_call.1} parent=1 // pred_check_branch
      %41 = sbr.rel (0) target = $region13
    $region12: #{tpu_custom_call.1} parent=1 // pred_region
      %s43 = ssub.s32 8192, 8192
      %44 = vsyncadd [#allocation8], %s43
      %s45 = sshll.u32 [#allocation9], 4
      %s46 = int_to_ptr.vmem [resolvable:$true] %s45
      %51 = dma.hbm_to_vmem [thread:$0]  %s2, 8192, %s46, [#allocation8], 512, 512, 32
    $region13: #{tpu_custom_call.1} parent=1 // pred_fallthru
      _
    // Predicated region
    $region14: #{tpu_custom_call.1} parent=1 // pred_check
      _
    $region15: #{tpu_custom_call.1} parent=1 // pred_check_branch
      %53 = sbr.rel (0) target = $region17
    $region16: #{tpu_custom_call.1} parent=1 // pred_region
      _
    $region17: #{tpu_custom_call.1} parent=1 // pred_fallthru
      _
    // Predicated region
    $region18: #{tpu_custom_call.1} parent=1 // pred_check
      _
    $region19: #{tpu_custom_call.1} parent=1 // pred_check_branch
      %55 = sbr.rel (0) target = $region21
    $region20: #{tpu_custom_call.1} parent=1 // pred_region
      %56 = dma.done [#allocation5], 512
    $region21: #{tpu_custom_call.1} parent=1 // pred_fallthru
      _
    // Predicated region
    $region22: #{tpu_custom_call.1} parent=1 // pred_check
      _
    $region23: #{tpu_custom_call.1} parent=1 // pred_check_branch
      %58 = sbr.rel (0) target = $region25
    $region24: #{tpu_custom_call.1} parent=1 // pred_region
      %59 = dma.done [#allocation8], 512
    $region25: #{tpu_custom_call.1} parent=1 // pred_fallthru
      _
    // Predicated region
    $region26: #{tpu_custom_call.1} parent=1 // pred_check
      _
    $region27: #{tpu_custom_call.1} parent=1 // pred_check_branch
      %61 = sbr.rel (0) target = $region29
    $region28: #{tpu_custom_call.1} parent=1 // pred_region
      %62 = dma.done [#allocation8], 8192
    $region29: #{tpu_custom_call.1} parent=1 // pred_fallthru
      _
    %p64 = scmp.eq.s32.totalorder 0, 0
    // Predicated region
    $region30: #{tpu_custom_call.1} parent=1 // pred_check
      %p65 = pneg %p64
    $region31: #{tpu_custom_call.1} parent=1 // pred_check_branch
      %67 = sbr.rel (%p65) target = $region33
    $region32: #{tpu_custom_call.1} parent=1 // pred_region
      %68 = vst [vmem:[#allocation2] sm:$0xff] 0.0
      %69 = vst [vmem:[#allocation3] sm:$0xff] 0.0
    $region33: #{tpu_custom_call.1} parent=1 // pred_fallthru
      _
    %v70 = vld [vmem:[#allocation2] sm:$0xff]
    %v71 = vld [vmem:[#allocation3] sm:$0xff]
    %v72 = vld [vmem:[#allocation4] sm:$0xf]
    %v73 = vld [vmem:[#allocation7] sm:$0xff]
    %v74 = vld [vmem:[#allocation7 + $0x8] sm:$0xff]
    %v75 = vld [vmem:[#allocation7 + $0x10] sm:$0xff]
    %v76 = vld [vmem:[#allocation7 + $0x18] sm:$0xff]
    %v77 = vld [vmem:[%s3] sm:$0xf]
    %v79 = vlaneseq
    %v80 = vshrl.u32 %v79, 7
    %v81 = vsub.s32 0, %v80
    %v82 = vrot.slane %v77, %v81
    %v83 = vlaneseq
    %v84 = vshrl.u32 %v83, 7
    %v85 = vsub.s32 1, %v84
    %v86 = vrot.slane %v77, %v85
    %v87 = vlaneseq
    %v88 = vshrl.u32 %v87, 7
    %v89 = vsub.s32 2, %v88
    %v90 = vrot.slane %v77, %v89
    %v91 = vlaneseq
    %v92 = vshrl.u32 %v91, 7
    %v93 = vsub.s32 3, %v92
    %v94 = vrot.slane %v77, %v93
    %v103 = vunpack.c.l.b16 %v73
    %v104 = vunpack.c.h.b16 %v73
    %v105 = vunpack.c.l.b16 %v74
    %v106 = vunpack.c.h.b16 %v74
    %v107 = vunpack.c.l.b16 %v75
    %v108 = vunpack.c.h.b16 %v75
    %v109 = vunpack.c.l.b16 %v76
    %v110 = vunpack.c.h.b16 %v76
    %v111 = vpack.c.b16 %v107, %v103
    %v112 = vpack.c.b16 %v108, %v104
    %v113 = vpack.c.b16 %v109, %v105
    %v114 = vpack.c.b16 %v110, %v106
    %vm119 = vcmask 130048
    %v121 = vsel %vm119, %v72, 0
    %123 = vmatprep.subr.bf16.mxu0 %v112
    %124 = vmatpush1.bf16.msra.mxu0 %v111
    %125 = vmatprep.subr.bf16.mxu0 0
    %126 = vmatpush1.bf16.msra.mxu0 0
    %127 = vmatprep.subr.bf16.mxu0 0
    %128 = vmatpush1.bf16.msra.mxu0 0
    %129 = vmatprep.subr.bf16.mxu0 0
    %130 = vmatpush1.bf16.msra.mxu0 0
    %131 = vmatprep.subr.bf16.mxu0 0
    %132 = vmatpush1.bf16.msra.mxu0 0
    %133 = vmatprep.subr.bf16.mxu0 0
    %134 = vmatpush1.bf16.msra.mxu0 0
    %135 = vmatprep.subr.bf16.mxu0 0
    %136 = vmatpush1.bf16.msra.mxu0 0
    %137 = vmatprep.subr.bf16.mxu0 0
    %138 = vmatpush1.bf16.msra.mxu0 0
    %139 = vmatprep.subr.bf16.mxu0 0
    %140 = vmatpush1.bf16.msra.mxu0 0
    %141 = vmatprep.subr.bf16.mxu0 0
    %142 = vmatpush1.bf16.msra.mxu0 0
    %143 = vmatprep.subr.bf16.mxu0 0
    %144 = vmatpush1.bf16.msra.mxu0 0
    %145 = vmatprep.subr.bf16.mxu0 0
    %146 = vmatpush1.bf16.msra.mxu0 0
    %147 = vmatprep.subr.bf16.mxu0 0
    %148 = vmatpush1.bf16.msra.mxu0 0
    %149 = vmatprep.subr.bf16.mxu0 0
    %150 = vmatpush1.bf16.msra.mxu0 0
    %151 = vmatprep.subr.bf16.mxu0 0
    %152 = vmatpush1.bf16.msra.mxu0 0
    %153 = vmatprep.subr.bf16.mxu0 0
    %154 = vmatpush1.bf16.msra.mxu0 0
    %155 = vmatprep.mubr.bf16.mxu0 0
    %156 = vmatmul.mubr.bf16.gmra.mrb[0].mxu0 %v121
    %v157 = vpop.f32.mrb[0].mxu0
    %v158 = vadd.f32 %v82, %v157
    %v159 = vpop.f32.mrb[0].mxu0
    %v160 = vadd.f32 %v86, %v159
    %v161 = vpop.f32.mrb[0].mxu0
    %v162 = vpop.f32.mrb[0].mxu0
    %163 = vdwg.mxu0
    %164 = vmatprep.subr.bf16.mxu0 %v114
    %165 = vmatpush1.bf16.msra.mxu0 %v113
    %166 = vmatprep.subr.bf16.mxu0 0
    %167 = vmatpush1.bf16.msra.mxu0 0
    %168 = vmatprep.subr.bf16.mxu0 0
    %169 = vmatpush1.bf16.msra.mxu0 0
    %170 = vmatprep.subr.bf16.mxu0 0
    %171 = vmatpush1.bf16.msra.mxu0 0
    %172 = vmatprep.subr.bf16.mxu0 0
    %173 = vmatpush1.bf16.msra.mxu0 0
    %174 = vmatprep.subr.bf16.mxu0 0
    %175 = vmatpush1.bf16.msra.mxu0 0
    %176 = vmatprep.subr.bf16.mxu0 0
    %177 = vmatpush1.bf16.msra.mxu0 0
    %178 = vmatprep.subr.bf16.mxu0 0
    %179 = vmatpush1.bf16.msra.mxu0 0
    %180 = vmatprep.subr.bf16.mxu0 0
    %181 = vmatpush1.bf16.msra.mxu0 0
    %182 = vmatprep.subr.bf16.mxu0 0
    %183 = vmatpush1.bf16.msra.mxu0 0
    %184 = vmatprep.subr.bf16.mxu0 0
    %185 = vmatpush1.bf16.msra.mxu0 0
    %186 = vmatprep.subr.bf16.mxu0 0
    %187 = vmatpush1.bf16.msra.mxu0 0
    %188 = vmatprep.subr.bf16.mxu0 0
    %189 = vmatpush1.bf16.msra.mxu0 0
    %190 = vmatprep.subr.bf16.mxu0 0
    %191 = vmatpush1.bf16.msra.mxu0 0
    %192 = vmatprep.subr.bf16.mxu0 0
    %193 = vmatpush1.bf16.msra.mxu0 0
    %194 = vmatprep.subr.bf16.mxu0 0
    %195 = vmatpush1.bf16.msra.mxu0 0
    %196 = vmatprep.mubr.bf16.mxu0 0
    %197 = vmatmul.mubr.bf16.gmra.mrb[0].mxu0 %v121
    %v198 = vpop.f32.mrb[0].mxu0
    %v199 = vadd.f32 %v90, %v198
    %v200 = vpop.f32.mrb[0].mxu0
    %v201 = vadd.f32 %v94, %v200
    %v202 = vpop.f32.mrb[0].mxu0
    %v203 = vpop.f32.mrb[0].mxu0
    %204 = vdwg.mxu0
    %v205 = vld [vmem:[#allocation9] sm:$0xff]
    %v206 = vld [vmem:[#allocation9 + $0x8] sm:$0xff]
    %v207 = vld [vmem:[#allocation9 + $0x10] sm:$0xff]
    %v208 = vld [vmem:[#allocation9 + $0x18] sm:$0xff]
    %v209 = vld [vmem:[#allocation9 + $0x20] sm:$0xff]
    %v210 = vld [vmem:[#allocation9 + $0x28] sm:$0xff]
    %v211 = vld [vmem:[#allocation9 + $0x30] sm:$0xff]
    %v212 = vld [vmem:[#allocation9 + $0x38] sm:$0xff]
    %v213 = vld [vmem:[#allocation9 + $0x40] sm:$0xff]
    %v214 = vld [vmem:[#allocation9 + $0x48] sm:$0xff]
    %v215 = vld [vmem:[#allocation9 + $0x50] sm:$0xff]
    %v216 = vld [vmem:[#allocation9 + $0x58] sm:$0xff]
    %v217 = vld [vmem:[#allocation9 + $0x60] sm:$0xff]
    %v218 = vld [vmem:[#allocation9 + $0x68] sm:$0xff]
    %v219 = vld [vmem:[#allocation9 + $0x70] sm:$0xff]
    %v220 = vld [vmem:[#allocation9 + $0x78] sm:$0xff]
    %v221 = vld [vmem:[#allocation9 + $0x80] sm:$0xff]
    %v222 = vld [vmem:[#allocation9 + $0x88] sm:$0xff]
    %v223 = vld [vmem:[#allocation9 + $0x90] sm:$0xff]
    %v224 = vld [vmem:[#allocation9 + $0x98] sm:$0xff]
    %v225 = vld [vmem:[#allocation9 + $0xa0] sm:$0xff]
    %v226 = vld [vmem:[#allocation9 + $0xa8] sm:$0xff]
    %v227 = vld [vmem:[#allocation9 + $0xb0] sm:$0xff]
    %v228 = vld [vmem:[#allocation9 + $0xb8] sm:$0xff]
    %v229 = vld [vmem:[#allocation9 + $0xc0] sm:$0xff]
    %v230 = vld [vmem:[#allocation9 + $0xc8] sm:$0xff]
    %v231 = vld [vmem:[#allocation9 + $0xd0] sm:$0xff]
    %v232 = vld [vmem:[#allocation9 + $0xd8] sm:$0xff]
    %v233 = vld [vmem:[#allocation9 + $0xe0] sm:$0xff]
    %v234 = vld [vmem:[#allocation9 + $0xe8] sm:$0xff]
    %v235 = vld [vmem:[#allocation9 + $0xf0] sm:$0xff]
    %v236 = vld [vmem:[#allocation9 + $0xf8] sm:$0xff]
    %v237 = vld [vmem:[#allocation9 + $0x100] sm:$0xff]
    %v238 = vld [vmem:[#allocation9 + $0x108] sm:$0xff]
    %v239 = vld [vmem:[#allocation9 + $0x110] sm:$0xff]
    %v240 = vld [vmem:[#allocation9 + $0x118] sm:$0xff]
    %v241 = vld [vmem:[#allocation9 + $0x120] sm:$0xff]
    %v242 = vld [vmem:[#allocation9 + $0x128] sm:$0xff]
    %v243 = vld [vmem:[#allocation9 + $0x130] sm:$0xff]
    %v244 = vld [vmem:[#allocation9 + $0x138] sm:$0xff]
    %v245 = vld [vmem:[#allocation9 + $0x140] sm:$0xff]
    %v246 = vld [vmem:[#allocation9 + $0x148] sm:$0xff]
    %v247 = vld [vmem:[#allocation9 + $0x150] sm:$0xff]
    %v248 = vld [vmem:[#allocation9 + $0x158] sm:$0xff]
    %v249 = vld [vmem:[#allocation9 + $0x160] sm:$0xff]
    %v250 = vld [vmem:[#allocation9 + $0x168] sm:$0xff]
    %v251 = vld [vmem:[#allocation9 + $0x170] sm:$0xff]
    %v252 = vld [vmem:[#allocation9 + $0x178] sm:$0xff]
    %v253 = vld [vmem:[#allocation9 + $0x180] sm:$0xff]
    %v254 = vld [vmem:[#allocation9 + $0x188] sm:$0xff]
    %v255 = vld [vmem:[#allocation9 + $0x190] sm:$0xff]
    %v256 = vld [vmem:[#allocation9 + $0x198] sm:$0xff]
    %v257 = vld [vmem:[#allocation9 + $0x1a0] sm:$0xff]
    %v258 = vld [vmem:[#allocation9 + $0x1a8] sm:$0xff]
    %v259 = vld [vmem:[#allocation9 + $0x1b0] sm:$0xff]
    %v260 = vld [vmem:[#allocation9 + $0x1b8] sm:$0xff]
    %v261 = vld [vmem:[#allocation9 + $0x1c0] sm:$0xff]
    %v262 = vld [vmem:[#allocation9 + $0x1c8] sm:$0xff]
    %v263 = vld [vmem:[#allocation9 + $0x1d0] sm:$0xff]
    %v264 = vld [vmem:[#allocation9 + $0x1d8] sm:$0xff]
    %v265 = vld [vmem:[#allocation9 + $0x1e0] sm:$0xff]
    %v266 = vld [vmem:[#allocation9 + $0x1e8] sm:$0xff]
    %v267 = vld [vmem:[#allocation9 + $0x1f0] sm:$0xff]
    %v268 = vld [vmem:[#allocation9 + $0x1f8] sm:$0xff]
    %269 = vmatprep.subr.mxu0 %v206
    %270 = vmatpush1.msra.mxu0 %v205
    %271 = vmatprep.subr.mxu0 %v210
    %272 = vmatpush1.msra.mxu0 %v209
    %273 = vmatprep.subr.mxu0 %v214
    %274 = vmatpush1.msra.mxu0 %v213
    %275 = vmatprep.subr.mxu0 %v218
    %276 = vmatpush1.msra.mxu0 %v217
    %277 = vmatprep.subr.mxu0 %v222
    %278 = vmatpush1.msra.mxu0 %v221
    %279 = vmatprep.subr.mxu0 %v226
    %280 = vmatpush1.msra.mxu0 %v225
    %281 = vmatprep.subr.mxu0 %v230
    %282 = vmatpush1.msra.mxu0 %v229
    %283 = vmatprep.subr.mxu0 %v234
    %284 = vmatpush1.msra.mxu0 %v233
    %285 = vmatprep.subr.mxu0 %v238
    %286 = vmatpush1.msra.mxu0 %v237
    %287 = vmatprep.subr.mxu0 %v242
    %288 = vmatpush1.msra.mxu0 %v241
    %289 = vmatprep.subr.mxu0 %v246
    %290 = vmatpush1.msra.mxu0 %v245
    %291 = vmatprep.subr.mxu0 %v250
    %292 = vmatpush1.msra.mxu0 %v249
    %293 = vmatprep.subr.mxu0 %v254
    %294 = vmatpush1.msra.mxu0 %v253
    %295 = vmatprep.subr.mxu0 %v258
    %296 = vmatpush1.msra.mxu0 %v257
    %297 = vmatprep.subr.mxu0 %v262
    %298 = vmatpush1.msra.mxu0 %v261
    %299 = vmatprep.subr.mxu0 %v266
    %300 = vmatpush1.msra.mxu0 %v265
    %301 = vmatprep.subr.mxu0 0.0
    %302 = vmatpush1.msra.mxu0 0.0
    %303 = vmatprep.subr.mxu0 0.0
    %304 = vmatpush1.msra.mxu0 0.0
    %305 = vmatprep.subr.mxu0 0.0
    %306 = vmatpush1.msra.mxu0 0.0
    %307 = vmatprep.subr.mxu0 0.0
    %308 = vmatpush1.msra.mxu0 0.0
    %309 = vmatprep.subr.mxu0 0.0
    %310 = vmatpush1.msra.mxu0 0.0
    %311 = vmatprep.subr.mxu0 0.0
    %312 = vmatpush1.msra.mxu0 0.0
    %313 = vmatprep.subr.mxu0 0.0
    %314 = vmatpush1.msra.mxu0 0.0
    %315 = vmatprep.subr.mxu0 0.0
    %316 = vmatpush1.msra.mxu0 0.0
    %317 = vmatprep.subr.mxu0 0.0
    %318 = vmatpush1.msra.mxu0 0.0
    %319 = vmatprep.subr.mxu0 0.0
    %320 = vmatpush1.msra.mxu0 0.0
    %321 = vmatprep.subr.mxu0 0.0
    %322 = vmatpush1.msra.mxu0 0.0
    %323 = vmatprep.subr.mxu0 0.0
    %324 = vmatpush1.msra.mxu0 0.0
    %325 = vmatprep.subr.mxu0 0.0
    %326 = vmatpush1.msra.mxu0 0.0
    %327 = vmatprep.subr.mxu0 0.0
    %328 = vmatpush1.msra.mxu0 0.0
    %329 = vmatprep.subr.mxu0 0.0
    %330 = vmatpush1.msra.mxu0 0.0
    %331 = vmatprep.subr.mxu0 0.0
    %332 = vmatpush1.msra.mxu0 0.0
    %333 = vmatprep.mubr.f32.mxu0 0.0
    %334 = vmatmul.mubr.f32.gmra.mrb[0].mxu0 %v70
    %v335 = vpop.f32.mrb[0].mxu0
    %v336 = vadd.f32 0.0, %v335
    %v337 = vpop.f32.mrb[0].mxu0
    %v338 = vadd.f32 0.0, %v337
    %339 = vdwg.mxu0
    %340 = vmatprep.subr.mxu0 %v208
    %341 = vmatpush1.msra.mxu0 %v207
    %342 = vmatprep.subr.mxu0 %v212
    %343 = vmatpush1.msra.mxu0 %v211
    %344 = vmatprep.subr.mxu0 %v216
    %345 = vmatpush1.msra.mxu0 %v215
    %346 = vmatprep.subr.mxu0 %v220
    %347 = vmatpush1.msra.mxu0 %v219
    %348 = vmatprep.subr.mxu0 %v224
    %349 = vmatpush1.msra.mxu0 %v223
    %350 = vmatprep.subr.mxu0 %v228
    %351 = vmatpush1.msra.mxu0 %v227
    %352 = vmatprep.subr.mxu0 %v232
    %353 = vmatpush1.msra.mxu0 %v231
    %354 = vmatprep.subr.mxu0 %v236
    %355 = vmatpush1.msra.mxu0 %v235
    %356 = vmatprep.subr.mxu0 %v240
    %357 = vmatpush1.msra.mxu0 %v239
    %358 = vmatprep.subr.mxu0 %v244
    %359 = vmatpush1.msra.mxu0 %v243
    %360 = vmatprep.subr.mxu0 %v248
    %361 = vmatpush1.msra.mxu0 %v247
    %362 = vmatprep.subr.mxu0 %v252
    %363 = vmatpush1.msra.mxu0 %v251
    %364 = vmatprep.subr.mxu0 %v256
    %365 = vmatpush1.msra.mxu0 %v255
    %366 = vmatprep.subr.mxu0 %v260
    %367 = vmatpush1.msra.mxu0 %v259
    %368 = vmatprep.subr.mxu0 %v264
    %369 = vmatpush1.msra.mxu0 %v263
    %370 = vmatprep.subr.mxu0 %v268
    %371 = vmatpush1.msra.mxu0 %v267
    %372 = vmatprep.subr.mxu0 0.0
    %373 = vmatpush1.msra.mxu0 0.0
    %374 = vmatprep.subr.mxu0 0.0
    %375 = vmatpush1.msra.mxu0 0.0
    %376 = vmatprep.subr.mxu0 0.0
    %377 = vmatpush1.msra.mxu0 0.0
    %378 = vmatprep.subr.mxu0 0.0
    %379 = vmatpush1.msra.mxu0 0.0
    %380 = vmatprep.subr.mxu0 0.0
    %381 = vmatpush1.msra.mxu0 0.0
    %382 = vmatprep.subr.mxu0 0.0
    %383 = vmatpush1.msra.mxu0 0.0
    %384 = vmatprep.subr.mxu0 0.0
    %385 = vmatpush1.msra.mxu0 0.0
    %386 = vmatprep.subr.mxu0 0.0
    %387 = vmatpush1.msra.mxu0 0.0
    %388 = vmatprep.subr.mxu0 0.0
    %389 = vmatpush1.msra.mxu0 0.0
    %390 = vmatprep.subr.mxu0 0.0
    %391 = vmatpush1.msra.mxu0 0.0
    %392 = vmatprep.subr.mxu0 0.0
    %393 = vmatpush1.msra.mxu0 0.0
    %394 = vmatprep.subr.mxu0 0.0
    %395 = vmatpush1.msra.mxu0 0.0
    %396 = vmatprep.subr.mxu0 0.0
    %397 = vmatpush1.msra.mxu0 0.0
    %398 = vmatprep.subr.mxu0 0.0
    %399 = vmatpush1.msra.mxu0 0.0
    %400 = vmatprep.subr.mxu0 0.0
    %401 = vmatpush1.msra.mxu0 0.0
    %402 = vmatprep.subr.mxu0 0.0
    %403 = vmatpush1.msra.mxu0 0.0
    %404 = vmatprep.mubr.f32.mxu0 0.0
    %405 = vmatmul.mubr.f32.gmra.mrb[0].mxu0 %v70
    %v406 = vpop.f32.mrb[0].mxu0
    %v407 = vadd.f32 0.0, %v406
    %v408 = vpop.f32.mrb[0].mxu0
    %v409 = vadd.f32 0.0, %v408
    %410 = vdwg.mxu0
    %v411 = vadd.f32 %v158, %v336
    %v412 = vadd.f32 %v160, %v338
    %v413 = vadd.f32 %v199, %v407
    %v414 = vadd.f32 %v201, %v409
    %v415 = vmul.f32 %v411, 0.5
    %v416 = vtanh.pop %v415
    %v417 = vadd.f32 %v416, 1.0
    %v418 = vmul.f32 %v417, 0.5
    %v419 = vmul.f32 %v412, 0.5
    %v420 = vtanh.pop %v419
    %v421 = vadd.f32 %v420, 1.0
    %v422 = vmul.f32 %v421, 0.5
    %v423 = vtanh.pop %v413
    %v424 = vmul.f32 %v414, 0.5
    %v425 = vtanh.pop %v424
    %v426 = vadd.f32 %v425, 1.0
    %v427 = vmul.f32 %v426, 0.5
    %v428 = vmul.f32 %v422, %v71
    %v429 = vmul.f32 %v418, %v423
    %v430 = vadd.f32 %v428, %v429
    %v431 = vtanh.pop %v430
    %v432 = vmul.f32 %v427, %v431
    %433 = vst [vmem:[#allocation2] sm:$0xff] %v432
    %434 = vst [vmem:[#allocation3] sm:$0xff] %v430
    %v435 = vpack.c.bf16 %v432, %v432
    %436 = vst [vmem:[#allocation10] sm:$0xf] %v435
    %v437 = vld [vmem:[#allocation2] sm:$0xff]
    %v438 = vld [vmem:[#allocation3] sm:$0xff]
    %s439 = scalar_lea.vmem [#allocation4], 4
    %v440 = vld [vmem:[%s439] sm:$0xf]
    %v441 = vld [vmem:[#allocation7] sm:$0xff]
    %v442 = vld [vmem:[#allocation7 + $0x8] sm:$0xff]
    %v443 = vld [vmem:[#allocation7 + $0x10] sm:$0xff]
    %v444 = vld [vmem:[#allocation7 + $0x18] sm:$0xff]
    %v445 = vld [vmem:[%s3] sm:$0xf]
    %v447 = vlaneseq
    %v448 = vshrl.u32 %v447, 7
    %v449 = vsub.s32 0, %v448
    %v450 = vrot.slane %v445, %v449
    %v451 = vlaneseq
    %v452 = vshrl.u32 %v451, 7
    %v453 = vsub.s32 1, %v452
    %v454 = vrot.slane %v445, %v453
    %v455 = vlaneseq
    %v456 = vshrl.u32 %v455, 7
    %v457 = vsub.s32 2, %v456
    %v458 = vrot.slane %v445, %v457
    %v459 = vlaneseq
    %v460 = vshrl.u32 %v459, 7
    %v461 = vsub.s32 3, %v460
    %v462 = vrot.slane %v445, %v461
    %v471 = vunpack.c.l.b16 %v441
    %v472 = vunpack.c.h.b16 %v441
    %v473 = vunpack.c.l.b16 %v442
    %v474 = vunpack.c.h.b16 %v442
    %v475 = vunpack.c.l.b16 %v443
    %v476 = vunpack.c.h.b16 %v443
    %v477 = vunpack.c.l.b16 %v444
    %v478 = vunpack.c.h.b16 %v444
    %v479 = vpack.c.b16 %v475, %v471
    %v480 = vpack.c.b16 %v476, %v472
    %v481 = vpack.c.b16 %v477, %v473
    %v482 = vpack.c.b16 %v478, %v474
    %v488 = vsel %vm119, %v440, 0
    %490 = vmatprep.subr.bf16.mxu0 %v480
    %491 = vmatpush1.bf16.msra.mxu0 %v479
    %492 = vmatprep.subr.bf16.mxu0 0
    %493 = vmatpush1.bf16.msra.mxu0 0
    %494 = vmatprep.subr.bf16.mxu0 0
    %495 = vmatpush1.bf16.msra.mxu0 0
    %496 = vmatprep.subr.bf16.mxu0 0
    %497 = vmatpush1.bf16.msra.mxu0 0
    %498 = vmatprep.subr.bf16.mxu0 0
    %499 = vmatpush1.bf16.msra.mxu0 0
    %500 = vmatprep.subr.bf16.mxu0 0
    %501 = vmatpush1.bf16.msra.mxu0 0
    %502 = vmatprep.subr.bf16.mxu0 0
    %503 = vmatpush1.bf16.msra.mxu0 0
    %504 = vmatprep.subr.bf16.mxu0 0
    %505 = vmatpush1.bf16.msra.mxu0 0
    %506 = vmatprep.subr.bf16.mxu0 0
    %507 = vmatpush1.bf16.msra.mxu0 0
    %508 = vmatprep.subr.bf16.mxu0 0
    %509 = vmatpush1.bf16.msra.mxu0 0
    %510 = vmatprep.subr.bf16.mxu0 0
    %511 = vmatpush1.bf16.msra.mxu0 0
    %512 = vmatprep.subr.bf16.mxu0 0
    %513 = vmatpush1.bf16.msra.mxu0 0
    %514 = vmatprep.subr.bf16.mxu0 0
    %515 = vmatpush1.bf16.msra.mxu0 0
    %516 = vmatprep.subr.bf16.mxu0 0
    %517 = vmatpush1.bf16.msra.mxu0 0
    %518 = vmatprep.subr.bf16.mxu0 0
    %519 = vmatpush1.bf16.msra.mxu0 0
    %520 = vmatprep.subr.bf16.mxu0 0
    %521 = vmatpush1.bf16.msra.mxu0 0
    %522 = vmatprep.mubr.bf16.mxu0 0
    %523 = vmatmul.mubr.bf16.gmra.mrb[0].mxu0 %v488
    %v524 = vpop.f32.mrb[0].mxu0
    %v525 = vadd.f32 %v450, %v524
    %v526 = vpop.f32.mrb[0].mxu0
    %v527 = vadd.f32 %v454, %v526
    %v528 = vpop.f32.mrb[0].mxu0
    %v529 = vpop.f32.mrb[0].mxu0
    %530 = vdwg.mxu0
    %531 = vmatprep.subr.bf16.mxu0 %v482
    %532 = vmatpush1.bf16.msra.mxu0 %v481
    %533 = vmatprep.subr.bf16.mxu0 0
    %534 = vmatpush1.bf16.msra.mxu0 0
    %535 = vmatprep.subr.bf16.mxu0 0
    %536 = vmatpush1.bf16.msra.mxu0 0
    %537 = vmatprep.subr.bf16.mxu0 0
    %538 = vmatpush1.bf16.msra.mxu0 0
    %539 = vmatprep.subr.bf16.mxu0 0
    %540 = vmatpush1.bf16.msra.mxu0 0
    %541 = vmatprep.subr.bf16.mxu0 0
    %542 = vmatpush1.bf16.msra.mxu0 0
    %543 = vmatprep.subr.bf16.mxu0 0
    %544 = vmatpush1.bf16.msra.mxu0 0
    %545 = vmatprep.subr.bf16.mxu0 0
    %546 = vmatpush1.bf16.msra.mxu0 0
    %547 = vmatprep.subr.bf16.mxu0 0
    %548 = vmatpush1.bf16.msra.mxu0 0
    %549 = vmatprep.subr.bf16.mxu0 0
    %550 = vmatpush1.bf16.msra.mxu0 0
    %551 = vmatprep.subr.bf16.mxu0 0
    %552 = vmatpush1.bf16.msra.mxu0 0
    %553 = vmatprep.subr.bf16.mxu0 0
    %554 = vmatpush1.bf16.msra.mxu0 0
    %555 = vmatprep.subr.bf16.mxu0 0
    %556 = vmatpush1.bf16.msra.mxu0 0
    %557 = vmatprep.subr.bf16.mxu0 0
    %558 = vmatpush1.bf16.msra.mxu0 0
    %559 = vmatprep.subr.bf16.mxu0 0
    %560 = vmatpush1.bf16.msra.mxu0 0
    %561 = vmatprep.subr.bf16.mxu0 0
    %562 = vmatpush1.bf16.msra.mxu0 0
    %563 = vmatprep.mubr.bf16.mxu0 0
    %564 = vmatmul.mubr.bf16.gmra.mrb[0].mxu0 %v488
    %v565 = vpop.f32.mrb[0].mxu0
    %v566 = vadd.f32 %v458, %v565
    %v567 = vpop.f32.mrb[0].mxu0
    %v568 = vadd.f32 %v462, %v567
    %v569 = vpop.f32.mrb[0].mxu0
    %v570 = vpop.f32.mrb[0].mxu0
    %571 = vdwg.mxu0
    %v572 = vld [vmem:[#allocation9] sm:$0xff]
    %v573 = vld [vmem:[#allocation9 + $0x8] sm:$0xff]
    %v574 = vld [vmem:[#allocation9 + $0x10] sm:$0xff]
    %v575 = vld [vmem:[#allocation9 + $0x18] sm:$0xff]
    %v576 = vld [vmem:[#allocation9 + $0x20] sm:$0xff]
    %v577 = vld [vmem:[#allocation9 + $0x28] sm:$0xff]
    %v578 = vld [vmem:[#allocation9 + $0x30] sm:$0xff]
    %v579 = vld [vmem:[#allocation9 + $0x38] sm:$0xff]
    %v580 = vld [vmem:[#allocation9 + $0x40] sm:$0xff]
    %v581 = vld [vmem:[#allocation9 + $0x48] sm:$0xff]
    %v582 = vld [vmem:[#allocation9 + $0x50] sm:$0xff]
    %v583 = vld [vmem:[#allocation9 + $0x58] sm:$0xff]
    %v584 = vld [vmem:[#allocation9 + $0x60] sm:$0xff]
    %v585 = vld [vmem:[#allocation9 + $0x68] sm:$0xff]
    %v586 = vld [vmem:[#allocation9 + $0x70] sm:$0xff]
    %v587 = vld [vmem:[#allocation9 + $0x78] sm:$0xff]
    %v588 = vld [vmem:[#allocation9 + $0x80] sm:$0xff]
    %v589 = vld [vmem:[#allocation9 + $0x88] sm:$0xff]
    %v590 = vld [vmem:[#allocation9 + $0x90] sm:$0xff]
    %v591 = vld [vmem:[#allocation9 + $0x98] sm:$0xff]
    %v592 = vld [vmem:[#allocation9 + $0xa0] sm:$0xff]
    %v593 = vld [vmem:[#allocation9 + $0xa8] sm:$0xff]
    %v594 = vld [vmem:[#allocation9 + $0xb0] sm:$0xff]
    %v595 = vld [vmem:[#allocation9 + $0xb8] sm:$0xff]
    %v596 = vld [vmem:[#allocation9 + $0xc0] sm:$0xff]
    %v597 = vld [vmem:[#allocation9 + $0xc8] sm:$0xff]
    %v598 = vld [vmem:[#allocation9 + $0xd0] sm:$0xff]
    %v599 = vld [vmem:[#allocation9 + $0xd8] sm:$0xff]
    %v600 = vld [vmem:[#allocation9 + $0xe0] sm:$0xff]
    %v601 = vld [vmem:[#allocation9 + $0xe8] sm:$0xff]
    %v602 = vld [vmem:[#allocation9 + $0xf0] sm:$0xff]
    %v603 = vld [vmem:[#allocation9 + $0xf8] sm:$0xff]
    %v604 = vld [vmem:[#allocation9 + $0x100] sm:$0xff]
    %v605 = vld [vmem:[#allocation9 + $0x108] sm:$0xff]
    %v606 = vld [vmem:[#allocation9 + $0x110] sm:$0xff]
    %v607 = vld [vmem:[#allocation9 + $0x118] sm:$0xff]
    %v608 = vld [vmem:[#allocation9 + $0x120] sm:$0xff]
    %v609 = vld [vmem:[#allocation9 + $0x128] sm:$0xff]
    %v610 = vld [vmem:[#allocation9 + $0x130] sm:$0xff]
    %v611 = vld [vmem:[#allocation9 + $0x138] sm:$0xff]
    %v612 = vld [vmem:[#allocation9 + $0x140] sm:$0xff]
    %v613 = vld [vmem:[#allocation9 + $0x148] sm:$0xff]
    %v614 = vld [vmem:[#allocation9 + $0x150] sm:$0xff]
    %v615 = vld [vmem:[#allocation9 + $0x158] sm:$0xff]
    %v616 = vld [vmem:[#allocation9 + $0x160] sm:$0xff]
    %v617 = vld [vmem:[#allocation9 + $0x168] sm:$0xff]
    %v618 = vld [vmem:[#allocation9 + $0x170] sm:$0xff]
    %v619 = vld [vmem:[#allocation9 + $0x178] sm:$0xff]
    %v620 = vld [vmem:[#allocation9 + $0x180] sm:$0xff]
    %v621 = vld [vmem:[#allocation9 + $0x188] sm:$0xff]
    %v622 = vld [vmem:[#allocation9 + $0x190] sm:$0xff]
    %v623 = vld [vmem:[#allocation9 + $0x198] sm:$0xff]
    %v624 = vld [vmem:[#allocation9 + $0x1a0] sm:$0xff]
    %v625 = vld [vmem:[#allocation9 + $0x1a8] sm:$0xff]
    %v626 = vld [vmem:[#allocation9 + $0x1b0] sm:$0xff]
    %v627 = vld [vmem:[#allocation9 + $0x1b8] sm:$0xff]
    %v628 = vld [vmem:[#allocation9 + $0x1c0] sm:$0xff]
    %v629 = vld [vmem:[#allocation9 + $0x1c8] sm:$0xff]
    %v630 = vld [vmem:[#allocation9 + $0x1d0] sm:$0xff]
    %v631 = vld [vmem:[#allocation9 + $0x1d8] sm:$0xff]
    %v632 = vld [vmem:[#allocation9 + $0x1e0] sm:$0xff]
    %v633 = vld [vmem:[#allocation9 + $0x1e8] sm:$0xff]
    %v634 = vld [vmem:[#allocation9 + $0x1f0] sm:$0xff]
    %v635 = vld [vmem:[#allocation9 + $0x1f8] sm:$0xff]
    %636 = vmatprep.subr.mxu0 %v573
    %637 = vmatpush1.msra.mxu0 %v572
    %638 = vmatprep.subr.mxu0 %v577
    %639 = vmatpush1.msra.mxu0 %v576
    %640 = vmatprep.subr.mxu0 %v581
    %641 = vmatpush1.msra.mxu0 %v580
    %642 = vmatprep.subr.mxu0 %v585
    %643 = vmatpush1.msra.mxu0 %v584
    %644 = vmatprep.subr.mxu0 %v589
    %645 = vmatpush1.msra.mxu0 %v588
    %646 = vmatprep.subr.mxu0 %v593
    %647 = vmatpush1.msra.mxu0 %v592
    %648 = vmatprep.subr.mxu0 %v597
    %649 = vmatpush1.msra.mxu0 %v596
    %650 = vmatprep.subr.mxu0 %v601
    %651 = vmatpush1.msra.mxu0 %v600
    %652 = vmatprep.subr.mxu0 %v605
    %653 = vmatpush1.msra.mxu0 %v604
    %654 = vmatprep.subr.mxu0 %v609
    %655 = vmatpush1.msra.mxu0 %v608
    %656 = vmatprep.subr.mxu0 %v613
    %657 = vmatpush1.msra.mxu0 %v612
    %658 = vmatprep.subr.mxu0 %v617
    %659 = vmatpush1.msra.mxu0 %v616
    %660 = vmatprep.subr.mxu0 %v621
    %661 = vmatpush1.msra.mxu0 %v620
    %662 = vmatprep.subr.mxu0 %v625
    %663 = vmatpush1.msra.mxu0 %v624
    %664 = vmatprep.subr.mxu0 %v629
    %665 = vmatpush1.msra.mxu0 %v628
    %666 = vmatprep.subr.mxu0 %v633
    %667 = vmatpush1.msra.mxu0 %v632
    %668 = vmatprep.subr.mxu0 0.0
    %669 = vmatpush1.msra.mxu0 0.0
    %670 = vmatprep.subr.mxu0 0.0
    %671 = vmatpush1.msra.mxu0 0.0
    %672 = vmatprep.subr.mxu0 0.0
    %673 = vmatpush1.msra.mxu0 0.0
    %674 = vmatprep.subr.mxu0 0.0
    %675 = vmatpush1.msra.mxu0 0.0
    %676 = vmatprep.subr.mxu0 0.0
    %677 = vmatpush1.msra.mxu0 0.0
    %678 = vmatprep.subr.mxu0 0.0
    %679 = vmatpush1.msra.mxu0 0.0
    %680 = vmatprep.subr.mxu0 0.0
    %681 = vmatpush1.msra.mxu0 0.0
    %682 = vmatprep.subr.mxu0 0.0
    %683 = vmatpush1.msra.mxu0 0.0
    %684 = vmatprep.subr.mxu0 0.0
    %685 = vmatpush1.msra.mxu0 0.0
    %686 = vmatprep.subr.mxu0 0.0
    %687 = vmatpush1.msra.mxu0 0.0
    %688 = vmatprep.subr.mxu0 0.0
    %689 = vmatpush1.msra.mxu0 0.0
    %690 = vmatprep.subr.mxu0 0.0
    %691 = vmatpush1.msra.mxu0 0.0
    %692 = vmatprep.subr.mxu0 0.0
    %693 = vmatpush1.msra.mxu0 0.0
    %694 = vmatprep.subr.mxu0 0.0
    %695 = vmatpush1.msra.mxu0 0.0
    %696 = vmatprep.subr.mxu0 0.0
    %697 = vmatpush1.msra.mxu0 0.0
    %698 = vmatprep.subr.mxu0 0.0
    %699 = vmatpush1.msra.mxu0 0.0
    %700 = vmatprep.mubr.f32.mxu0 0.0
    %701 = vmatmul.mubr.f32.gmra.mrb[0].mxu0 %v437
    %v702 = vpop.f32.mrb[0].mxu0
    %v703 = vadd.f32 0.0, %v702
    %v704 = vpop.f32.mrb[0].mxu0
    %v705 = vadd.f32 0.0, %v704
    %706 = vdwg.mxu0
    %707 = vmatprep.subr.mxu0 %v575
    %708 = vmatpush1.msra.mxu0 %v574
    %709 = vmatprep.subr.mxu0 %v579
    %710 = vmatpush1.msra.mxu0 %v578
    %711 = vmatprep.subr.mxu0 %v583
    %712 = vmatpush1.msra.mxu0 %v582
    %713 = vmatprep.subr.mxu0 %v587
    %714 = vmatpush1.msra.mxu0 %v586
    %715 = vmatprep.subr.mxu0 %v591
    %716 = vmatpush1.msra.mxu0 %v590
    %717 = vmatprep.subr.mxu0 %v595
    %718 = vmatpush1.msra.mxu0 %v594
    %719 = vmatprep.subr.mxu0 %v599
    %720 = vmatpush1.msra.mxu0 %v598
    %721 = vmatprep.subr.mxu0 %v603
    %722 = vmatpush1.msra.mxu0 %v602
    %723 = vmatprep.subr.mxu0 %v607
    %724 = vmatpush1.msra.mxu0 %v606
    %725 = vmatprep.subr.mxu0 %v611
    %726 = vmatpush1.msra.mxu0 %v610
    %727 = vmatprep.subr.mxu0 %v615
    %728 = vmatpush1.msra.mxu0 %v614
    %729 = vmatprep.subr.mxu0 %v619
    %730 = vmatpush1.msra.mxu0 %v618
    %731 = vmatprep.subr.mxu0 %v623
    %732 = vmatpush1.msra.mxu0 %v622
    %733 = vmatprep.subr.mxu0 %v627
    %734 = vmatpush1.msra.mxu0 %v626
    %735 = vmatprep.subr.mxu0 %v631
    %736 = vmatpush1.msra.mxu0 %v630
    %737 = vmatprep.subr.mxu0 %v635
    %738 = vmatpush1.msra.mxu0 %v634
    %739 = vmatprep.subr.mxu0 0.0
    %740 = vmatpush1.msra.mxu0 0.0
    %741 = vmatprep.subr.mxu0 0.0
    %742 = vmatpush1.msra.mxu0 0.0
    %743 = vmatprep.subr.mxu0 0.0
    %744 = vmatpush1.msra.mxu0 0.0
    %745 = vmatprep.subr.mxu0 0.0
    %746 = vmatpush1.msra.mxu0 0.0
    %747 = vmatprep.subr.mxu0 0.0
    %748 = vmatpush1.msra.mxu0 0.0
    %749 = vmatprep.subr.mxu0 0.0
    %750 = vmatpush1.msra.mxu0 0.0
    %751 = vmatprep.subr.mxu0 0.0
    %752 = vmatpush1.msra.mxu0 0.0
    %753 = vmatprep.subr.mxu0 0.0
    %754 = vmatpush1.msra.mxu0 0.0
    %755 = vmatprep.subr.mxu0 0.0
    %756 = vmatpush1.msra.mxu0 0.0
    %757 = vmatprep.subr.mxu0 0.0
    %758 = vmatpush1.msra.mxu0 0.0
    %759 = vmatprep.subr.mxu0 0.0
    %760 = vmatpush1.msra.mxu0 0.0
    %761 = vmatprep.subr.mxu0 0.0
    %762 = vmatpush1.msra.mxu0 0.0
    %763 = vmatprep.subr.mxu0 0.0
    %764 = vmatpush1.msra.mxu0 0.0
    %765 = vmatprep.subr.mxu0 0.0
    %766 = vmatpush1.msra.mxu0 0.0
    %767 = vmatprep.subr.mxu0 0.0
    %768 = vmatpush1.msra.mxu0 0.0
    %769 = vmatprep.subr.mxu0 0.0
    %770 = vmatpush1.msra.mxu0 0.0
    %771 = vmatprep.mubr.f32.mxu0 0.0
    %772 = vmatmul.mubr.f32.gmra.mrb[0].mxu0 %v437
    %v773 = vpop.f32.mrb[0].mxu0
    %v774 = vadd.f32 0.0, %v773
    %v775 = vpop.f32.mrb[0].mxu0
    %v776 = vadd.f32 0.0, %v775
    %777 = vdwg.mxu0
    %v778 = vadd.f32 %v525, %v703
    %v779 = vadd.f32 %v527, %v705
    %v780 = vadd.f32 %v566, %v774
    %v781 = vadd.f32 %v568, %v776
    %v782 = vmul.f32 %v778, 0.5
    %v783 = vtanh.pop %v782
    %v784 = vadd.f32 %v783, 1.0
    %v785 = vmul.f32 %v784, 0.5
    %v786 = vmul.f32 %v779, 0.5
    %v787 = vtanh.pop %v786
    %v788 = vadd.f32 %v787, 1.0
    %v789 = vmul.f32 %v788, 0.5
    %v790 = vtanh.pop %v780
    %v791 = vmul.f32 %v781, 0.5
    %v792 = vtanh.pop %v791
    %v793 = vadd.f32 %v792, 1.0
    %v794 = vmul.f32 %v793, 0.5
    %v795 = vmul.f32 %v789, %v438
    %v796 = vmul.f32 %v785, %v790
    %v797 = vadd.f32 %v795, %v796
    %v798 = vtanh.pop %v797
    %v799 = vmul.f32 %v794, %v798
    %800 = vst [vmem:[#allocation2] sm:$0xff] %v799
    %801 = vst [vmem:[#allocation3] sm:$0xff] %v797
    %v802 = vpack.c.bf16 %v799, %v799
    %s803 = scalar_lea.vmem [#allocation10], 4
    %804 = vst [vmem:[%s803] sm:$0xf] %v802
    %v805 = vld [vmem:[#allocation2] sm:$0xff]
    %v806 = vld [vmem:[#allocation3] sm:$0xff]
    %s807 = scalar_lea.vmem [#allocation4], 8
    %v808 = vld [vmem:[%s807] sm:$0xf]
    %v809 = vld [vmem:[#allocation7] sm:$0xff]
    %v810 = vld [vmem:[#allocation7 + $0x8] sm:$0xff]
    %v811 = vld [vmem:[#allocation7 + $0x10] sm:$0xff]
    %v812 = vld [vmem:[#allocation7 + $0x18] sm:$0xff]
    %v813 = vld [vmem:[%s3] sm:$0xf]
    %v815 = vlaneseq
    %v816 = vshrl.u32 %v815, 7
    %v817 = vsub.s32 0, %v816
    %v818 = vrot.slane %v813, %v817
    %v819 = vlaneseq
    %v820 = vshrl.u32 %v819, 7
    %v821 = vsub.s32 1, %v820
    %v822 = vrot.slane %v813, %v821
    %v823 = vlaneseq
    %v824 = vshrl.u32 %v823, 7
    %v825 = vsub.s32 2, %v824
    %v826 = vrot.slane %v813, %v825
    %v827 = vlaneseq
    %v828 = vshrl.u32 %v827, 7
    %v829 = vsub.s32 3, %v828
    %v830 = vrot.slane %v813, %v829
    %v839 = vunpack.c.l.b16 %v809
    %v840 = vunpack.c.h.b16 %v809
    %v841 = vunpack.c.l.b16 %v810
    %v842 = vunpack.c.h.b16 %v810
    %v843 = vunpack.c.l.b16 %v811
    %v844 = vunpack.c.h.b16 %v811
    %v845 = vunpack.c.l.b16 %v812
    %v846 = vunpack.c.h.b16 %v812
    %v847 = vpack.c.b16 %v843, %v839
    %v848 = vpack.c.b16 %v844, %v840
    %v849 = vpack.c.b16 %v845, %v841
    %v850 = vpack.c.b16 %v846, %v842
    %v856 = vsel %vm119, %v808, 0
    %858 = vmatprep.subr.bf16.mxu0 %v848
    %859 = vmatpush1.bf16.msra.mxu0 %v847
    %860 = vmatprep.subr.bf16.mxu0 0
    %861 = vmatpush1.bf16.msra.mxu0 0
    %862 = vmatprep.subr.bf16.mxu0 0
    %863 = vmatpush1.bf16.msra.mxu0 0
    %864 = vmatprep.subr.bf16.mxu0 0
    %865 = vmatpush1.bf16.msra.mxu0 0
    %866 = vmatprep.subr.bf16.mxu0 0
    %867 = vmatpush1.bf16.msra.mxu0 0
    %868 = vmatprep.subr.bf16.mxu0 0
    %869 = vmatpush1.bf16.msra.mxu0 0
    %870 = vmatprep.subr.bf16.mxu0 0
    %871 = vmatpush1.bf16.msra.mxu0 0
    %872 = vmatprep.subr.bf16.mxu0 0
    %873 = vmatpush1.bf16.msra.mxu0 0
    %874 = vmatprep.subr.bf16.mxu0 0
    %875 = vmatpush1.bf16.msra.mxu0 0
    %876 = vmatprep.subr.bf16.mxu0 0
    %877 = vmatpush1.bf16.msra.mxu0 0
    %878 = vmatprep.subr.bf16.mxu0 0
    %879 = vmatpush1.bf16.msra.mxu0 0
    %880 = vmatprep.subr.bf16.mxu0 0
    %881 = vmatpush1.bf16.msra.mxu0 0
    %882 = vmatprep.subr.bf16.mxu0 0
    %883 = vmatpush1.bf16.msra.mxu0 0
    %884 = vmatprep.subr.bf16.mxu0 0
    %885 = vmatpush1.bf16.msra.mxu0 0
    %886 = vmatprep.subr.bf16.mxu0 0
    %887 = vmatpush1.bf16.msra.mxu0 0
    %888 = vmatprep.subr.bf16.mxu0 0
    %889 = vmatpush1.bf16.msra.mxu0 0
    %890 = vmatprep.mubr.bf16.mxu0 0
    %891 = vmatmul.mubr.bf16.gmra.mrb[0].mxu0 %v856
    %v892 = vpop.f32.mrb[0].mxu0
    %v893 = vadd.f32 %v818, %v892
    %v894 = vpop.f32.mrb[0].mxu0
    %v895 = vadd.f32 %v822, %v894
    %v896 = vpop.f32.mrb[0].mxu0
    %v897 = vpop.f32.mrb[0].mxu0
    %898 = vdwg.mxu0
    %899 = vmatprep.subr.bf16.mxu0 %v850
    %900 = vmatpush1.bf16.msra.mxu0 %v849
    %901 = vmatprep.subr.bf16.mxu0 0
    %902 = vmatpush1.bf16.msra.mxu0 0
    %903 = vmatprep.subr.bf16.mxu0 0
    %904 = vmatpush1.bf16.msra.mxu0 0
    %905 = vmatprep.subr.bf16.mxu0 0
    %906 = vmatpush1.bf16.msra.mxu0 0
    %907 = vmatprep.subr.bf16.mxu0 0
    %908 = vmatpush1.bf16.msra.mxu0 0
    %909 = vmatprep.subr.bf16.mxu0 0
    %910 = vmatpush1.bf16.msra.mxu0 0
    %911 = vmatprep.subr.bf16.mxu0 0
    %912 = vmatpush1.bf16.msra.mxu0 0
    %913 = vmatprep.subr.bf16.mxu0 0
    %914 = vmatpush1.bf16.msra.mxu0 0
    %915 = vmatprep.subr.bf16.mxu0 0
    %916 = vmatpush1.bf16.msra.mxu0 0
    %917 = vmatprep.subr.bf16.mxu0 0
    %918 = vmatpush1.bf16.msra.mxu0 0
    %919 = vmatprep.subr.bf16.mxu0 0
    %920 = vmatpush1.bf16.msra.mxu0 0
    %921 = vmatprep.subr.bf16.mxu0 0
    %922 = vmatpush1.bf16.msra.mxu0 0
    %923 = vmatprep.subr.bf16.mxu0 0
    %924 = vmatpush1.bf16.msra.mxu0 0
    %925 = vmatprep.subr.bf16.mxu0 0
    %926 = vmatpush1.bf16.msra.mxu0 0
    %927 = vmatprep.subr.bf16.mxu0 0
    %928 = vmatpush1.bf16.msra.mxu0 0
    %929 = vmatprep.subr.bf16.mxu0 0
    %930 = vmatpush1.bf16.msra.mxu0 0
    %931 = vmatprep.mubr.bf16.mxu0 0
    %932 = vmatmul.mubr.bf16.gmra.mrb[0].mxu0 %v856
    %v933 = vpop.f32.mrb[0].mxu0
    %v934 = vadd.f32 %v826, %v933
    %v935 = vpop.f32.mrb[0].mxu0
    %v936 = vadd.f32 %v830, %v935
    %v937 = vpop.f32.mrb[0].mxu0
    %v938 = vpop.f32.mrb[0].mxu0
    %939 = vdwg.mxu0
    %v940 = vld [vmem:[#allocation9] sm:$0xff]
    %v941 = vld [vmem:[#allocation9 + $0x8] sm:$0xff]
    %v942 = vld [vmem:[#allocation9 + $0x10] sm:$0xff]
    %v943 = vld [vmem:[#allocation9 + $0x18] sm:$0xff]
    %v944 = vld [vmem:[#allocation9 + $0x20] sm:$0xff]
    %v945 = vld [vmem:[#allocation9 + $0x28] sm:$0xff]
    %v946 = vld [vmem:[#allocation9 + $0x30] sm:$0xff]
    %v947 = vld [vmem:[#allocation9 + $0x38] sm:$0xff]
    %v948 = vld [vmem:[#allocation9 + $0x40] sm:$0xff]
    %v949 = vld [vmem:[#allocation9 + $0x48] sm:$0xff]
    %v950 = vld [vmem:[#allocation9 + $0x50] sm:$0xff]
    %v951 = vld [vmem:[#allocation9 + $0x58] sm:$0xff]
    %v952 = vld [vmem:[#allocation9 + $0x60] sm:$0xff]
    %v953 = vld [vmem:[#allocation9 + $0x68] sm:$0xff]
    %v954 = vld [vmem:[#allocation9 + $0x70] sm:$0xff]
    %v955 = vld [vmem:[#allocation9 + $0x78] sm:$0xff]
    %v956 = vld [vmem:[#allocation9 + $0x80] sm:$0xff]
    %v957 = vld [vmem:[#allocation9 + $0x88] sm:$0xff]
    %v958 = vld [vmem:[#allocation9 + $0x90] sm:$0xff]
    %v959 = vld [vmem:[#allocation9 + $0x98] sm:$0xff]
    %v960 = vld [vmem:[#allocation9 + $0xa0] sm:$0xff]
    %v961 = vld [vmem:[#allocation9 + $0xa8] sm:$0xff]
    %v962 = vld [vmem:[#allocation9 + $0xb0] sm:$0xff]
    %v963 = vld [vmem:[#allocation9 + $0xb8] sm:$0xff]
    %v964 = vld [vmem:[#allocation9 + $0xc0] sm:$0xff]
    %v965 = vld [vmem:[#allocation9 + $0xc8] sm:$0xff]
    %v966 = vld [vmem:[#allocation9 + $0xd0] sm:$0xff]
    %v967 = vld [vmem:[#allocation9 + $0xd8] sm:$0xff]
    %v968 = vld [vmem:[#allocation9 + $0xe0] sm:$0xff]
    %v969 = vld [vmem:[#allocation9 + $0xe8] sm:$0xff]
    %v970 = vld [vmem:[#allocation9 + $0xf0] sm:$0xff]
    %v971 = vld [vmem:[#allocation9 + $0xf8] sm:$0xff]
    %v972 = vld [vmem:[#allocation9 + $0x100] sm:$0xff]
    %v973 = vld [vmem:[#allocation9 + $0x108] sm:$0xff]
    %v974 = vld [vmem:[#allocation9 + $0x110] sm:$0xff]
    %v975 = vld [vmem:[#allocation9 + $0x118] sm:$0xff]
    %v976 = vld [vmem:[#allocation9 + $0x120] sm:$0xff]
    %v977 = vld [vmem:[#allocation9 + $0x128] sm:$0xff]
    %v978 = vld [vmem:[#allocation9 + $0x130] sm:$0xff]
    %v979 = vld [vmem:[#allocation9 + $0x138] sm:$0xff]
    %v980 = vld [vmem:[#allocation9 + $0x140] sm:$0xff]
    %v981 = vld [vmem:[#allocation9 + $0x148] sm:$0xff]
    %v982 = vld [vmem:[#allocation9 + $0x150] sm:$0xff]
    %v983 = vld [vmem:[#allocation9 + $0x158] sm:$0xff]
    %v984 = vld [vmem:[#allocation9 + $0x160] sm:$0xff]
    %v985 = vld [vmem:[#allocation9 + $0x168] sm:$0xff]
    %v986 = vld [vmem:[#allocation9 + $0x170] sm:$0xff]
    %v987 = vld [vmem:[#allocation9 + $0x178] sm:$0xff]
    %v988 = vld [vmem:[#allocation9 + $0x180] sm:$0xff]
    %v989 = vld [vmem:[#allocation9 + $0x188] sm:$0xff]
    %v990 = vld [vmem:[#allocation9 + $0x190] sm:$0xff]
    %v991 = vld [vmem:[#allocation9 + $0x198] sm:$0xff]
    %v992 = vld [vmem:[#allocation9 + $0x1a0] sm:$0xff]
    %v993 = vld [vmem:[#allocation9 + $0x1a8] sm:$0xff]
    %v994 = vld [vmem:[#allocation9 + $0x1b0] sm:$0xff]
    %v995 = vld [vmem:[#allocation9 + $0x1b8] sm:$0xff]
    %v996 = vld [vmem:[#allocation9 + $0x1c0] sm:$0xff]
    %v997 = vld [vmem:[#allocation9 + $0x1c8] sm:$0xff]
    %v998 = vld [vmem:[#allocation9 + $0x1d0] sm:$0xff]
    %v999 = vld [vmem:[#allocation9 + $0x1d8] sm:$0xff]
    %v1000 = vld [vmem:[#allocation9 + $0x1e0] sm:$0xff]
    %v1001 = vld [vmem:[#allocation9 + $0x1e8] sm:$0xff]
    %v1002 = vld [vmem:[#allocation9 + $0x1f0] sm:$0xff]
    %v1003 = vld [vmem:[#allocation9 + $0x1f8] sm:$0xff]
    %1004 = vmatprep.subr.mxu0 %v941
    %1005 = vmatpush1.msra.mxu0 %v940
    %1006 = vmatprep.subr.mxu0 %v945
    %1007 = vmatpush1.msra.mxu0 %v944
    %1008 = vmatprep.subr.mxu0 %v949
    %1009 = vmatpush1.msra.mxu0 %v948
    %1010 = vmatprep.subr.mxu0 %v953
    %1011 = vmatpush1.msra.mxu0 %v952
    %1012 = vmatprep.subr.mxu0 %v957
    %1013 = vmatpush1.msra.mxu0 %v956
    %1014 = vmatprep.subr.mxu0 %v961
    %1015 = vmatpush1.msra.mxu0 %v960
    %1016 = vmatprep.subr.mxu0 %v965
    %1017 = vmatpush1.msra.mxu0 %v964
    %1018 = vmatprep.subr.mxu0 %v969
    %1019 = vmatpush1.msra.mxu0 %v968
    %1020 = vmatprep.subr.mxu0 %v973
    %1021 = vmatpush1.msra.mxu0 %v972
    %1022 = vmatprep.subr.mxu0 %v977
    %1023 = vmatpush1.msra.mxu0 %v976
    %1024 = vmatprep.subr.mxu0 %v981
    %1025 = vmatpush1.msra.mxu0 %v980
    %1026 = vmatprep.subr.mxu0 %v985
    %1027 = vmatpush1.msra.mxu0 %v984
    %1028 = vmatprep.subr.mxu0 %v989
    %1029 = vmatpush1.msra.mxu0 %v988
    %1030 = vmatprep.subr.mxu0 %v993
    %1031 = vmatpush1.msra.mxu0 %v992
    %1032 = vmatprep.subr.mxu0 %v997
    %1033 = vmatpush1.msra.mxu0 %v996
    %1034 = vmatprep.subr.mxu0 %v1001
    %1035 = vmatpush1.msra.mxu0 %v1000
    %1036 = vmatprep.subr.mxu0 0.0
    %1037 = vmatpush1.msra.mxu0 0.0
    %1038 = vmatprep.subr.mxu0 0.0
    %1039 = vmatpush1.msra.mxu0 0.0
    %1040 = vmatprep.subr.mxu0 0.0
    %1041 = vmatpush1.msra.mxu0 0.0
    %1042 = vmatprep.subr.mxu0 0.0
    %1043 = vmatpush1.msra.mxu0 0.0
    %1044 = vmatprep.subr.mxu0 0.0
    %1045 = vmatpush1.msra.mxu0 0.0
    %1046 = vmatprep.subr.mxu0 0.0
    %1047 = vmatpush1.msra.mxu0 0.0
    %1048 = vmatprep.subr.mxu0 0.0
    %1049 = vmatpush1.msra.mxu0 0.0
    %1050 = vmatprep.subr.mxu0 0.0
    %1051 = vmatpush1.msra.mxu0 0.0
    %1052 = vmatprep.subr.mxu0 0.0
    %1053 = vmatpush1.msra.mxu0 0.0
    %1054 = vmatprep.subr.mxu0 0.0
    %1055 = vmatpush1.msra.mxu0 0.0
    %1056 = vmatprep.subr.mxu0 0.0
    %1057 = vmatpush1.msra.mxu0 0.0
    %1058 = vmatprep.subr.mxu0 0.0
    %1059 = vmatpush1.msra.mxu0 0.0
    %1060 = vmatprep.subr.mxu0 0.0
    %1061 = vmatpush1.msra.mxu0 0.0
    %1062 = vmatprep.subr.mxu0 0.0
    %1063 = vmatpush1.msra.mxu0 0.0
    %1064 = vmatprep.subr.mxu0 0.0
    %1065 = vmatpush1.msra.mxu0 0.0
    %1066 = vmatprep.subr.mxu0 0.0
    %1067 = vmatpush1.msra.mxu0 0.0
    %1068 = vmatprep.mubr.f32.mxu0 0.0
    %1069 = vmatmul.mubr.f32.gmra.mrb[0].mxu0 %v805
    %v1070 = vpop.f32.mrb[0].mxu0
    %v1071 = vadd.f32 0.0, %v1070
    %v1072 = vpop.f32.mrb[0].mxu0
    %v1073 = vadd.f32 0.0, %v1072
    %1074 = vdwg.mxu0
    %1075 = vmatprep.subr.mxu0 %v943
    %1076 = vmatpush1.msra.mxu0 %v942
    %1077 = vmatprep.subr.mxu0 %v947
    %1078 = vmatpush1.msra.mxu0 %v946
    %1079 = vmatprep.subr.mxu0 %v951
    %1080 = vmatpush1.msra.mxu0 %v950
    %1081 = vmatprep.subr.mxu0 %v955
    %1082 = vmatpush1.msra.mxu0 %v954
    %1083 = vmatprep.subr.mxu0 %v959
    %1084 = vmatpush1.msra.mxu0 %v958
    %1085 = vmatprep.subr.mxu0 %v963
    %1086 = vmatpush1.msra.mxu0 %v962
    %1087 = vmatprep.subr.mxu0 %v967
    %1088 = vmatpush1.msra.mxu0 %v966
    %1089 = vmatprep.subr.mxu0 %v971
    %1090 = vmatpush1.msra.mxu0 %v970
    %1091 = vmatprep.subr.mxu0 %v975
    %1092 = vmatpush1.msra.mxu0 %v974
    %1093 = vmatprep.subr.mxu0 %v979
    %1094 = vmatpush1.msra.mxu0 %v978
    %1095 = vmatprep.subr.mxu0 %v983
    %1096 = vmatpush1.msra.mxu0 %v982
    %1097 = vmatprep.subr.mxu0 %v987
    %1098 = vmatpush1.msra.mxu0 %v986
    %1099 = vmatprep.subr.mxu0 %v991
    %1100 = vmatpush1.msra.mxu0 %v990
    %1101 = vmatprep.subr.mxu0 %v995
    %1102 = vmatpush1.msra.mxu0 %v994
    %1103 = vmatprep.subr.mxu0 %v999
    %1104 = vmatpush1.msra.mxu0 %v998
    %1105 = vmatprep.subr.mxu0 %v1003
    %1106 = vmatpush1.msra.mxu0 %v1002
    %1107 = vmatprep.subr.mxu0 0.0
    %1108 = vmatpush1.msra.mxu0 0.0
    %1109 = vmatprep.subr.mxu0 0.0
    %1110 = vmatpush1.msra.mxu0 0.0
    %1111 = vmatprep.subr.mxu0 0.0
    %1112 = vmatpush1.msra.mxu0 0.0
    %1113 = vmatprep.subr.mxu0 0.0
    %1114 = vmatpush1.msra.mxu0 0.0
    %1115 = vmatprep.subr.mxu0 0.0
    %1116 = vmatpush1.msra.mxu0 0.0
    %1117 = vmatprep.subr.mxu0 0.0
    %1118 = vmatpush1.msra.mxu0 0.0
    %1119 = vmatprep.subr.mxu0 0.0
    %1120 = vmatpush1.msra.mxu0 0.0
    %1121 = vmatprep.subr.mxu0 0.0
    %1122 = vmatpush1.msra.mxu0 0.0
    %1123 = vmatprep.subr.mxu0 0.0
    %1124 = vmatpush1.msra.mxu0 0.0
    %1125 = vmatprep.subr.mxu0 0.0
    %1126 = vmatpush1.msra.mxu0 0.0
    %1127 = vmatprep.subr.mxu0 0.0
    %1128 = vmatpush1.msra.mxu0 0.0
    %1129 = vmatprep.subr.mxu0 0.0
    %1130 = vmatpush1.msra.mxu0 0.0
    %1131 = vmatprep.subr.mxu0 0.0
    %1132 = vmatpush1.msra.mxu0 0.0
    %1133 = vmatprep.subr.mxu0 0.0
    %1134 = vmatpush1.msra.mxu0 0.0
    %1135 = vmatprep.subr.mxu0 0.0
    %1136 = vmatpush1.msra.mxu0 0.0
    %1137 = vmatprep.subr.mxu0 0.0
    %1138 = vmatpush1.msra.mxu0 0.0
    %1139 = vmatprep.mubr.f32.mxu0 0.0
    %1140 = vmatmul.mubr.f32.gmra.mrb[0].mxu0 %v805
    %v1141 = vpop.f32.mrb[0].mxu0
    %v1142 = vadd.f32 0.0, %v1141
    %v1143 = vpop.f32.mrb[0].mxu0
    %v1144 = vadd.f32 0.0, %v1143
    %1145 = vdwg.mxu0
    %v1146 = vadd.f32 %v893, %v1071
    %v1147 = vadd.f32 %v895, %v1073
    %v1148 = vadd.f32 %v934, %v1142
    %v1149 = vadd.f32 %v936, %v1144
    %v1150 = vmul.f32 %v1146, 0.5
    %v1151 = vtanh.pop %v1150
    %v1152 = vadd.f32 %v1151, 1.0
    %v1153 = vmul.f32 %v1152, 0.5
    %v1154 = vmul.f32 %v1147, 0.5
    %v1155 = vtanh.pop %v1154
    %v1156 = vadd.f32 %v1155, 1.0
    %v1157 = vmul.f32 %v1156, 0.5
    %v1158 = vtanh.pop %v1148
    %v1159 = vmul.f32 %v1149, 0.5
    %v1160 = vtanh.pop %v1159
    %v1161 = vadd.f32 %v1160, 1.0
    %v1162 = vmul.f32 %v1161, 0.5
    %v1163 = vmul.f32 %v1157, %v806
    %v1164 = vmul.f32 %v1153, %v1158
    %v1165 = vadd.f32 %v1163, %v1164
    %v1166 = vtanh.pop %v1165
    %v1167 = vmul.f32 %v1162, %v1166
    %1168 = vst [vmem:[#allocation2] sm:$0xff] %v1167
    %1169 = vst [vmem:[#allocation3] sm:$0xff] %v1165
    %v1170 = vpack.c.bf16 %v1167, %v1167
    %s1171 = scalar_lea.vmem [#allocation10], 8
    %1172 = vst [vmem:[%s1171] sm:$0xf] %v1170
    %v1173 = vld [vmem:[#allocation2] sm:$0xff]
    %v1174 = vld [vmem:[#allocation3] sm:$0xff]
    %s1175 = scalar_lea.vmem [#allocation4], 12
    %v1176 = vld [vmem:[%s1175] sm:$0xf]
    %v1177 = vld [vmem:[#allocation7] sm:$0xff]
    %v1178 = vld [vmem:[#allocation7 + $0x8] sm:$0xff]
    %v1179 = vld [vmem:[#allocation7 + $0x10] sm:$0xff]
    %v1180 = vld [vmem:[#allocation7 + $0x18] sm:$0xff]
    %v1181 = vld [vmem:[%s3] sm:$0xf]
    %v1183 = vlaneseq
    %v1184 = vshrl.u32 %v1183, 7
    %v1185 = vsub.s32 0, %v1184
    %v1186 = vrot.slane %v1181, %v1185
    %v1187 = vlaneseq
    %v1188 = vshrl.u32 %v1187, 7
    %v1189 = vsub.s32 1, %v1188
    %v1190 = vrot.slane %v1181, %v1189
    %v1191 = vlaneseq
    %v1192 = vshrl.u32 %v1191, 7
    %v1193 = vsub.s32 2, %v1192
    %v1194 = vrot.slane %v1181, %v1193
    %v1195 = vlaneseq
    %v1196 = vshrl.u32 %v1195, 7
    %v1197 = vsub.s32 3, %v1196
    %v1198 = vrot.slane %v1181, %v1197
    %v1207 = vunpack.c.l.b16 %v1177
    %v1208 = vunpack.c.h.b16 %v1177
    %v1209 = vunpack.c.l.b16 %v1178
    %v1210 = vunpack.c.h.b16 %v1178
    %v1211 = vunpack.c.l.b16 %v1179
    %v1212 = vunpack.c.h.b16 %v1179
    %v1213 = vunpack.c.l.b16 %v1180
    %v1214 = vunpack.c.h.b16 %v1180
    %v1215 = vpack.c.b16 %v1211, %v1207
    %v1216 = vpack.c.b16 %v1212, %v1208
    %v1217 = vpack.c.b16 %v1213, %v1209
    %v1218 = vpack.c.b16 %v1214, %v1210
    %v1224 = vsel %vm119, %v1176, 0
    %1226 = vmatprep.subr.bf16.mxu0 %v1216
    %1227 = vmatpush1.bf16.msra.mxu0 %v1215
    %1228 = vmatprep.subr.bf16.mxu0 0
    %1229 = vmatpush1.bf16.msra.mxu0 0
    %1230 = vmatprep.subr.bf16.mxu0 0
    %1231 = vmatpush1.bf16.msra.mxu0 0
    %1232 = vmatprep.subr.bf16.mxu0 0
    %1233 = vmatpush1.bf16.msra.mxu0 0
    %1234 = vmatprep.subr.bf16.mxu0 0
    %1235 = vmatpush1.bf16.msra.mxu0 0
    %1236 = vmatprep.subr.bf16.mxu0 0
    %1237 = vmatpush1.bf16.msra.mxu0 0
    %1238 = vmatprep.subr.bf16.mxu0 0
    %1239 = vmatpush1.bf16.msra.mxu0 0
    %1240 = vmatprep.subr.bf16.mxu0 0
    %1241 = vmatpush1.bf16.msra.mxu0 0
    %1242 = vmatprep.subr.bf16.mxu0 0
    %1243 = vmatpush1.bf16.msra.mxu0 0
    %1244 = vmatprep.subr.bf16.mxu0 0
    %1245 = vmatpush1.bf16.msra.mxu0 0
    %1246 = vmatprep.subr.bf16.mxu0 0
    %1247 = vmatpush1.bf16.msra.mxu0 0
    %1248 = vmatprep.subr.bf16.mxu0 0
    %1249 = vmatpush1.bf16.msra.mxu0 0
    %1250 = vmatprep.subr.bf16.mxu0 0
    %1251 = vmatpush1.bf16.msra.mxu0 0
    %1252 = vmatprep.subr.bf16.mxu0 0
    %1253 = vmatpush1.bf16.msra.mxu0 0
    %1254 = vmatprep.subr.bf16.mxu0 0
    %1255 = vmatpush1.bf16.msra.mxu0 0
    %1256 = vmatprep.subr.bf16.mxu0 0
    %1257 = vmatpush1.bf16.msra.mxu0 0
    %1258 = vmatprep.mubr.bf16.mxu0 0
    %1259 = vmatmul.mubr.bf16.gmra.mrb[0].mxu0 %v1224
    %v1260 = vpop.f32.mrb[0].mxu0
    %v1261 = vadd.f32 %v1186, %v1260
    %v1262 = vpop.f32.mrb[0].mxu0
    %v1263 = vadd.f32 %v1190, %v1262
    %v1264 = vpop.f32.mrb[0].mxu0
    %v1265 = vpop.f32.mrb[0].mxu0
    %1266 = vdwg.mxu0
    %1267 = vmatprep.subr.bf16.mxu0 %v1218
    %1268 = vmatpush1.bf16.msra.mxu0 %v1217
    %1269 = vmatprep.subr.bf16.mxu0 0
    %1270 = vmatpush1.bf16.msra.mxu0 0
    %1271 = vmatprep.subr.bf16.mxu0 0
    %1272 = vmatpush1.bf16.msra.mxu0 0
    %1273 = vmatprep.subr.bf16.mxu0 0
    %1274 = vmatpush1.bf16.msra.mxu0 0
    %1275 = vmatprep.subr.bf16.mxu0 0
    %1276 = vmatpush1.bf16.msra.mxu0 0
    %1277 = vmatprep.subr.bf16.mxu0 0
    %1278 = vmatpush1.bf16.msra.mxu0 0
    %1279 = vmatprep.subr.bf16.mxu0 0
    %1280 = vmatpush1.bf16.msra.mxu0 0
    %1281 = vmatprep.subr.bf16.mxu0 0
    %1282 = vmatpush1.bf16.msra.mxu0 0
    %1283 = vmatprep.subr.bf16.mxu0 0
    %1284 = vmatpush1.bf16.msra.mxu0 0
    %1285 = vmatprep.subr.bf16.mxu0 0
    %1286 = vmatpush1.bf16.msra.mxu0 0
    %1287 = vmatprep.subr.bf16.mxu0 0
    %1288 = vmatpush1.bf16.msra.mxu0 0
    %1289 = vmatprep.subr.bf16.mxu0 0
    %1290 = vmatpush1.bf16.msra.mxu0 0
    %1291 = vmatprep.subr.bf16.mxu0 0
    %1292 = vmatpush1.bf16.msra.mxu0 0
    %1293 = vmatprep.subr.bf16.mxu0 0
    %1294 = vmatpush1.bf16.msra.mxu0 0
    %1295 = vmatprep.subr.bf16.mxu0 0
    %1296 = vmatpush1.bf16.msra.mxu0 0
    %1297 = vmatprep.subr.bf16.mxu0 0
    %1298 = vmatpush1.bf16.msra.mxu0 0
    %1299 = vmatprep.mubr.bf16.mxu0 0
    %1300 = vmatmul.mubr.bf16.gmra.mrb[0].mxu0 %v1224
    %v1301 = vpop.f32.mrb[0].mxu0
    %v1302 = vadd.f32 %v1194, %v1301
    %v1303 = vpop.f32.mrb[0].mxu0
    %v1304 = vadd.f32 %v1198, %v1303
    %v1305 = vpop.f32.mrb[0].mxu0
    %v1306 = vpop.f32.mrb[0].mxu0
    %1307 = vdwg.mxu0
    %v1308 = vld [vmem:[#allocation9] sm:$0xff]
    %v1309 = vld [vmem:[#allocation9 + $0x8] sm:$0xff]
    %v1310 = vld [vmem:[#allocation9 + $0x10] sm:$0xff]
    %v1311 = vld [vmem:[#allocation9 + $0x18] sm:$0xff]
    %v1312 = vld [vmem:[#allocation9 + $0x20] sm:$0xff]
    %v1313 = vld [vmem:[#allocation9 + $0x28] sm:$0xff]
    %v1314 = vld [vmem:[#allocation9 + $0x30] sm:$0xff]
    %v1315 = vld [vmem:[#allocation9 + $0x38] sm:$0xff]
    %v1316 = vld [vmem:[#allocation9 + $0x40] sm:$0xff]
    %v1317 = vld [vmem:[#allocation9 + $0x48] sm:$0xff]
    %v1318 = vld [vmem:[#allocation9 + $0x50] sm:$0xff]
    %v1319 = vld [vmem:[#allocation9 + $0x58] sm:$0xff]
    %v1320 = vld [vmem:[#allocation9 + $0x60] sm:$0xff]
    %v1321 = vld [vmem:[#allocation9 + $0x68] sm:$0xff]
    %v1322 = vld [vmem:[#allocation9 + $0x70] sm:$0xff]
    %v1323 = vld [vmem:[#allocation9 + $0x78] sm:$0xff]
    %v1324 = vld [vmem:[#allocation9 + $0x80] sm:$0xff]
    %v1325 = vld [vmem:[#allocation9 + $0x88] sm:$0xff]
    %v1326 = vld [vmem:[#allocation9 + $0x90] sm:$0xff]
    %v1327 = vld [vmem:[#allocation9 + $0x98] sm:$0xff]
    %v1328 = vld [vmem:[#allocation9 + $0xa0] sm:$0xff]
    %v1329 = vld [vmem:[#allocation9 + $0xa8] sm:$0xff]
    %v1330 = vld [vmem:[#allocation9 + $0xb0] sm:$0xff]
    %v1331 = vld [vmem:[#allocation9 + $0xb8] sm:$0xff]
    %v1332 = vld [vmem:[#allocation9 + $0xc0] sm:$0xff]
    %v1333 = vld [vmem:[#allocation9 + $0xc8] sm:$0xff]
    %v1334 = vld [vmem:[#allocation9 + $0xd0] sm:$0xff]
    %v1335 = vld [vmem:[#allocation9 + $0xd8] sm:$0xff]
    %v1336 = vld [vmem:[#allocation9 + $0xe0] sm:$0xff]
    %v1337 = vld [vmem:[#allocation9 + $0xe8] sm:$0xff]
    %v1338 = vld [vmem:[#allocation9 + $0xf0] sm:$0xff]
    %v1339 = vld [vmem:[#allocation9 + $0xf8] sm:$0xff]
    %v1340 = vld [vmem:[#allocation9 + $0x100] sm:$0xff]
    %v1341 = vld [vmem:[#allocation9 + $0x108] sm:$0xff]
    %v1342 = vld [vmem:[#allocation9 + $0x110] sm:$0xff]
    %v1343 = vld [vmem:[#allocation9 + $0x118] sm:$0xff]
    %v1344 = vld [vmem:[#allocation9 + $0x120] sm:$0xff]
    %v1345 = vld [vmem:[#allocation9 + $0x128] sm:$0xff]
    %v1346 = vld [vmem:[#allocation9 + $0x130] sm:$0xff]
    %v1347 = vld [vmem:[#allocation9 + $0x138] sm:$0xff]
    %v1348 = vld [vmem:[#allocation9 + $0x140] sm:$0xff]
    %v1349 = vld [vmem:[#allocation9 + $0x148] sm:$0xff]
    %v1350 = vld [vmem:[#allocation9 + $0x150] sm:$0xff]
    %v1351 = vld [vmem:[#allocation9 + $0x158] sm:$0xff]
    %v1352 = vld [vmem:[#allocation9 + $0x160] sm:$0xff]
    %v1353 = vld [vmem:[#allocation9 + $0x168] sm:$0xff]
    %v1354 = vld [vmem:[#allocation9 + $0x170] sm:$0xff]
    %v1355 = vld [vmem:[#allocation9 + $0x178] sm:$0xff]
    %v1356 = vld [vmem:[#allocation9 + $0x180] sm:$0xff]
    %v1357 = vld [vmem:[#allocation9 + $0x188] sm:$0xff]
    %v1358 = vld [vmem:[#allocation9 + $0x190] sm:$0xff]
    %v1359 = vld [vmem:[#allocation9 + $0x198] sm:$0xff]
    %v1360 = vld [vmem:[#allocation9 + $0x1a0] sm:$0xff]
    %v1361 = vld [vmem:[#allocation9 + $0x1a8] sm:$0xff]
    %v1362 = vld [vmem:[#allocation9 + $0x1b0] sm:$0xff]
    %v1363 = vld [vmem:[#allocation9 + $0x1b8] sm:$0xff]
    %v1364 = vld [vmem:[#allocation9 + $0x1c0] sm:$0xff]
    %v1365 = vld [vmem:[#allocation9 + $0x1c8] sm:$0xff]
    %v1366 = vld [vmem:[#allocation9 + $0x1d0] sm:$0xff]
    %v1367 = vld [vmem:[#allocation9 + $0x1d8] sm:$0xff]
    %v1368 = vld [vmem:[#allocation9 + $0x1e0] sm:$0xff]
    %v1369 = vld [vmem:[#allocation9 + $0x1e8] sm:$0xff]
    %v1370 = vld [vmem:[#allocation9 + $0x1f0] sm:$0xff]
    %v1371 = vld [vmem:[#allocation9 + $0x1f8] sm:$0xff]
    %1372 = vmatprep.subr.mxu0 %v1309
    %1373 = vmatpush1.msra.mxu0 %v1308
    %1374 = vmatprep.subr.mxu0 %v1313
    %1375 = vmatpush1.msra.mxu0 %v1312
    %1376 = vmatprep.subr.mxu0 %v1317
    %1377 = vmatpush1.msra.mxu0 %v1316
    %1378 = vmatprep.subr.mxu0 %v1321
    %1379 = vmatpush1.msra.mxu0 %v1320
    %1380 = vmatprep.subr.mxu0 %v1325
    %1381 = vmatpush1.msra.mxu0 %v1324
    %1382 = vmatprep.subr.mxu0 %v1329
    %1383 = vmatpush1.msra.mxu0 %v1328
    %1384 = vmatprep.subr.mxu0 %v1333
    %1385 = vmatpush1.msra.mxu0 %v1332
    %1386 = vmatprep.subr.mxu0 %v1337
    %1387 = vmatpush1.msra.mxu0 %v1336
    %1388 = vmatprep.subr.mxu0 %v1341
    %1389 = vmatpush1.msra.mxu0 %v1340
    %1390 = vmatprep.subr.mxu0 %v1345
    %1391 = vmatpush1.msra.mxu0 %v1344
    %1392 = vmatprep.subr.mxu0 %v1349
    %1393 = vmatpush1.msra.mxu0 %v1348
    %1394 = vmatprep.subr.mxu0 %v1353
    %1395 = vmatpush1.msra.mxu0 %v1352
    %1396 = vmatprep.subr.mxu0 %v1357
    %1397 = vmatpush1.msra.mxu0 %v1356
    %1398 = vmatprep.subr.mxu0 %v1361
    %1399 = vmatpush1.msra.mxu0 %v1360
    %1400 = vmatprep.subr.mxu0 %v1365
    %1401 = vmatpush1.msra.mxu0 %v1364
    %1402 = vmatprep.subr.mxu0 %v1369
    %1403 = vmatpush1.msra.mxu0 %v1368
    %1404 = vmatprep.subr.mxu0 0.0
    %1405 = vmatpush1.msra.mxu0 0.0
    %1406 = vmatprep.subr.mxu0 0.0
    %1407 = vmatpush1.msra.mxu0 0.0
    %1408 = vmatprep.subr.mxu0 0.0
    %1409 = vmatpush1.msra.mxu0 0.0
    %1410 = vmatprep.subr.mxu0 0.0
    %1411 = vmatpush1.msra.mxu0 0.0
    %1412 = vmatprep.subr.mxu0 0.0
    %1413 = vmatpush1.msra.mxu0 0.0
    %1414 = vmatprep.subr.mxu0 0.0
    %1415 = vmatpush1.msra.mxu0 0.0
    %1416 = vmatprep.subr.mxu0 0.0
    %1417 = vmatpush1.msra.mxu0 0.0
    %1418 = vmatprep.subr.mxu0 0.0
    %1419 = vmatpush1.msra.mxu0 0.0
    %1420 = vmatprep.subr.mxu0 0.0
    %1421 = vmatpush1.msra.mxu0 0.0
    %1422 = vmatprep.subr.mxu0 0.0
    %1423 = vmatpush1.msra.mxu0 0.0
    %1424 = vmatprep.subr.mxu0 0.0
    %1425 = vmatpush1.msra.mxu0 0.0
    %1426 = vmatprep.subr.mxu0 0.0
    %1427 = vmatpush1.msra.mxu0 0.0
    %1428 = vmatprep.subr.mxu0 0.0
    %1429 = vmatpush1.msra.mxu0 0.0
    %1430 = vmatprep.subr.mxu0 0.0
    %1431 = vmatpush1.msra.mxu0 0.0
    %1432 = vmatprep.subr.mxu0 0.0
    %1433 = vmatpush1.msra.mxu0 0.0
    %1434 = vmatprep.subr.mxu0 0.0
    %1435 = vmatpush1.msra.mxu0 0.0
    %1436 = vmatprep.mubr.f32.mxu0 0.0
    %1437 = vmatmul.mubr.f32.gmra.mrb[0].mxu0 %v1173
    %v1438 = vpop.f32.mrb[0].mxu0
    %v1439 = vadd.f32 0.0, %v1438
    %v1440 = vpop.f32.mrb[0].mxu0
    %v1441 = vadd.f32 0.0, %v1440
    %1442 = vdwg.mxu0
    %1443 = vmatprep.subr.mxu0 %v1311
    %1444 = vmatpush1.msra.mxu0 %v1310
    %1445 = vmatprep.subr.mxu0 %v1315
    %1446 = vmatpush1.msra.mxu0 %v1314
    %1447 = vmatprep.subr.mxu0 %v1319
    %1448 = vmatpush1.msra.mxu0 %v1318
    %1449 = vmatprep.subr.mxu0 %v1323
    %1450 = vmatpush1.msra.mxu0 %v1322
    %1451 = vmatprep.subr.mxu0 %v1327
    %1452 = vmatpush1.msra.mxu0 %v1326
    %1453 = vmatprep.subr.mxu0 %v1331
    %1454 = vmatpush1.msra.mxu0 %v1330
    %1455 = vmatprep.subr.mxu0 %v1335
    %1456 = vmatpush1.msra.mxu0 %v1334
    %1457 = vmatprep.subr.mxu0 %v1339
    %1458 = vmatpush1.msra.mxu0 %v1338
    %1459 = vmatprep.subr.mxu0 %v1343
    %1460 = vmatpush1.msra.mxu0 %v1342
    %1461 = vmatprep.subr.mxu0 %v1347
    %1462 = vmatpush1.msra.mxu0 %v1346
    %1463 = vmatprep.subr.mxu0 %v1351
    %1464 = vmatpush1.msra.mxu0 %v1350
    %1465 = vmatprep.subr.mxu0 %v1355
    %1466 = vmatpush1.msra.mxu0 %v1354
    %1467 = vmatprep.subr.mxu0 %v1359
    %1468 = vmatpush1.msra.mxu0 %v1358
    %1469 = vmatprep.subr.mxu0 %v1363
    %1470 = vmatpush1.msra.mxu0 %v1362
    %1471 = vmatprep.subr.mxu0 %v1367
    %1472 = vmatpush1.msra.mxu0 %v1366
    %1473 = vmatprep.subr.mxu0 %v1371
    %1474 = vmatpush1.msra.mxu0 %v1370
    %1475 = vmatprep.subr.mxu0 0.0
    %1476 = vmatpush1.msra.mxu0 0.0
    %1477 = vmatprep.subr.mxu0 0.0
    %1478 = vmatpush1.msra.mxu0 0.0
    %1479 = vmatprep.subr.mxu0 0.0
    %1480 = vmatpush1.msra.mxu0 0.0
    %1481 = vmatprep.subr.mxu0 0.0
    %1482 = vmatpush1.msra.mxu0 0.0
    %1483 = vmatprep.subr.mxu0 0.0
    %1484 = vmatpush1.msra.mxu0 0.0
    %1485 = vmatprep.subr.mxu0 0.0
    %1486 = vmatpush1.msra.mxu0 0.0
    %1487 = vmatprep.subr.mxu0 0.0
    %1488 = vmatpush1.msra.mxu0 0.0
    %1489 = vmatprep.subr.mxu0 0.0
    %1490 = vmatpush1.msra.mxu0 0.0
    %1491 = vmatprep.subr.mxu0 0.0
    %1492 = vmatpush1.msra.mxu0 0.0
    %1493 = vmatprep.subr.mxu0 0.0
    %1494 = vmatpush1.msra.mxu0 0.0
    %1495 = vmatprep.subr.mxu0 0.0
    %1496 = vmatpush1.msra.mxu0 0.0
    %1497 = vmatprep.subr.mxu0 0.0
    %1498 = vmatpush1.msra.mxu0 0.0
    %1499 = vmatprep.subr.mxu0 0.0
    %1500 = vmatpush1.msra.mxu0 0.0
    %1501 = vmatprep.subr.mxu0 0.0
    %1502 = vmatpush1.msra.mxu0 0.0
    %1503 = vmatprep.subr.mxu0 0.0
    %1504 = vmatpush1.msra.mxu0 0.0
    %1505 = vmatprep.subr.mxu0 0.0
    %1506 = vmatpush1.msra.mxu0 0.0
    %1507 = vmatprep.mubr.f32.mxu0 0.0
    %1508 = vmatmul.mubr.f32.gmra.mrb[0].mxu0 %v1173
    %v1509 = vpop.f32.mrb[0].mxu0
    %v1510 = vadd.f32 0.0, %v1509
    %v1511 = vpop.f32.mrb[0].mxu0
    %v1512 = vadd.f32 0.0, %v1511
    %1513 = vdwg.mxu0
    %v1514 = vadd.f32 %v1261, %v1439
    %v1515 = vadd.f32 %v1263, %v1441
    %v1516 = vadd.f32 %v1302, %v1510
    %v1517 = vadd.f32 %v1304, %v1512
    %v1518 = vmul.f32 %v1514, 0.5
    %v1519 = vtanh.pop %v1518
    %v1520 = vadd.f32 %v1519, 1.0
    %v1521 = vmul.f32 %v1520, 0.5
    %v1522 = vmul.f32 %v1515, 0.5
    %v1523 = vtanh.pop %v1522
    %v1524 = vadd.f32 %v1523, 1.0
    %v1525 = vmul.f32 %v1524, 0.5
    %v1526 = vtanh.pop %v1516
    %v1527 = vmul.f32 %v1517, 0.5
    %v1528 = vtanh.pop %v1527
    %v1529 = vadd.f32 %v1528, 1.0
    %v1530 = vmul.f32 %v1529, 0.5
    %v1531 = vmul.f32 %v1525, %v1174
    %v1532 = vmul.f32 %v1521, %v1526
    %v1533 = vadd.f32 %v1531, %v1532
    %v1534 = vtanh.pop %v1533
    %v1535 = vmul.f32 %v1530, %v1534
    %1536 = vst [vmem:[#allocation2] sm:$0xff] %v1535
    %1537 = vst [vmem:[#allocation3] sm:$0xff] %v1533
    %v1538 = vpack.c.bf16 %v1535, %v1535
    %s1539 = scalar_lea.vmem [#allocation10], 12
    %1540 = vst [vmem:[%s1539] sm:$0xf] %v1538
    %v1541 = vld [vmem:[#allocation2] sm:$0xff]
    %v1542 = vld [vmem:[#allocation3] sm:$0xff]
    %s1543 = scalar_lea.vmem [#allocation4], 16
    %v1544 = vld [vmem:[%s1543] sm:$0xf]
    %v1545 = vld [vmem:[#allocation7] sm:$0xff]
    %v1546 = vld [vmem:[#allocation7 + $0x8] sm:$0xff]
    %v1547 = vld [vmem:[#allocation7 + $0x10] sm:$0xff]
    %v1548 = vld [vmem:[#allocation7 + $0x18] sm:$0xff]
    %v1549 = vld [vmem:[%s3] sm:$0xf]
    %v1551 = vlaneseq
    %v1552 = vshrl.u32 %v1551, 7
    %v1553 = vsub.s32 0, %v1552
    %v1554 = vrot.slane %v1549, %v1553
    %v1555 = vlaneseq
    %v1556 = vshrl.u32 %v1555, 7
    %v1557 = vsub.s32 1, %v1556
    %v1558 = vrot.slane %v1549, %v1557
    %v1559 = vlaneseq
    %v1560 = vshrl.u32 %v1559, 7
    %v1561 = vsub.s32 2, %v1560
    %v1562 = vrot.slane %v1549, %v1561
    %v1563 = vlaneseq
    %v1564 = vshrl.u32 %v1563, 7
    %v1565 = vsub.s32 3, %v1564
    %v1566 = vrot.slane %v1549, %v1565
    %v1575 = vunpack.c.l.b16 %v1545
    %v1576 = vunpack.c.h.b16 %v1545
    %v1577 = vunpack.c.l.b16 %v1546
    %v1578 = vunpack.c.h.b16 %v1546
    %v1579 = vunpack.c.l.b16 %v1547
    %v1580 = vunpack.c.h.b16 %v1547
    %v1581 = vunpack.c.l.b16 %v1548
    %v1582 = vunpack.c.h.b16 %v1548
    %v1583 = vpack.c.b16 %v1579, %v1575
    %v1584 = vpack.c.b16 %v1580, %v1576
    %v1585 = vpack.c.b16 %v1581, %v1577
    %v1586 = vpack.c.b16 %v1582, %v1578
    %v1592 = vsel %vm119, %v1544, 0
    %1594 = vmatprep.subr.bf16.mxu0 %v1584
    %1595 = vmatpush1.bf16.msra.mxu0 %v1583
    %1596 = vmatprep.subr.bf16.mxu0 0
    %1597 = vmatpush1.bf16.msra.mxu0 0
    %1598 = vmatprep.subr.bf16.mxu0 0
    %1599 = vmatpush1.bf16.msra.mxu0 0
    %1600 = vmatprep.subr.bf16.mxu0 0
    %1601 = vmatpush1.bf16.msra.mxu0 0
    %1602 = vmatprep.subr.bf16.mxu0 0
    %1603 = vmatpush1.bf16.msra.mxu0 0
    %1604 = vmatprep.subr.bf16.mxu0 0
    %1605 = vmatpush1.bf16.msra.mxu0 0
    %1606 = vmatprep.subr.bf16.mxu0 0
    %1607 = vmatpush1.bf16.msra.mxu0 0
    %1608 = vmatprep.subr.bf16.mxu0 0
    %1609 = vmatpush1.bf16.msra.mxu0 0
    %1610 = vmatprep.subr.bf16.mxu0 0
    %1611 = vmatpush1.bf16.msra.mxu0 0
    %1612 = vmatprep.subr.bf16.mxu0 0
    %1613 = vmatpush1.bf16.msra.mxu0 0
    %1614 = vmatprep.subr.bf16.mxu0 0
    %1615 = vmatpush1.bf16.msra.mxu0 0
    %1616 = vmatprep.subr.bf16.mxu0 0
    %1617 = vmatpush1.bf16.msra.mxu0 0
    %1618 = vmatprep.subr.bf16.mxu0 0
    %1619 = vmatpush1.bf16.msra.mxu0 0
    %1620 = vmatprep.subr.bf16.mxu0 0
    %1621 = vmatpush1.bf16.msra.mxu0 0
    %1622 = vmatprep.subr.bf16.mxu0 0
    %1623 = vmatpush1.bf16.msra.mxu0 0
    %1624 = vmatprep.subr.bf16.mxu0 0
    %1625 = vmatpush1.bf16.msra.mxu0 0
    %1626 = vmatprep.mubr.bf16.mxu0 0
    %1627 = vmatmul.mubr.bf16.gmra.mrb[0].mxu0 %v1592
    %v1628 = vpop.f32.mrb[0].mxu0
    %v1629 = vadd.f32 %v1554, %v1628
    %v1630 = vpop.f32.mrb[0].mxu0
    %v1631 = vadd.f32 %v1558, %v1630
    %v1632 = vpop.f32.mrb[0].mxu0
    %v1633 = vpop.f32.mrb[0].mxu0
    %1634 = vdwg.mxu0
    %1635 = vmatprep.subr.bf16.mxu0 %v1586
    %1636 = vmatpush1.bf16.msra.mxu0 %v1585
    %1637 = vmatprep.subr.bf16.mxu0 0
    %1638 = vmatpush1.bf16.msra.mxu0 0
    %1639 = vmatprep.subr.bf16.mxu0 0
    %1640 = vmatpush1.bf16.msra.mxu0 0
    %1641 = vmatprep.subr.bf16.mxu0 0
    %1642 = vmatpush1.bf16.msra.mxu0 0
    %1643 = vmatprep.subr.bf16.mxu0 0
    %1644 = vmatpush1.bf16.msra.mxu0 0
    %1645 = vmatprep.subr.bf16.mxu0 0
    %1646 = vmatpush1.bf16.msra.mxu0 0
    %1647 = vmatprep.subr.bf16.mxu0 0
    %1648 = vmatpush1.bf16.msra.mxu0 0
    %1649 = vmatprep.subr.bf16.mxu0 0
    %1650 = vmatpush1.bf16.msra.mxu0 0
    %1651 = vmatprep.subr.bf16.mxu0 0
    %1652 = vmatpush1.bf16.msra.mxu0 0
    %1653 = vmatprep.subr.bf16.mxu0 0
    %1654 = vmatpush1.bf16.msra.mxu0 0
    %1655 = vmatprep.subr.bf16.mxu0 0
    %1656 = vmatpush1.bf16.msra.mxu0 0
    %1657 = vmatprep.subr.bf16.mxu0 0
    %1658 = vmatpush1.bf16.msra.mxu0 0
    %1659 = vmatprep.subr.bf16.mxu0 0
    %1660 = vmatpush1.bf16.msra.mxu0 0
    %1661 = vmatprep.subr.bf16.mxu0 0
    %1662 = vmatpush1.bf16.msra.mxu0 0
    %1663 = vmatprep.subr.bf16.mxu0 0
    %1664 = vmatpush1.bf16.msra.mxu0 0
    %1665 = vmatprep.subr.bf16.mxu0 0
    %1666 = vmatpush1.bf16.msra.mxu0 0
    %1667 = vmatprep.mubr.bf16.mxu0 0
    %1668 = vmatmul.mubr.bf16.gmra.mrb[0].mxu0 %v1592
    %v1669 = vpop.f32.mrb[0].mxu0
    %v1670 = vadd.f32 %v1562, %v1669
    %v1671 = vpop.f32.mrb[0].mxu0
    %v1672 = vadd.f32 %v1566, %v1671
    %v1673 = vpop.f32.mrb[0].mxu0
    %v1674 = vpop.f32.mrb[0].mxu0
    %1675 = vdwg.mxu0
    %v1676 = vld [vmem:[#allocation9] sm:$0xff]
    %v1677 = vld [vmem:[#allocation9 + $0x8] sm:$0xff]
    %v1678 = vld [vmem:[#allocation9 + $0x10] sm:$0xff]
    %v1679 = vld [vmem:[#allocation9 + $0x18] sm:$0xff]
    %v1680 = vld [vmem:[#allocation9 + $0x20] sm:$0xff]
    %v1681 = vld [vmem:[#allocation9 + $0x28] sm:$0xff]
    %v1682 = vld [vmem:[#allocation9 + $0x30] sm:$0xff]
    %v1683 = vld [vmem:[#allocation9 + $0x38] sm:$0xff]
    %v1684 = vld [vmem:[#allocation9 + $0x40] sm:$0xff]
    %v1685 = vld [vmem:[#allocation9 + $0x48] sm:$0xff]
    %v1686 = vld [vmem:[#allocation9 + $0x50] sm:$0xff]
    %v1687 = vld [vmem:[#allocation9 + $0x58] sm:$0xff]
    %v1688 = vld [vmem:[#allocation9 + $0x60] sm:$0xff]
    %v1689 = vld [vmem:[#allocation9 + $0x68] sm:$0xff]
    %v1690 = vld [vmem:[#allocation9 + $0x70] sm:$0xff]
    %v1691 = vld [vmem:[#allocation9 + $0x78] sm:$0xff]
    %v1692 = vld [vmem:[#allocation9 + $0x80] sm:$0xff]
    %v1693 = vld [vmem:[#allocation9 + $0x88] sm:$0xff]
    %v1694 = vld [vmem:[#allocation9 + $0x90] sm:$0xff]
    %v1695 = vld [vmem:[#allocation9 + $0x98] sm:$0xff]
    %v1696 = vld [vmem:[#allocation9 + $0xa0] sm:$0xff]
    %v1697 = vld [vmem:[#allocation9 + $0xa8] sm:$0xff]
    %v1698 = vld [vmem:[#allocation9 + $0xb0] sm:$0xff]
    %v1699 = vld [vmem:[#allocation9 + $0xb8] sm:$0xff]
    %v1700 = vld [vmem:[#allocation9 + $0xc0] sm:$0xff]
    %v1701 = vld [vmem:[#allocation9 + $0xc8] sm:$0xff]
    %v1702 = vld [vmem:[#allocation9 + $0xd0] sm:$0xff]
    %v1703 = vld [vmem:[#allocation9 + $0xd8] sm:$0xff]
    %v1704 = vld [vmem:[#allocation9 + $0xe0] sm:$0xff]
    %v1705 = vld [vmem:[#allocation9 + $0xe8] sm:$0xff]
    %v1706 = vld [vmem:[#allocation9 + $0xf0] sm:$0xff]
    %v1707 = vld [vmem:[#allocation9 + $0xf8] sm:$0xff]
    %v1708 = vld [vmem:[#allocation9 + $0x100] sm:$0xff]
    %v1709 = vld [vmem:[#allocation9 + $0x108] sm:$0xff]
    %v1710 = vld [vmem:[#allocation9 + $0x110] sm:$0xff]
    %v1711 = vld [vmem:[#allocation9 + $0x118] sm:$0xff]
    %v1712 = vld [vmem:[#allocation9 + $0x120] sm:$0xff]
    %v1713 = vld [vmem:[#allocation9 + $0x128] sm:$0xff]
    %v1714 = vld [vmem:[#allocation9 + $0x130] sm:$0xff]
    %v1715 = vld [vmem:[#allocation9 + $0x138] sm:$0xff]
    %v1716 = vld [vmem:[#allocation9 + $0x140] sm:$0xff]
    %v1717 = vld [vmem:[#allocation9 + $0x148] sm:$0xff]
    %v1718 = vld [vmem:[#allocation9 + $0x150] sm:$0xff]
    %v1719 = vld [vmem:[#allocation9 + $0x158] sm:$0xff]
    %v1720 = vld [vmem:[#allocation9 + $0x160] sm:$0xff]
    %v1721 = vld [vmem:[#allocation9 + $0x168] sm:$0xff]
    %v1722 = vld [vmem:[#allocation9 + $0x170] sm:$0xff]
    %v1723 = vld [vmem:[#allocation9 + $0x178] sm:$0xff]
    %v1724 = vld [vmem:[#allocation9 + $0x180] sm:$0xff]
    %v1725 = vld [vmem:[#allocation9 + $0x188] sm:$0xff]
    %v1726 = vld [vmem:[#allocation9 + $0x190] sm:$0xff]
    %v1727 = vld [vmem:[#allocation9 + $0x198] sm:$0xff]
    %v1728 = vld [vmem:[#allocation9 + $0x1a0] sm:$0xff]
    %v1729 = vld [vmem:[#allocation9 + $0x1a8] sm:$0xff]
    %v1730 = vld [vmem:[#allocation9 + $0x1b0] sm:$0xff]
    %v1731 = vld [vmem:[#allocation9 + $0x1b8] sm:$0xff]
    %v1732 = vld [vmem:[#allocation9 + $0x1c0] sm:$0xff]
    %v1733 = vld [vmem:[#allocation9 + $0x1c8] sm:$0xff]
    %v1734 = vld [vmem:[#allocation9 + $0x1d0] sm:$0xff]
    %v1735 = vld [vmem:[#allocation9 + $0x1d8] sm:$0xff]
    %v1736 = vld [vmem:[#allocation9 + $0x1e0] sm:$0xff]
    %v1737 = vld [vmem:[#allocation9 + $0x1e8] sm:$0xff]
    %v1738 = vld [vmem:[#allocation9 + $0x1f0] sm:$0xff]
    %v1739 = vld [vmem:[#allocation9 + $0x1f8] sm:$0xff]
    %1740 = vmatprep.subr.mxu0 %v1677
    %1741 = vmatpush1.msra.mxu0 %v1676
    %1742 = vmatprep.subr.mxu0 %v1681
    %1743 = vmatpush1.msra.mxu0 %v1680
    %1744 = vmatprep.subr.mxu0 %v1685
    %1745 = vmatpush1.msra.mxu0 %v1684
    %1746 = vmatprep.subr.mxu0 %v1689
    %1747 = vmatpush1.msra.mxu0 %v1688
    %1748 = vmatprep.subr.mxu0 %v1693
    %1749 = vmatpush1.msra.mxu0 %v1692
    %1750 = vmatprep.subr.mxu0 %v1697
    %1751 = vmatpush1.msra.mxu0 %v1696
    %1752 = vmatprep.subr.mxu0 %v1701
    %1753 = vmatpush1.msra.mxu0 %v1700
    %1754 = vmatprep.subr.mxu0 %v1705
    %1755 = vmatpush1.msra.mxu0 %v1704
    %1756 = vmatprep.subr.mxu0 %v1709
    %1757 = vmatpush1.msra.mxu0 %v1708
    %1758 = vmatprep.subr.mxu0 %v1713
    %1759 = vmatpush1.msra.mxu0 %v1712
    %1760 = vmatprep.subr.mxu0 %v1717
    %1761 = vmatpush1.msra.mxu0 %v1716
    %1762 = vmatprep.subr.mxu0 %v1721
    %1763 = vmatpush1.msra.mxu0 %v1720
    %1764 = vmatprep.subr.mxu0 %v1725
    %1765 = vmatpush1.msra.mxu0 %v1724
    %1766 = vmatprep.subr.mxu0 %v1729
    %1767 = vmatpush1.msra.mxu0 %v1728
    %1768 = vmatprep.subr.mxu0 %v1733
    %1769 = vmatpush1.msra.mxu0 %v1732
    %1770 = vmatprep.subr.mxu0 %v1737
    %1771 = vmatpush1.msra.mxu0 %v1736
    %1772 = vmatprep.subr.mxu0 0.0
    %1773 = vmatpush1.msra.mxu0 0.0
    %1774 = vmatprep.subr.mxu0 0.0
    %1775 = vmatpush1.msra.mxu0 0.0
    %1776 = vmatprep.subr.mxu0 0.0
    %1777 = vmatpush1.msra.mxu0 0.0
    %1778 = vmatprep.subr.mxu0 0.0
    %1779 = vmatpush1.msra.mxu0 0.0
    %1780 = vmatprep.subr.mxu0 0.0
    %1781 = vmatpush1.msra.mxu0 0.0
    %1782 = vmatprep.subr.mxu0 0.0
    %1783 = vmatpush1.msra.mxu0 0.0
    %1784 = vmatprep.subr.mxu0 0.0
    %1785 = vmatpush1.msra.mxu0 0.0
    %1786 = vmatprep.subr.mxu0 0.0
    %1787 = vmatpush1.msra.mxu0 0.0
    %1788 = vmatprep.subr.mxu0 0.0
    %1789 = vmatpush1.msra.mxu0 0.0
    %1790 = vmatprep.subr.mxu0 0.0
    %1791 = vmatpush1.msra.mxu0 0.0
    %1792 = vmatprep.subr.mxu0 0.0
    %1793 = vmatpush1.msra.mxu0 0.0
    %1794 = vmatprep.subr.mxu0 0.0
    %1795 = vmatpush1.msra.mxu0 0.0
    %1796 = vmatprep.subr.mxu0 0.0
    %1797 = vmatpush1.msra.mxu0 0.0
    %1798 = vmatprep.subr.mxu0 0.0
    %1799 = vmatpush1.msra.mxu0 0.0
    %1800 = vmatprep.subr.mxu0 0.0
    %1801 = vmatpush1.msra.mxu0 0.0
    %1802 = vmatprep.subr.mxu0 0.0
    %1803 = vmatpush1.msra.mxu0 0.0
    %1804 = vmatprep.mubr.f32.mxu0 0.0
    %1805 = vmatmul.mubr.f32.gmra.mrb[0].mxu0 %v1541
    %v1806 = vpop.f32.mrb[0].mxu0
    %v1807 = vadd.f32 0.0, %v1806
    %v1808 = vpop.f32.mrb[0].mxu0
    %v1809 = vadd.f32 0.0, %v1808
    %1810 = vdwg.mxu0
    %1811 = vmatprep.subr.mxu0 %v1679
    %1812 = vmatpush1.msra.mxu0 %v1678
    %1813 = vmatprep.subr.mxu0 %v1683
    %1814 = vmatpush1.msra.mxu0 %v1682
    %1815 = vmatprep.subr.mxu0 %v1687
    %1816 = vmatpush1.msra.mxu0 %v1686
    %1817 = vmatprep.subr.mxu0 %v1691
    %1818 = vmatpush1.msra.mxu0 %v1690
    %1819 = vmatprep.subr.mxu0 %v1695
    %1820 = vmatpush1.msra.mxu0 %v1694
    %1821 = vmatprep.subr.mxu0 %v1699
    %1822 = vmatpush1.msra.mxu0 %v1698
    %1823 = vmatprep.subr.mxu0 %v1703
    %1824 = vmatpush1.msra.mxu0 %v1702
    %1825 = vmatprep.subr.mxu0 %v1707
    %1826 = vmatpush1.msra.mxu0 %v1706
    %1827 = vmatprep.subr.mxu0 %v1711
    %1828 = vmatpush1.msra.mxu0 %v1710
    %1829 = vmatprep.subr.mxu0 %v1715
    %1830 = vmatpush1.msra.mxu0 %v1714
    %1831 = vmatprep.subr.mxu0 %v1719
    %1832 = vmatpush1.msra.mxu0 %v1718
    %1833 = vmatprep.subr.mxu0 %v1723
    %1834 = vmatpush1.msra.mxu0 %v1722
    %1835 = vmatprep.subr.mxu0 %v1727
    %1836 = vmatpush1.msra.mxu0 %v1726
    %1837 = vmatprep.subr.mxu0 %v1731
    %1838 = vmatpush1.msra.mxu0 %v1730
    %1839 = vmatprep.subr.mxu0 %v1735
    %1840 = vmatpush1.msra.mxu0 %v1734
    %1841 = vmatprep.subr.mxu0 %v1739
    %1842 = vmatpush1.msra.mxu0 %v1738
    %1843 = vmatprep.subr.mxu0 0.0
    %1844 = vmatpush1.msra.mxu0 0.0
    %1845 = vmatprep.subr.mxu0 0.0
    %1846 = vmatpush1.msra.mxu0 0.0
    %1847 = vmatprep.subr.mxu0 0.0
    %1848 = vmatpush1.msra.mxu0 0.0
    %1849 = vmatprep.subr.mxu0 0.0
    %1850 = vmatpush1.msra.mxu0 0.0
    %1851 = vmatprep.subr.mxu0 0.0
    %1852 = vmatpush1.msra.mxu0 0.0
    %1853 = vmatprep.subr.mxu0 0.0
    %1854 = vmatpush1.msra.mxu0 0.0
    %1855 = vmatprep.subr.mxu0 0.0
    %1856 = vmatpush1.msra.mxu0 0.0
    %1857 = vmatprep.subr.mxu0 0.0
    %1858 = vmatpush1.msra.mxu0 0.0
    %1859 = vmatprep.subr.mxu0 0.0
    %1860 = vmatpush1.msra.mxu0 0.0
    %1861 = vmatprep.subr.mxu0 0.0
    %1862 = vmatpush1.msra.mxu0 0.0
    %1863 = vmatprep.subr.mxu0 0.0
    %1864 = vmatpush1.msra.mxu0 0.0
    %1865 = vmatprep.subr.mxu0 0.0
    %1866 = vmatpush1.msra.mxu0 0.0
    %1867 = vmatprep.subr.mxu0 0.0
    %1868 = vmatpush1.msra.mxu0 0.0
    %1869 = vmatprep.subr.mxu0 0.0
    %1870 = vmatpush1.msra.mxu0 0.0
    %1871 = vmatprep.subr.mxu0 0.0
    %1872 = vmatpush1.msra.mxu0 0.0
    %1873 = vmatprep.subr.mxu0 0.0
    %1874 = vmatpush1.msra.mxu0 0.0
    %1875 = vmatprep.mubr.f32.mxu0 0.0
    %1876 = vmatmul.mubr.f32.gmra.mrb[0].mxu0 %v1541
    %v1877 = vpop.f32.mrb[0].mxu0
    %v1878 = vadd.f32 0.0, %v1877
    %v1879 = vpop.f32.mrb[0].mxu0
    %v1880 = vadd.f32 0.0, %v1879
    %1881 = vdwg.mxu0
    %v1882 = vadd.f32 %v1629, %v1807
    %v1883 = vadd.f32 %v1631, %v1809
    %v1884 = vadd.f32 %v1670, %v1878
    %v1885 = vadd.f32 %v1672, %v1880
    %v1886 = vmul.f32 %v1882, 0.5
    %v1887 = vtanh.pop %v1886
    %v1888 = vadd.f32 %v1887, 1.0
    %v1889 = vmul.f32 %v1888, 0.5
    %v1890 = vmul.f32 %v1883, 0.5
    %v1891 = vtanh.pop %v1890
    %v1892 = vadd.f32 %v1891, 1.0
    %v1893 = vmul.f32 %v1892, 0.5
    %v1894 = vtanh.pop %v1884
    %v1895 = vmul.f32 %v1885, 0.5
    %v1896 = vtanh.pop %v1895
    %v1897 = vadd.f32 %v1896, 1.0
    %v1898 = vmul.f32 %v1897, 0.5
    %v1899 = vmul.f32 %v1893, %v1542
    %v1900 = vmul.f32 %v1889, %v1894
    %v1901 = vadd.f32 %v1899, %v1900
    %v1902 = vtanh.pop %v1901
    %v1903 = vmul.f32 %v1898, %v1902
    %1904 = vst [vmem:[#allocation2] sm:$0xff] %v1903
    %1905 = vst [vmem:[#allocation3] sm:$0xff] %v1901
    %v1906 = vpack.c.bf16 %v1903, %v1903
    %s1907 = scalar_lea.vmem [#allocation10], 16
    %1908 = vst [vmem:[%s1907] sm:$0xf] %v1906
    %v1909 = vld [vmem:[#allocation2] sm:$0xff]
    %v1910 = vld [vmem:[#allocation3] sm:$0xff]
    %s1911 = scalar_lea.vmem [#allocation4], 20
    %v1912 = vld [vmem:[%s1911] sm:$0xf]
    %v1913 = vld [vmem:[#allocation7] sm:$0xff]
    %v1914 = vld [vmem:[#allocation7 + $0x8] sm:$0xff]
    %v1915 = vld [vmem:[#allocation7 + $0x10] sm:$0xff]
    %v1916 = vld [vmem:[#allocation7 + $0x18] sm:$0xff]
    %v1917 = vld [vmem:[%s3] sm:$0xf]
    %v1919 = vlaneseq
    %v1920 = vshrl.u32 %v1919, 7
    %v1921 = vsub.s32 0, %v1920
    %v1922 = vrot.slane %v1917, %v1921
    %v1923 = vlaneseq
    %v1924 = vshrl.u32 %v1923, 7
    %v1925 = vsub.s32 1, %v1924
    %v1926 = vrot.slane %v1917, %v1925
    %v1927 = vlaneseq
    %v1928 = vshrl.u32 %v1927, 7
    %v1929 = vsub.s32 2, %v1928
    %v1930 = vrot.slane %v1917, %v1929
    %v1931 = vlaneseq
    %v1932 = vshrl.u32 %v1931, 7
    %v1933 = vsub.s32 3, %v1932
    %v1934 = vrot.slane %v1917, %v1933
    %v1943 = vunpack.c.l.b16 %v1913
    %v1944 = vunpack.c.h.b16 %v1913
    %v1945 = vunpack.c.l.b16 %v1914
    %v1946 = vunpack.c.h.b16 %v1914
    %v1947 = vunpack.c.l.b16 %v1915
    %v1948 = vunpack.c.h.b16 %v1915
    %v1949 = vunpack.c.l.b16 %v1916
    %v1950 = vunpack.c.h.b16 %v1916
    %v1951 = vpack.c.b16 %v1947, %v1943
    %v1952 = vpack.c.b16 %v1948, %v1944
    %v1953 = vpack.c.b16 %v1949, %v1945
    %v1954 = vpack.c.b16 %v1950, %v1946
    %v1960 = vsel %vm119, %v1912, 0
    %1962 = vmatprep.subr.bf16.mxu0 %v1952
    %1963 = vmatpush1.bf16.msra.mxu0 %v1951
    %1964 = vmatprep.subr.bf16.mxu0 0
    %1965 = vmatpush1.bf16.msra.mxu0 0
    %1966 = vmatprep.subr.bf16.mxu0 0
    %1967 = vmatpush1.bf16.msra.mxu0 0
    %1968 = vmatprep.subr.bf16.mxu0 0
    %1969 = vmatpush1.bf16.msra.mxu0 0
    %1970 = vmatprep.subr.bf16.mxu0 0
    %1971 = vmatpush1.bf16.msra.mxu0 0
    %1972 = vmatprep.subr.bf16.mxu0 0
    %1973 = vmatpush1.bf16.msra.mxu0 0
    %1974 = vmatprep.subr.bf16.mxu0 0
    %1975 = vmatpush1.bf16.msra.mxu0 0
    %1976 = vmatprep.subr.bf16.mxu0 0
    %1977 = vmatpush1.bf16.msra.mxu0 0
    %1978 = vmatprep.subr.bf16.mxu0 0
    %1979 = vmatpush1.bf16.msra.mxu0 0
    %1980 = vmatprep.subr.bf16.mxu0 0
    %1981 = vmatpush1.bf16.msra.mxu0 0
    %1982 = vmatprep.subr.bf16.mxu0 0
    %1983 = vmatpush1.bf16.msra.mxu0 0
    %1984 = vmatprep.subr.bf16.mxu0 0
    %1985 = vmatpush1.bf16.msra.mxu0 0
    %1986 = vmatprep.subr.bf16.mxu0 0
    %1987 = vmatpush1.bf16.msra.mxu0 0
    %1988 = vmatprep.subr.bf16.mxu0 0
    %1989 = vmatpush1.bf16.msra.mxu0 0
    %1990 = vmatprep.subr.bf16.mxu0 0
    %1991 = vmatpush1.bf16.msra.mxu0 0
    %1992 = vmatprep.subr.bf16.mxu0 0
    %1993 = vmatpush1.bf16.msra.mxu0 0
    %1994 = vmatprep.mubr.bf16.mxu0 0
    %1995 = vmatmul.mubr.bf16.gmra.mrb[0].mxu0 %v1960
    %v1996 = vpop.f32.mrb[0].mxu0
    %v1997 = vadd.f32 %v1922, %v1996
    %v1998 = vpop.f32.mrb[0].mxu0
    %v1999 = vadd.f32 %v1926, %v1998
    %v2000 = vpop.f32.mrb[0].mxu0
    %v2001 = vpop.f32.mrb[0].mxu0
    %2002 = vdwg.mxu0
    %2003 = vmatprep.subr.bf16.mxu0 %v1954
    %2004 = vmatpush1.bf16.msra.mxu0 %v1953
    %2005 = vmatprep.subr.bf16.mxu0 0
    %2006 = vmatpush1.bf16.msra.mxu0 0
    %2007 = vmatprep.subr.bf16.mxu0 0
    %2008 = vmatpush1.bf16.msra.mxu0 0
    %2009 = vmatprep.subr.bf16.mxu0 0
    %2010 = vmatpush1.bf16.msra.mxu0 0
    %2011 = vmatprep.subr.bf16.mxu0 0
    %2012 = vmatpush1.bf16.msra.mxu0 0
    %2013 = vmatprep.subr.bf16.mxu0 0
    %2014 = vmatpush1.bf16.msra.mxu0 0
    %2015 = vmatprep.subr.bf16.mxu0 0
    %2016 = vmatpush1.bf16.msra.mxu0 0
    %2017 = vmatprep.subr.bf16.mxu0 0
    %2018 = vmatpush1.bf16.msra.mxu0 0
    %2019 = vmatprep.subr.bf16.mxu0 0
    %2020 = vmatpush1.bf16.msra.mxu0 0
    %2021 = vmatprep.subr.bf16.mxu0 0
    %2022 = vmatpush1.bf16.msra.mxu0 0
    %2023 = vmatprep.subr.bf16.mxu0 0
    %2024 = vmatpush1.bf16.msra.mxu0 0
    %2025 = vmatprep.subr.bf16.mxu0 0
    %2026 = vmatpush1.bf16.msra.mxu0 0
    %2027 = vmatprep.subr.bf16.mxu0 0
    %2028 = vmatpush1.bf16.msra.mxu0 0
    %2029 = vmatprep.subr.bf16.mxu0 0
    %2030 = vmatpush1.bf16.msra.mxu0 0
    %2031 = vmatprep.subr.bf16.mxu0 0
    %2032 = vmatpush1.bf16.msra.mxu0 0
    %2033 = vmatprep.subr.bf16.mxu0 0
    %2034 = vmatpush1.bf16.msra.mxu0 0
    %2035 = vmatprep.mubr.bf16.mxu0 0
    %2036 = vmatmul.mubr.bf16.gmra.mrb[0].mxu0 %v1960
    %v2037 = vpop.f32.mrb[0].mxu0
    %v2038 = vadd.f32 %v1930, %v2037
    %v2039 = vpop.f32.mrb[0].mxu0
    %v2040 = vadd.f32 %v1934, %v2039
    %v2041 = vpop.f32.mrb[0].mxu0
    %v2042 = vpop.f32.mrb[0].mxu0
    %2043 = vdwg.mxu0
    %v2044 = vld [vmem:[#allocation9] sm:$0xff]
    %v2045 = vld [vmem:[#allocation9 + $0x8] sm:$0xff]
    %v2046 = vld [vmem:[#allocation9 + $0x10] sm:$0xff]
    %v2047 = vld [vmem:[#allocation9 + $0x18] sm:$0xff]
    %v2048 = vld [vmem:[#allocation9 + $0x20] sm:$0xff]
    %v2049 = vld [vmem:[#allocation9 + $0x28] sm:$0xff]
    %v2050 = vld [vmem:[#allocation9 + $0x30] sm:$0xff]
    %v2051 = vld [vmem:[#allocation9 + $0x38] sm:$0xff]
    %v2052 = vld [vmem:[#allocation9 + $0x40] sm:$0xff]
    %v2053 = vld [vmem:[#allocation9 + $0x48] sm:$0xff]
    %v2054 = vld [vmem:[#allocation9 + $0x50] sm:$0xff]
    %v2055 = vld [vmem:[#allocation9 + $0x58] sm:$0xff]
    %v2056 = vld [vmem:[#allocation9 + $0x60] sm:$0xff]
    %v2057 = vld [vmem:[#allocation9 + $0x68] sm:$0xff]
    %v2058 = vld [vmem:[#allocation9 + $0x70] sm:$0xff]
    %v2059 = vld [vmem:[#allocation9 + $0x78] sm:$0xff]
    %v2060 = vld [vmem:[#allocation9 + $0x80] sm:$0xff]
    %v2061 = vld [vmem:[#allocation9 + $0x88] sm:$0xff]
    %v2062 = vld [vmem:[#allocation9 + $0x90] sm:$0xff]
    %v2063 = vld [vmem:[#allocation9 + $0x98] sm:$0xff]
    %v2064 = vld [vmem:[#allocation9 + $0xa0] sm:$0xff]
    %v2065 = vld [vmem:[#allocation9 + $0xa8] sm:$0xff]
    %v2066 = vld [vmem:[#allocation9 + $0xb0] sm:$0xff]
    %v2067 = vld [vmem:[#allocation9 + $0xb8] sm:$0xff]
    %v2068 = vld [vmem:[#allocation9 + $0xc0] sm:$0xff]
    %v2069 = vld [vmem:[#allocation9 + $0xc8] sm:$0xff]
    %v2070 = vld [vmem:[#allocation9 + $0xd0] sm:$0xff]
    %v2071 = vld [vmem:[#allocation9 + $0xd8] sm:$0xff]
    %v2072 = vld [vmem:[#allocation9 + $0xe0] sm:$0xff]
    %v2073 = vld [vmem:[#allocation9 + $0xe8] sm:$0xff]
    %v2074 = vld [vmem:[#allocation9 + $0xf0] sm:$0xff]
    %v2075 = vld [vmem:[#allocation9 + $0xf8] sm:$0xff]
    %v2076 = vld [vmem:[#allocation9 + $0x100] sm:$0xff]
    %v2077 = vld [vmem:[#allocation9 + $0x108] sm:$0xff]
    %v2078 = vld [vmem:[#allocation9 + $0x110] sm:$0xff]
    %v2079 = vld [vmem:[#allocation9 + $0x118] sm:$0xff]
    %v2080 = vld [vmem:[#allocation9 + $0x120] sm:$0xff]
    %v2081 = vld [vmem:[#allocation9 + $0x128] sm:$0xff]
    %v2082 = vld [vmem:[#allocation9 + $0x130] sm:$0xff]
    %v2083 = vld [vmem:[#allocation9 + $0x138] sm:$0xff]
    %v2084 = vld [vmem:[#allocation9 + $0x140] sm:$0xff]
    %v2085 = vld [vmem:[#allocation9 + $0x148] sm:$0xff]
    %v2086 = vld [vmem:[#allocation9 + $0x150] sm:$0xff]
    %v2087 = vld [vmem:[#allocation9 + $0x158] sm:$0xff]
    %v2088 = vld [vmem:[#allocation9 + $0x160] sm:$0xff]
    %v2089 = vld [vmem:[#allocation9 + $0x168] sm:$0xff]
    %v2090 = vld [vmem:[#allocation9 + $0x170] sm:$0xff]
    %v2091 = vld [vmem:[#allocation9 + $0x178] sm:$0xff]
    %v2092 = vld [vmem:[#allocation9 + $0x180] sm:$0xff]
    %v2093 = vld [vmem:[#allocation9 + $0x188] sm:$0xff]
    %v2094 = vld [vmem:[#allocation9 + $0x190] sm:$0xff]
    %v2095 = vld [vmem:[#allocation9 + $0x198] sm:$0xff]
    %v2096 = vld [vmem:[#allocation9 + $0x1a0] sm:$0xff]
    %v2097 = vld [vmem:[#allocation9 + $0x1a8] sm:$0xff]
    %v2098 = vld [vmem:[#allocation9 + $0x1b0] sm:$0xff]
    %v2099 = vld [vmem:[#allocation9 + $0x1b8] sm:$0xff]
    %v2100 = vld [vmem:[#allocation9 + $0x1c0] sm:$0xff]
    %v2101 = vld [vmem:[#allocation9 + $0x1c8] sm:$0xff]
    %v2102 = vld [vmem:[#allocation9 + $0x1d0] sm:$0xff]
    %v2103 = vld [vmem:[#allocation9 + $0x1d8] sm:$0xff]
    %v2104 = vld [vmem:[#allocation9 + $0x1e0] sm:$0xff]
    %v2105 = vld [vmem:[#allocation9 + $0x1e8] sm:$0xff]
    %v2106 = vld [vmem:[#allocation9 + $0x1f0] sm:$0xff]
    %v2107 = vld [vmem:[#allocation9 + $0x1f8] sm:$0xff]
    %2108 = vmatprep.subr.mxu0 %v2045
    %2109 = vmatpush1.msra.mxu0 %v2044
    %2110 = vmatprep.subr.mxu0 %v2049
    %2111 = vmatpush1.msra.mxu0 %v2048
    %2112 = vmatprep.subr.mxu0 %v2053
    %2113 = vmatpush1.msra.mxu0 %v2052
    %2114 = vmatprep.subr.mxu0 %v2057
    %2115 = vmatpush1.msra.mxu0 %v2056
    %2116 = vmatprep.subr.mxu0 %v2061
    %2117 = vmatpush1.msra.mxu0 %v2060
    %2118 = vmatprep.subr.mxu0 %v2065
    %2119 = vmatpush1.msra.mxu0 %v2064
    %2120 = vmatprep.subr.mxu0 %v2069
    %2121 = vmatpush1.msra.mxu0 %v2068
    %2122 = vmatprep.subr.mxu0 %v2073
    %2123 = vmatpush1.msra.mxu0 %v2072
    %2124 = vmatprep.subr.mxu0 %v2077
    %2125 = vmatpush1.msra.mxu0 %v2076
    %2126 = vmatprep.subr.mxu0 %v2081
    %2127 = vmatpush1.msra.mxu0 %v2080
    %2128 = vmatprep.subr.mxu0 %v2085
    %2129 = vmatpush1.msra.mxu0 %v2084
    %2130 = vmatprep.subr.mxu0 %v2089
    %2131 = vmatpush1.msra.mxu0 %v2088
    %2132 = vmatprep.subr.mxu0 %v2093
    %2133 = vmatpush1.msra.mxu0 %v2092
    %2134 = vmatprep.subr.mxu0 %v2097
    %2135 = vmatpush1.msra.mxu0 %v2096
    %2136 = vmatprep.subr.mxu0 %v2101
    %2137 = vmatpush1.msra.mxu0 %v2100
    %2138 = vmatprep.subr.mxu0 %v2105
    %2139 = vmatpush1.msra.mxu0 %v2104
    %2140 = vmatprep.subr.mxu0 0.0
    %2141 = vmatpush1.msra.mxu0 0.0
    %2142 = vmatprep.subr.mxu0 0.0
    %2143 = vmatpush1.msra.mxu0 0.0
    %2144 = vmatprep.subr.mxu0 0.0
    %2145 = vmatpush1.msra.mxu0 0.0
    %2146 = vmatprep.subr.mxu0 0.0
    %2147 = vmatpush1.msra.mxu0 0.0
    %2148 = vmatprep.subr.mxu0 0.0
    %2149 = vmatpush1.msra.mxu0 0.0
    %2150 = vmatprep.subr.mxu0 0.0
    %2151 = vmatpush1.msra.mxu0 0.0
    %2152 = vmatprep.subr.mxu0 0.0
    %2153 = vmatpush1.msra.mxu0 0.0
    %2154 = vmatprep.subr.mxu0 0.0
    %2155 = vmatpush1.msra.mxu0 0.0
    %2156 = vmatprep.subr.mxu0 0.0
    %2157 = vmatpush1.msra.mxu0 0.0
    %2158 = vmatprep.subr.mxu0 0.0
    %2159 = vmatpush1.msra.mxu0 0.0
    %2160 = vmatprep.subr.mxu0 0.0
    %2161 = vmatpush1.msra.mxu0 0.0
    %2162 = vmatprep.subr.mxu0 0.0
    %2163 = vmatpush1.msra.mxu0 0.0
    %2164 = vmatprep.subr.mxu0 0.0
    %2165 = vmatpush1.msra.mxu0 0.0
    %2166 = vmatprep.subr.mxu0 0.0
    %2167 = vmatpush1.msra.mxu0 0.0
    %2168 = vmatprep.subr.mxu0 0.0
    %2169 = vmatpush1.msra.mxu0 0.0
    %2170 = vmatprep.subr.mxu0 0.0
    %2171 = vmatpush1.msra.mxu0 0.0
    %2172 = vmatprep.mubr.f32.mxu0 0.0
    %2173 = vmatmul.mubr.f32.gmra.mrb[0].mxu0 %v1909
    %v2174 = vpop.f32.mrb[0].mxu0
    %v2175 = vadd.f32 0.0, %v2174
    %v2176 = vpop.f32.mrb[0].mxu0
    %v2177 = vadd.f32 0.0, %v2176
    %2178 = vdwg.mxu0
    %2179 = vmatprep.subr.mxu0 %v2047
    %2180 = vmatpush1.msra.mxu0 %v2046
    %2181 = vmatprep.subr.mxu0 %v2051
    %2182 = vmatpush1.msra.mxu0 %v2050
    %2183 = vmatprep.subr.mxu0 %v2055
    %2184 = vmatpush1.msra.mxu0 %v2054
    %2185 = vmatprep.subr.mxu0 %v2059
    %2186 = vmatpush1.msra.mxu0 %v2058
    %2187 = vmatprep.subr.mxu0 %v2063
    %2188 = vmatpush1.msra.mxu0 %v2062
    %2189 = vmatprep.subr.mxu0 %v2067
    %2190 = vmatpush1.msra.mxu0 %v2066
    %2191 = vmatprep.subr.mxu0 %v2071
    %2192 = vmatpush1.msra.mxu0 %v2070
    %2193 = vmatprep.subr.mxu0 %v2075
    %2194 = vmatpush1.msra.mxu0 %v2074
    %2195 = vmatprep.subr.mxu0 %v2079
    %2196 = vmatpush1.msra.mxu0 %v2078
    %2197 = vmatprep.subr.mxu0 %v2083
    %2198 = vmatpush1.msra.mxu0 %v2082
    %2199 = vmatprep.subr.mxu0 %v2087
    %2200 = vmatpush1.msra.mxu0 %v2086
    %2201 = vmatprep.subr.mxu0 %v2091
    %2202 = vmatpush1.msra.mxu0 %v2090
    %2203 = vmatprep.subr.mxu0 %v2095
    %2204 = vmatpush1.msra.mxu0 %v2094
    %2205 = vmatprep.subr.mxu0 %v2099
    %2206 = vmatpush1.msra.mxu0 %v2098
    %2207 = vmatprep.subr.mxu0 %v2103
    %2208 = vmatpush1.msra.mxu0 %v2102
    %2209 = vmatprep.subr.mxu0 %v2107
    %2210 = vmatpush1.msra.mxu0 %v2106
    %2211 = vmatprep.subr.mxu0 0.0
    %2212 = vmatpush1.msra.mxu0 0.0
    %2213 = vmatprep.subr.mxu0 0.0
    %2214 = vmatpush1.msra.mxu0 0.0
    %2215 = vmatprep.subr.mxu0 0.0
    %2216 = vmatpush1.msra.mxu0 0.0
    %2217 = vmatprep.subr.mxu0 0.0
    %2218 = vmatpush1.msra.mxu0 0.0
    %2219 = vmatprep.subr.mxu0 0.0
    %2220 = vmatpush1.msra.mxu0 0.0
    %2221 = vmatprep.subr.mxu0 0.0
    %2222 = vmatpush1.msra.mxu0 0.0
    %2223 = vmatprep.subr.mxu0 0.0
    %2224 = vmatpush1.msra.mxu0 0.0
    %2225 = vmatprep.subr.mxu0 0.0
    %2226 = vmatpush1.msra.mxu0 0.0
    %2227 = vmatprep.subr.mxu0 0.0
    %2228 = vmatpush1.msra.mxu0 0.0
    %2229 = vmatprep.subr.mxu0 0.0
    %2230 = vmatpush1.msra.mxu0 0.0
    %2231 = vmatprep.subr.mxu0 0.0
    %2232 = vmatpush1.msra.mxu0 0.0
    %2233 = vmatprep.subr.mxu0 0.0
    %2234 = vmatpush1.msra.mxu0 0.0
    %2235 = vmatprep.subr.mxu0 0.0
    %2236 = vmatpush1.msra.mxu0 0.0
    %2237 = vmatprep.subr.mxu0 0.0
    %2238 = vmatpush1.msra.mxu0 0.0
    %2239 = vmatprep.subr.mxu0 0.0
    %2240 = vmatpush1.msra.mxu0 0.0
    %2241 = vmatprep.subr.mxu0 0.0
    %2242 = vmatpush1.msra.mxu0 0.0
    %2243 = vmatprep.mubr.f32.mxu0 0.0
    %2244 = vmatmul.mubr.f32.gmra.mrb[0].mxu0 %v1909
    %v2245 = vpop.f32.mrb[0].mxu0
    %v2246 = vadd.f32 0.0, %v2245
    %v2247 = vpop.f32.mrb[0].mxu0
    %v2248 = vadd.f32 0.0, %v2247
    %2249 = vdwg.mxu0
    %v2250 = vadd.f32 %v1997, %v2175
    %v2251 = vadd.f32 %v1999, %v2177
    %v2252 = vadd.f32 %v2038, %v2246
    %v2253 = vadd.f32 %v2040, %v2248
    %v2254 = vmul.f32 %v2250, 0.5
    %v2255 = vtanh.pop %v2254
    %v2256 = vadd.f32 %v2255, 1.0
    %v2257 = vmul.f32 %v2256, 0.5
    %v2258 = vmul.f32 %v2251, 0.5
    %v2259 = vtanh.pop %v2258
    %v2260 = vadd.f32 %v2259, 1.0
    %v2261 = vmul.f32 %v2260, 0.5
    %v2262 = vtanh.pop %v2252
    %v2263 = vmul.f32 %v2253, 0.5
    %v2264 = vtanh.pop %v2263
    %v2265 = vadd.f32 %v2264, 1.0
    %v2266 = vmul.f32 %v2265, 0.5
    %v2267 = vmul.f32 %v2261, %v1910
    %v2268 = vmul.f32 %v2257, %v2262
    %v2269 = vadd.f32 %v2267, %v2268
    %v2270 = vtanh.pop %v2269
    %v2271 = vmul.f32 %v2266, %v2270
    %2272 = vst [vmem:[#allocation2] sm:$0xff] %v2271
    %2273 = vst [vmem:[#allocation3] sm:$0xff] %v2269
    %v2274 = vpack.c.bf16 %v2271, %v2271
    %s2275 = scalar_lea.vmem [#allocation10], 20
    %2276 = vst [vmem:[%s2275] sm:$0xf] %v2274
    %v2277 = vld [vmem:[#allocation2] sm:$0xff]
    %v2278 = vld [vmem:[#allocation3] sm:$0xff]
    %s2279 = scalar_lea.vmem [#allocation4], 24
    %v2280 = vld [vmem:[%s2279] sm:$0xf]
    %v2281 = vld [vmem:[#allocation7] sm:$0xff]
    %v2282 = vld [vmem:[#allocation7 + $0x8] sm:$0xff]
    %v2283 = vld [vmem:[#allocation7 + $0x10] sm:$0xff]
    %v2284 = vld [vmem:[#allocation7 + $0x18] sm:$0xff]
    %v2285 = vld [vmem:[%s3] sm:$0xf]
    %v2287 = vlaneseq
    %v2288 = vshrl.u32 %v2287, 7
    %v2289 = vsub.s32 0, %v2288
    %v2290 = vrot.slane %v2285, %v2289
    %v2291 = vlaneseq
    %v2292 = vshrl.u32 %v2291, 7
    %v2293 = vsub.s32 1, %v2292
    %v2294 = vrot.slane %v2285, %v2293
    %v2295 = vlaneseq
    %v2296 = vshrl.u32 %v2295, 7
    %v2297 = vsub.s32 2, %v2296
    %v2298 = vrot.slane %v2285, %v2297
    %v2299 = vlaneseq
    %v2300 = vshrl.u32 %v2299, 7
    %v2301 = vsub.s32 3, %v2300
    %v2302 = vrot.slane %v2285, %v2301
    %v2311 = vunpack.c.l.b16 %v2281
    %v2312 = vunpack.c.h.b16 %v2281
    %v2313 = vunpack.c.l.b16 %v2282
    %v2314 = vunpack.c.h.b16 %v2282
    %v2315 = vunpack.c.l.b16 %v2283
    %v2316 = vunpack.c.h.b16 %v2283
    %v2317 = vunpack.c.l.b16 %v2284
    %v2318 = vunpack.c.h.b16 %v2284
    %v2319 = vpack.c.b16 %v2315, %v2311
    %v2320 = vpack.c.b16 %v2316, %v2312
    %v2321 = vpack.c.b16 %v2317, %v2313
    %v2322 = vpack.c.b16 %v2318, %v2314
    %v2328 = vsel %vm119, %v2280, 0
    %2330 = vmatprep.subr.bf16.mxu0 %v2320
    %2331 = vmatpush1.bf16.msra.mxu0 %v2319
    %2332 = vmatprep.subr.bf16.mxu0 0
    %2333 = vmatpush1.bf16.msra.mxu0 0
    %2334 = vmatprep.subr.bf16.mxu0 0
    %2335 = vmatpush1.bf16.msra.mxu0 0
    %2336 = vmatprep.subr.bf16.mxu0 0
    %2337 = vmatpush1.bf16.msra.mxu0 0
    %2338 = vmatprep.subr.bf16.mxu0 0
    %2339 = vmatpush1.bf16.msra.mxu0 0
    %2340 = vmatprep.subr.bf16.mxu0 0
    %2341 = vmatpush1.bf16.msra.mxu0 0
    %2342 = vmatprep.subr.bf16.mxu0 0
    %2343 = vmatpush1.bf16.msra.mxu0 0
    %2344 = vmatprep.subr.bf16.mxu0 0
    %2345 = vmatpush1.bf16.msra.mxu0 0
    %2346 = vmatprep.subr.bf16.mxu0 0
    %2347 = vmatpush1.bf16.msra.mxu0 0
    %2348 = vmatprep.subr.bf16.mxu0 0
    %2349 = vmatpush1.bf16.msra.mxu0 0
    %2350 = vmatprep.subr.bf16.mxu0 0
    %2351 = vmatpush1.bf16.msra.mxu0 0
    %2352 = vmatprep.subr.bf16.mxu0 0
    %2353 = vmatpush1.bf16.msra.mxu0 0
    %2354 = vmatprep.subr.bf16.mxu0 0
    %2355 = vmatpush1.bf16.msra.mxu0 0
    %2356 = vmatprep.subr.bf16.mxu0 0
    %2357 = vmatpush1.bf16.msra.mxu0 0
    %2358 = vmatprep.subr.bf16.mxu0 0
    %2359 = vmatpush1.bf16.msra.mxu0 0
    %2360 = vmatprep.subr.bf16.mxu0 0
    %2361 = vmatpush1.bf16.msra.mxu0 0
    %2362 = vmatprep.mubr.bf16.mxu0 0
    %2363 = vmatmul.mubr.bf16.gmra.mrb[0].mxu0 %v2328
    %v2364 = vpop.f32.mrb[0].mxu0
    %v2365 = vadd.f32 %v2290, %v2364
    %v2366 = vpop.f32.mrb[0].mxu0
    %v2367 = vadd.f32 %v2294, %v2366
    %v2368 = vpop.f32.mrb[0].mxu0
    %v2369 = vpop.f32.mrb[0].mxu0
    %2370 = vdwg.mxu0
    %2371 = vmatprep.subr.bf16.mxu0 %v2322
    %2372 = vmatpush1.bf16.msra.mxu0 %v2321
    %2373 = vmatprep.subr.bf16.mxu0 0
    %2374 = vmatpush1.bf16.msra.mxu0 0
    %2375 = vmatprep.subr.bf16.mxu0 0
    %2376 = vmatpush1.bf16.msra.mxu0 0
    %2377 = vmatprep.subr.bf16.mxu0 0
    %2378 = vmatpush1.bf16.msra.mxu0 0
    %2379 = vmatprep.subr.bf16.mxu0 0
    %2380 = vmatpush1.bf16.msra.mxu0 0
    %2381 = vmatprep.subr.bf16.mxu0 0
    %2382 = vmatpush1.bf16.msra.mxu0 0
    %2383 = vmatprep.subr.bf16.mxu0 0
    %2384 = vmatpush1.bf16.msra.mxu0 0
    %2385 = vmatprep.subr.bf16.mxu0 0
    %2386 = vmatpush1.bf16.msra.mxu0 0
    %2387 = vmatprep.subr.bf16.mxu0 0
    %2388 = vmatpush1.bf16.msra.mxu0 0
    %2389 = vmatprep.subr.bf16.mxu0 0
    %2390 = vmatpush1.bf16.msra.mxu0 0
    %2391 = vmatprep.subr.bf16.mxu0 0
    %2392 = vmatpush1.bf16.msra.mxu0 0
    %2393 = vmatprep.subr.bf16.mxu0 0
    %2394 = vmatpush1.bf16.msra.mxu0 0
    %2395 = vmatprep.subr.bf16.mxu0 0
    %2396 = vmatpush1.bf16.msra.mxu0 0
    %2397 = vmatprep.subr.bf16.mxu0 0
    %2398 = vmatpush1.bf16.msra.mxu0 0
    %2399 = vmatprep.subr.bf16.mxu0 0
    %2400 = vmatpush1.bf16.msra.mxu0 0
    %2401 = vmatprep.subr.bf16.mxu0 0
    %2402 = vmatpush1.bf16.msra.mxu0 0
    %2403 = vmatprep.mubr.bf16.mxu0 0
    %2404 = vmatmul.mubr.bf16.gmra.mrb[0].mxu0 %v2328
    %v2405 = vpop.f32.mrb[0].mxu0
    %v2406 = vadd.f32 %v2298, %v2405
    %v2407 = vpop.f32.mrb[0].mxu0
    %v2408 = vadd.f32 %v2302, %v2407
    %v2409 = vpop.f32.mrb[0].mxu0
    %v2410 = vpop.f32.mrb[0].mxu0
    %2411 = vdwg.mxu0
    %v2412 = vld [vmem:[#allocation9] sm:$0xff]
    %v2413 = vld [vmem:[#allocation9 + $0x8] sm:$0xff]
    %v2414 = vld [vmem:[#allocation9 + $0x10] sm:$0xff]
    %v2415 = vld [vmem:[#allocation9 + $0x18] sm:$0xff]
    %v2416 = vld [vmem:[#allocation9 + $0x20] sm:$0xff]
    %v2417 = vld [vmem:[#allocation9 + $0x28] sm:$0xff]
    %v2418 = vld [vmem:[#allocation9 + $0x30] sm:$0xff]
    %v2419 = vld [vmem:[#allocation9 + $0x38] sm:$0xff]
    %v2420 = vld [vmem:[#allocation9 + $0x40] sm:$0xff]
    %v2421 = vld [vmem:[#allocation9 + $0x48] sm:$0xff]
    %v2422 = vld [vmem:[#allocation9 + $0x50] sm:$0xff]
    %v2423 = vld [vmem:[#allocation9 + $0x58] sm:$0xff]
    %v2424 = vld [vmem:[#allocation9 + $0x60] sm:$0xff]
    %v2425 = vld [vmem:[#allocation9 + $0x68] sm:$0xff]
    %v2426 = vld [vmem:[#allocation9 + $0x70] sm:$0xff]
    %v2427 = vld [vmem:[#allocation9 + $0x78] sm:$0xff]
    %v2428 = vld [vmem:[#allocation9 + $0x80] sm:$0xff]
    %v2429 = vld [vmem:[#allocation9 + $0x88] sm:$0xff]
    %v2430 = vld [vmem:[#allocation9 + $0x90] sm:$0xff]
    %v2431 = vld [vmem:[#allocation9 + $0x98] sm:$0xff]
    %v2432 = vld [vmem:[#allocation9 + $0xa0] sm:$0xff]
    %v2433 = vld [vmem:[#allocation9 + $0xa8] sm:$0xff]
    %v2434 = vld [vmem:[#allocation9 + $0xb0] sm:$0xff]
    %v2435 = vld [vmem:[#allocation9 + $0xb8] sm:$0xff]
    %v2436 = vld [vmem:[#allocation9 + $0xc0] sm:$0xff]
    %v2437 = vld [vmem:[#allocation9 + $0xc8] sm:$0xff]
    %v2438 = vld [vmem:[#allocation9 + $0xd0] sm:$0xff]
    %v2439 = vld [vmem:[#allocation9 + $0xd8] sm:$0xff]
    %v2440 = vld [vmem:[#allocation9 + $0xe0] sm:$0xff]
    %v2441 = vld [vmem:[#allocation9 + $0xe8] sm:$0xff]
    %v2442 = vld [vmem:[#allocation9 + $0xf0] sm:$0xff]
    %v2443 = vld [vmem:[#allocation9 + $0xf8] sm:$0xff]
    %v2444 = vld [vmem:[#allocation9 + $0x100] sm:$0xff]
    %v2445 = vld [vmem:[#allocation9 + $0x108] sm:$0xff]
    %v2446 = vld [vmem:[#allocation9 + $0x110] sm:$0xff]
    %v2447 = vld [vmem:[#allocation9 + $0x118] sm:$0xff]
    %v2448 = vld [vmem:[#allocation9 + $0x120] sm:$0xff]
    %v2449 = vld [vmem:[#allocation9 + $0x128] sm:$0xff]
    %v2450 = vld [vmem:[#allocation9 + $0x130] sm:$0xff]
    %v2451 = vld [vmem:[#allocation9 + $0x138] sm:$0xff]
    %v2452 = vld [vmem:[#allocation9 + $0x140] sm:$0xff]
    %v2453 = vld [vmem:[#allocation9 + $0x148] sm:$0xff]
    %v2454 = vld [vmem:[#allocation9 + $0x150] sm:$0xff]
    %v2455 = vld [vmem:[#allocation9 + $0x158] sm:$0xff]
    %v2456 = vld [vmem:[#allocation9 + $0x160] sm:$0xff]
    %v2457 = vld [vmem:[#allocation9 + $0x168] sm:$0xff]
    %v2458 = vld [vmem:[#allocation9 + $0x170] sm:$0xff]
    %v2459 = vld [vmem:[#allocation9 + $0x178] sm:$0xff]
    %v2460 = vld [vmem:[#allocation9 + $0x180] sm:$0xff]
    %v2461 = vld [vmem:[#allocation9 + $0x188] sm:$0xff]
    %v2462 = vld [vmem:[#allocation9 + $0x190] sm:$0xff]
    %v2463 = vld [vmem:[#allocation9 + $0x198] sm:$0xff]
    %v2464 = vld [vmem:[#allocation9 + $0x1a0] sm:$0xff]
    %v2465 = vld [vmem:[#allocation9 + $0x1a8] sm:$0xff]
    %v2466 = vld [vmem:[#allocation9 + $0x1b0] sm:$0xff]
    %v2467 = vld [vmem:[#allocation9 + $0x1b8] sm:$0xff]
    %v2468 = vld [vmem:[#allocation9 + $0x1c0] sm:$0xff]
    %v2469 = vld [vmem:[#allocation9 + $0x1c8] sm:$0xff]
    %v2470 = vld [vmem:[#allocation9 + $0x1d0] sm:$0xff]
    %v2471 = vld [vmem:[#allocation9 + $0x1d8] sm:$0xff]
    %v2472 = vld [vmem:[#allocation9 + $0x1e0] sm:$0xff]
    %v2473 = vld [vmem:[#allocation9 + $0x1e8] sm:$0xff]
    %v2474 = vld [vmem:[#allocation9 + $0x1f0] sm:$0xff]
    %v2475 = vld [vmem:[#allocation9 + $0x1f8] sm:$0xff]
    %2476 = vmatprep.subr.mxu0 %v2413
    %2477 = vmatpush1.msra.mxu0 %v2412
    %2478 = vmatprep.subr.mxu0 %v2417
    %2479 = vmatpush1.msra.mxu0 %v2416
    %2480 = vmatprep.subr.mxu0 %v2421
    %2481 = vmatpush1.msra.mxu0 %v2420
    %2482 = vmatprep.subr.mxu0 %v2425
    %2483 = vmatpush1.msra.mxu0 %v2424
    %2484 = vmatprep.subr.mxu0 %v2429
    %2485 = vmatpush1.msra.mxu0 %v2428
    %2486 = vmatprep.subr.mxu0 %v2433
    %2487 = vmatpush1.msra.mxu0 %v2432
    %2488 = vmatprep.subr.mxu0 %v2437
    %2489 = vmatpush1.msra.mxu0 %v2436
    %2490 = vmatprep.subr.mxu0 %v2441
    %2491 = vmatpush1.msra.mxu0 %v2440
    %2492 = vmatprep.subr.mxu0 %v2445
    %2493 = vmatpush1.msra.mxu0 %v2444
    %2494 = vmatprep.subr.mxu0 %v2449
    %2495 = vmatpush1.msra.mxu0 %v2448
    %2496 = vmatprep.subr.mxu0 %v2453
    %2497 = vmatpush1.msra.mxu0 %v2452
    %2498 = vmatprep.subr.mxu0 %v2457
    %2499 = vmatpush1.msra.mxu0 %v2456
    %2500 = vmatprep.subr.mxu0 %v2461
    %2501 = vmatpush1.msra.mxu0 %v2460
    %2502 = vmatprep.subr.mxu0 %v2465
    %2503 = vmatpush1.msra.mxu0 %v2464
    %2504 = vmatprep.subr.mxu0 %v2469
    %2505 = vmatpush1.msra.mxu0 %v2468
    %2506 = vmatprep.subr.mxu0 %v2473
    %2507 = vmatpush1.msra.mxu0 %v2472
    %2508 = vmatprep.subr.mxu0 0.0
    %2509 = vmatpush1.msra.mxu0 0.0
    %2510 = vmatprep.subr.mxu0 0.0
    %2511 = vmatpush1.msra.mxu0 0.0
    %2512 = vmatprep.subr.mxu0 0.0
    %2513 = vmatpush1.msra.mxu0 0.0
    %2514 = vmatprep.subr.mxu0 0.0
    %2515 = vmatpush1.msra.mxu0 0.0
    %2516 = vmatprep.subr.mxu0 0.0
    %2517 = vmatpush1.msra.mxu0 0.0
    %2518 = vmatprep.subr.mxu0 0.0
    %2519 = vmatpush1.msra.mxu0 0.0
    %2520 = vmatprep.subr.mxu0 0.0
    %2521 = vmatpush1.msra.mxu0 0.0
    %2522 = vmatprep.subr.mxu0 0.0
    %2523 = vmatpush1.msra.mxu0 0.0
    %2524 = vmatprep.subr.mxu0 0.0
    %2525 = vmatpush1.msra.mxu0 0.0
    %2526 = vmatprep.subr.mxu0 0.0
    %2527 = vmatpush1.msra.mxu0 0.0
    %2528 = vmatprep.subr.mxu0 0.0
    %2529 = vmatpush1.msra.mxu0 0.0
    %2530 = vmatprep.subr.mxu0 0.0
    %2531 = vmatpush1.msra.mxu0 0.0
    %2532 = vmatprep.subr.mxu0 0.0
    %2533 = vmatpush1.msra.mxu0 0.0
    %2534 = vmatprep.subr.mxu0 0.0
    %2535 = vmatpush1.msra.mxu0 0.0
    %2536 = vmatprep.subr.mxu0 0.0
    %2537 = vmatpush1.msra.mxu0 0.0
    %2538 = vmatprep.subr.mxu0 0.0
    %2539 = vmatpush1.msra.mxu0 0.0
    %2540 = vmatprep.mubr.f32.mxu0 0.0
    %2541 = vmatmul.mubr.f32.gmra.mrb[0].mxu0 %v2277
    %v2542 = vpop.f32.mrb[0].mxu0
    %v2543 = vadd.f32 0.0, %v2542
    %v2544 = vpop.f32.mrb[0].mxu0
    %v2545 = vadd.f32 0.0, %v2544
    %2546 = vdwg.mxu0
    %2547 = vmatprep.subr.mxu0 %v2415
    %2548 = vmatpush1.msra.mxu0 %v2414
    %2549 = vmatprep.subr.mxu0 %v2419
    %2550 = vmatpush1.msra.mxu0 %v2418
    %2551 = vmatprep.subr.mxu0 %v2423
    %2552 = vmatpush1.msra.mxu0 %v2422
    %2553 = vmatprep.subr.mxu0 %v2427
    %2554 = vmatpush1.msra.mxu0 %v2426
    %2555 = vmatprep.subr.mxu0 %v2431
    %2556 = vmatpush1.msra.mxu0 %v2430
    %2557 = vmatprep.subr.mxu0 %v2435
    %2558 = vmatpush1.msra.mxu0 %v2434
    %2559 = vmatprep.subr.mxu0 %v2439
    %2560 = vmatpush1.msra.mxu0 %v2438
    %2561 = vmatprep.subr.mxu0 %v2443
    %2562 = vmatpush1.msra.mxu0 %v2442
    %2563 = vmatprep.subr.mxu0 %v2447
    %2564 = vmatpush1.msra.mxu0 %v2446
    %2565 = vmatprep.subr.mxu0 %v2451
    %2566 = vmatpush1.msra.mxu0 %v2450
    %2567 = vmatprep.subr.mxu0 %v2455
    %2568 = vmatpush1.msra.mxu0 %v2454
    %2569 = vmatprep.subr.mxu0 %v2459
    %2570 = vmatpush1.msra.mxu0 %v2458
    %2571 = vmatprep.subr.mxu0 %v2463
    %2572 = vmatpush1.msra.mxu0 %v2462
    %2573 = vmatprep.subr.mxu0 %v2467
    %2574 = vmatpush1.msra.mxu0 %v2466
    %2575 = vmatprep.subr.mxu0 %v2471
    %2576 = vmatpush1.msra.mxu0 %v2470
    %2577 = vmatprep.subr.mxu0 %v2475
    %2578 = vmatpush1.msra.mxu0 %v2474
    %2579 = vmatprep.subr.mxu0 0.0
    %2580 = vmatpush1.msra.mxu0 0.0
    %2581 = vmatprep.subr.mxu0 0.0
    %2582 = vmatpush1.msra.mxu0 0.0
    %2583 = vmatprep.subr.mxu0 0.0
    %2584 = vmatpush1.msra.mxu0 0.0
    %2585 = vmatprep.subr.mxu0 0.0
    %2586 = vmatpush1.msra.mxu0 0.0
    %2587 = vmatprep.subr.mxu0 0.0
    %2588 = vmatpush1.msra.mxu0 0.0
    %2589 = vmatprep.subr.mxu0 0.0
    %2590 = vmatpush1.msra.mxu0 0.0
    %2591 = vmatprep.subr.mxu0 0.0
    %2592 = vmatpush1.msra.mxu0 0.0
    %2593 = vmatprep.subr.mxu0 0.0
    %2594 = vmatpush1.msra.mxu0 0.0
    %2595 = vmatprep.subr.mxu0 0.0
    %2596 = vmatpush1.msra.mxu0 0.0
    %2597 = vmatprep.subr.mxu0 0.0
    %2598 = vmatpush1.msra.mxu0 0.0
    %2599 = vmatprep.subr.mxu0 0.0
    %2600 = vmatpush1.msra.mxu0 0.0
    %2601 = vmatprep.subr.mxu0 0.0
    %2602 = vmatpush1.msra.mxu0 0.0
    %2603 = vmatprep.subr.mxu0 0.0
    %2604 = vmatpush1.msra.mxu0 0.0
    %2605 = vmatprep.subr.mxu0 0.0
    %2606 = vmatpush1.msra.mxu0 0.0
    %2607 = vmatprep.subr.mxu0 0.0
    %2608 = vmatpush1.msra.mxu0 0.0
    %2609 = vmatprep.subr.mxu0 0.0
    %2610 = vmatpush1.msra.mxu0 0.0
    %2611 = vmatprep.mubr.f32.mxu0 0.0
    %2612 = vmatmul.mubr.f32.gmra.mrb[0].mxu0 %v2277
    %v2613 = vpop.f32.mrb[0].mxu0
    %v2614 = vadd.f32 0.0, %v2613
    %v2615 = vpop.f32.mrb[0].mxu0
    %v2616 = vadd.f32 0.0, %v2615
    %2617 = vdwg.mxu0
    %v2618 = vadd.f32 %v2365, %v2543
    %v2619 = vadd.f32 %v2367, %v2545
    %v2620 = vadd.f32 %v2406, %v2614
    %v2621 = vadd.f32 %v2408, %v2616
    %v2622 = vmul.f32 %v2618, 0.5
    %v2623 = vtanh.pop %v2622
    %v2624 = vadd.f32 %v2623, 1.0
    %v2625 = vmul.f32 %v2624, 0.5
    %v2626 = vmul.f32 %v2619, 0.5
    %v2627 = vtanh.pop %v2626
    %v2628 = vadd.f32 %v2627, 1.0
    %v2629 = vmul.f32 %v2628, 0.5
    %v2630 = vtanh.pop %v2620
    %v2631 = vmul.f32 %v2621, 0.5
    %v2632 = vtanh.pop %v2631
    %v2633 = vadd.f32 %v2632, 1.0
    %v2634 = vmul.f32 %v2633, 0.5
    %v2635 = vmul.f32 %v2629, %v2278
    %v2636 = vmul.f32 %v2625, %v2630
    %v2637 = vadd.f32 %v2635, %v2636
    %v2638 = vtanh.pop %v2637
    %v2639 = vmul.f32 %v2634, %v2638
    %2640 = vst [vmem:[#allocation2] sm:$0xff] %v2639
    %2641 = vst [vmem:[#allocation3] sm:$0xff] %v2637
    %v2642 = vpack.c.bf16 %v2639, %v2639
    %s2643 = scalar_lea.vmem [#allocation10], 24
    %2644 = vst [vmem:[%s2643] sm:$0xf] %v2642
    %v2645 = vld [vmem:[#allocation2] sm:$0xff]
    %v2646 = vld [vmem:[#allocation3] sm:$0xff]
    %s2647 = scalar_lea.vmem [#allocation4], 28
    %v2648 = vld [vmem:[%s2647] sm:$0xf]
    %v2649 = vld [vmem:[#allocation7] sm:$0xff]
    %v2650 = vld [vmem:[#allocation7 + $0x8] sm:$0xff]
    %v2651 = vld [vmem:[#allocation7 + $0x10] sm:$0xff]
    %v2652 = vld [vmem:[#allocation7 + $0x18] sm:$0xff]
    %v2653 = vld [vmem:[%s3] sm:$0xf]
    %v2655 = vlaneseq
    %v2656 = vshrl.u32 %v2655, 7
    %v2657 = vsub.s32 0, %v2656
    %v2658 = vrot.slane %v2653, %v2657
    %v2659 = vlaneseq
    %v2660 = vshrl.u32 %v2659, 7
    %v2661 = vsub.s32 1, %v2660
    %v2662 = vrot.slane %v2653, %v2661
    %v2663 = vlaneseq
    %v2664 = vshrl.u32 %v2663, 7
    %v2665 = vsub.s32 2, %v2664
    %v2666 = vrot.slane %v2653, %v2665
    %v2667 = vlaneseq
    %v2668 = vshrl.u32 %v2667, 7
    %v2669 = vsub.s32 3, %v2668
    %v2670 = vrot.slane %v2653, %v2669
    %v2679 = vunpack.c.l.b16 %v2649
    %v2680 = vunpack.c.h.b16 %v2649
    %v2681 = vunpack.c.l.b16 %v2650
    %v2682 = vunpack.c.h.b16 %v2650
    %v2683 = vunpack.c.l.b16 %v2651
    %v2684 = vunpack.c.h.b16 %v2651
    %v2685 = vunpack.c.l.b16 %v2652
    %v2686 = vunpack.c.h.b16 %v2652
    %v2687 = vpack.c.b16 %v2683, %v2679
    %v2688 = vpack.c.b16 %v2684, %v2680
    %v2689 = vpack.c.b16 %v2685, %v2681
    %v2690 = vpack.c.b16 %v2686, %v2682
    %v2696 = vsel %vm119, %v2648, 0
    %2698 = vmatprep.subr.bf16.mxu0 %v2688
    %2699 = vmatpush1.bf16.msra.mxu0 %v2687
    %2700 = vmatprep.subr.bf16.mxu0 0
    %2701 = vmatpush1.bf16.msra.mxu0 0
    %2702 = vmatprep.subr.bf16.mxu0 0
    %2703 = vmatpush1.bf16.msra.mxu0 0
    %2704 = vmatprep.subr.bf16.mxu0 0
    %2705 = vmatpush1.bf16.msra.mxu0 0
    %2706 = vmatprep.subr.bf16.mxu0 0
    %2707 = vmatpush1.bf16.msra.mxu0 0
    %2708 = vmatprep.subr.bf16.mxu0 0
    %2709 = vmatpush1.bf16.msra.mxu0 0
    %2710 = vmatprep.subr.bf16.mxu0 0
    %2711 = vmatpush1.bf16.msra.mxu0 0
    %2712 = vmatprep.subr.bf16.mxu0 0
    %2713 = vmatpush1.bf16.msra.mxu0 0
    %2714 = vmatprep.subr.bf16.mxu0 0
    %2715 = vmatpush1.bf16.msra.mxu0 0
    %2716 = vmatprep.subr.bf16.mxu0 0
    %2717 = vmatpush1.bf16.msra.mxu0 0
    %2718 = vmatprep.subr.bf16.mxu0 0
    %2719 = vmatpush1.bf16.msra.mxu0 0
    %2720 = vmatprep.subr.bf16.mxu0 0
    %2721 = vmatpush1.bf16.msra.mxu0 0
    %2722 = vmatprep.subr.bf16.mxu0 0
    %2723 = vmatpush1.bf16.msra.mxu0 0
    %2724 = vmatprep.subr.bf16.mxu0 0
    %2725 = vmatpush1.bf16.msra.mxu0 0
    %2726 = vmatprep.subr.bf16.mxu0 0
    %2727 = vmatpush1.bf16.msra.mxu0 0
    %2728 = vmatprep.subr.bf16.mxu0 0
    %2729 = vmatpush1.bf16.msra.mxu0 0
    %2730 = vmatprep.mubr.bf16.mxu0 0
    %2731 = vmatmul.mubr.bf16.gmra.mrb[0].mxu0 %v2696
    %v2732 = vpop.f32.mrb[0].mxu0
    %v2733 = vadd.f32 %v2658, %v2732
    %v2734 = vpop.f32.mrb[0].mxu0
    %v2735 = vadd.f32 %v2662, %v2734
    %v2736 = vpop.f32.mrb[0].mxu0
    %v2737 = vpop.f32.mrb[0].mxu0
    %2738 = vdwg.mxu0
    %2739 = vmatprep.subr.bf16.mxu0 %v2690
    %2740 = vmatpush1.bf16.msra.mxu0 %v2689
    %2741 = vmatprep.subr.bf16.mxu0 0
    %2742 = vmatpush1.bf16.msra.mxu0 0
    %2743 = vmatprep.subr.bf16.mxu0 0
    %2744 = vmatpush1.bf16.msra.mxu0 0
    %2745 = vmatprep.subr.bf16.mxu0 0
    %2746 = vmatpush1.bf16.msra.mxu0 0
    %2747 = vmatprep.subr.bf16.mxu0 0
    %2748 = vmatpush1.bf16.msra.mxu0 0
    %2749 = vmatprep.subr.bf16.mxu0 0
    %2750 = vmatpush1.bf16.msra.mxu0 0
    %2751 = vmatprep.subr.bf16.mxu0 0
    %2752 = vmatpush1.bf16.msra.mxu0 0
    %2753 = vmatprep.subr.bf16.mxu0 0
    %2754 = vmatpush1.bf16.msra.mxu0 0
    %2755 = vmatprep.subr.bf16.mxu0 0
    %2756 = vmatpush1.bf16.msra.mxu0 0
    %2757 = vmatprep.subr.bf16.mxu0 0
    %2758 = vmatpush1.bf16.msra.mxu0 0
    %2759 = vmatprep.subr.bf16.mxu0 0
    %2760 = vmatpush1.bf16.msra.mxu0 0
    %2761 = vmatprep.subr.bf16.mxu0 0
    %2762 = vmatpush1.bf16.msra.mxu0 0
    %2763 = vmatprep.subr.bf16.mxu0 0
    %2764 = vmatpush1.bf16.msra.mxu0 0
    %2765 = vmatprep.subr.bf16.mxu0 0
    %2766 = vmatpush1.bf16.msra.mxu0 0
    %2767 = vmatprep.subr.bf16.mxu0 0
    %2768 = vmatpush1.bf16.msra.mxu0 0
    %2769 = vmatprep.subr.bf16.mxu0 0
    %2770 = vmatpush1.bf16.msra.mxu0 0
    %2771 = vmatprep.mubr.bf16.mxu0 0
    %2772 = vmatmul.mubr.bf16.gmra.mrb[0].mxu0 %v2696
    %v2773 = vpop.f32.mrb[0].mxu0
    %v2774 = vadd.f32 %v2666, %v2773
    %v2775 = vpop.f32.mrb[0].mxu0
    %v2776 = vadd.f32 %v2670, %v2775
    %v2777 = vpop.f32.mrb[0].mxu0
    %v2778 = vpop.f32.mrb[0].mxu0
    %2779 = vdwg.mxu0
    %v2780 = vld [vmem:[#allocation9] sm:$0xff]
    %v2781 = vld [vmem:[#allocation9 + $0x8] sm:$0xff]
    %v2782 = vld [vmem:[#allocation9 + $0x10] sm:$0xff]
    %v2783 = vld [vmem:[#allocation9 + $0x18] sm:$0xff]
    %v2784 = vld [vmem:[#allocation9 + $0x20] sm:$0xff]
    %v2785 = vld [vmem:[#allocation9 + $0x28] sm:$0xff]
    %v2786 = vld [vmem:[#allocation9 + $0x30] sm:$0xff]
    %v2787 = vld [vmem:[#allocation9 + $0x38] sm:$0xff]
    %v2788 = vld [vmem:[#allocation9 + $0x40] sm:$0xff]
    %v2789 = vld [vmem:[#allocation9 + $0x48] sm:$0xff]
    %v2790 = vld [vmem:[#allocation9 + $0x50] sm:$0xff]
    %v2791 = vld [vmem:[#allocation9 + $0x58] sm:$0xff]
    %v2792 = vld [vmem:[#allocation9 + $0x60] sm:$0xff]
    %v2793 = vld [vmem:[#allocation9 + $0x68] sm:$0xff]
    %v2794 = vld [vmem:[#allocation9 + $0x70] sm:$0xff]
    %v2795 = vld [vmem:[#allocation9 + $0x78] sm:$0xff]
    %v2796 = vld [vmem:[#allocation9 + $0x80] sm:$0xff]
    %v2797 = vld [vmem:[#allocation9 + $0x88] sm:$0xff]
    %v2798 = vld [vmem:[#allocation9 + $0x90] sm:$0xff]
    %v2799 = vld [vmem:[#allocation9 + $0x98] sm:$0xff]
    %v2800 = vld [vmem:[#allocation9 + $0xa0] sm:$0xff]
    %v2801 = vld [vmem:[#allocation9 + $0xa8] sm:$0xff]
    %v2802 = vld [vmem:[#allocation9 + $0xb0] sm:$0xff]
    %v2803 = vld [vmem:[#allocation9 + $0xb8] sm:$0xff]
    %v2804 = vld [vmem:[#allocation9 + $0xc0] sm:$0xff]
    %v2805 = vld [vmem:[#allocation9 + $0xc8] sm:$0xff]
    %v2806 = vld [vmem:[#allocation9 + $0xd0] sm:$0xff]
    %v2807 = vld [vmem:[#allocation9 + $0xd8] sm:$0xff]
    %v2808 = vld [vmem:[#allocation9 + $0xe0] sm:$0xff]
    %v2809 = vld [vmem:[#allocation9 + $0xe8] sm:$0xff]
    %v2810 = vld [vmem:[#allocation9 + $0xf0] sm:$0xff]
    %v2811 = vld [vmem:[#allocation9 + $0xf8] sm:$0xff]
    %v2812 = vld [vmem:[#allocation9 + $0x100] sm:$0xff]
    %v2813 = vld [vmem:[#allocation9 + $0x108] sm:$0xff]
    %v2814 = vld [vmem:[#allocation9 + $0x110] sm:$0xff]
    %v2815 = vld [vmem:[#allocation9 + $0x118] sm:$0xff]
    %v2816 = vld [vmem:[#allocation9 + $0x120] sm:$0xff]
    %v2817 = vld [vmem:[#allocation9 + $0x128] sm:$0xff]
    %v2818 = vld [vmem:[#allocation9 + $0x130] sm:$0xff]
    %v2819 = vld [vmem:[#allocation9 + $0x138] sm:$0xff]
    %v2820 = vld [vmem:[#allocation9 + $0x140] sm:$0xff]
    %v2821 = vld [vmem:[#allocation9 + $0x148] sm:$0xff]
    %v2822 = vld [vmem:[#allocation9 + $0x150] sm:$0xff]
    %v2823 = vld [vmem:[#allocation9 + $0x158] sm:$0xff]
    %v2824 = vld [vmem:[#allocation9 + $0x160] sm:$0xff]
    %v2825 = vld [vmem:[#allocation9 + $0x168] sm:$0xff]
    %v2826 = vld [vmem:[#allocation9 + $0x170] sm:$0xff]
    %v2827 = vld [vmem:[#allocation9 + $0x178] sm:$0xff]
    %v2828 = vld [vmem:[#allocation9 + $0x180] sm:$0xff]
    %v2829 = vld [vmem:[#allocation9 + $0x188] sm:$0xff]
    %v2830 = vld [vmem:[#allocation9 + $0x190] sm:$0xff]
    %v2831 = vld [vmem:[#allocation9 + $0x198] sm:$0xff]
    %v2832 = vld [vmem:[#allocation9 + $0x1a0] sm:$0xff]
    %v2833 = vld [vmem:[#allocation9 + $0x1a8] sm:$0xff]
    %v2834 = vld [vmem:[#allocation9 + $0x1b0] sm:$0xff]
    %v2835 = vld [vmem:[#allocation9 + $0x1b8] sm:$0xff]
    %v2836 = vld [vmem:[#allocation9 + $0x1c0] sm:$0xff]
    %v2837 = vld [vmem:[#allocation9 + $0x1c8] sm:$0xff]
    %v2838 = vld [vmem:[#allocation9 + $0x1d0] sm:$0xff]
    %v2839 = vld [vmem:[#allocation9 + $0x1d8] sm:$0xff]
    %v2840 = vld [vmem:[#allocation9 + $0x1e0] sm:$0xff]
    %v2841 = vld [vmem:[#allocation9 + $0x1e8] sm:$0xff]
    %v2842 = vld [vmem:[#allocation9 + $0x1f0] sm:$0xff]
    %v2843 = vld [vmem:[#allocation9 + $0x1f8] sm:$0xff]
    %2844 = vmatprep.subr.mxu0 %v2781
    %2845 = vmatpush1.msra.mxu0 %v2780
    %2846 = vmatprep.subr.mxu0 %v2785
    %2847 = vmatpush1.msra.mxu0 %v2784
    %2848 = vmatprep.subr.mxu0 %v2789
    %2849 = vmatpush1.msra.mxu0 %v2788
    %2850 = vmatprep.subr.mxu0 %v2793
    %2851 = vmatpush1.msra.mxu0 %v2792
    %2852 = vmatprep.subr.mxu0 %v2797
    %2853 = vmatpush1.msra.mxu0 %v2796
    %2854 = vmatprep.subr.mxu0 %v2801
    %2855 = vmatpush1.msra.mxu0 %v2800
    %2856 = vmatprep.subr.mxu0 %v2805
    %2857 = vmatpush1.msra.mxu0 %v2804
    %2858 = vmatprep.subr.mxu0 %v2809
    %2859 = vmatpush1.msra.mxu0 %v2808
    %2860 = vmatprep.subr.mxu0 %v2813
    %2861 = vmatpush1.msra.mxu0 %v2812
    %2862 = vmatprep.subr.mxu0 %v2817
    %2863 = vmatpush1.msra.mxu0 %v2816
    %2864 = vmatprep.subr.mxu0 %v2821
    %2865 = vmatpush1.msra.mxu0 %v2820
    %2866 = vmatprep.subr.mxu0 %v2825
    %2867 = vmatpush1.msra.mxu0 %v2824
    %2868 = vmatprep.subr.mxu0 %v2829
    %2869 = vmatpush1.msra.mxu0 %v2828
    %2870 = vmatprep.subr.mxu0 %v2833
    %2871 = vmatpush1.msra.mxu0 %v2832
    %2872 = vmatprep.subr.mxu0 %v2837
    %2873 = vmatpush1.msra.mxu0 %v2836
    %2874 = vmatprep.subr.mxu0 %v2841
    %2875 = vmatpush1.msra.mxu0 %v2840
    %2876 = vmatprep.subr.mxu0 0.0
    %2877 = vmatpush1.msra.mxu0 0.0
    %2878 = vmatprep.subr.mxu0 0.0
    %2879 = vmatpush1.msra.mxu0 0.0
    %2880 = vmatprep.subr.mxu0 0.0
    %2881 = vmatpush1.msra.mxu0 0.0
    %2882 = vmatprep.subr.mxu0 0.0
    %2883 = vmatpush1.msra.mxu0 0.0
    %2884 = vmatprep.subr.mxu0 0.0
    %2885 = vmatpush1.msra.mxu0 0.0
    %2886 = vmatprep.subr.mxu0 0.0
    %2887 = vmatpush1.msra.mxu0 0.0
    %2888 = vmatprep.subr.mxu0 0.0
    %2889 = vmatpush1.msra.mxu0 0.0
    %2890 = vmatprep.subr.mxu0 0.0
    %2891 = vmatpush1.msra.mxu0 0.0
    %2892 = vmatprep.subr.mxu0 0.0
    %2893 = vmatpush1.msra.mxu0 0.0
    %2894 = vmatprep.subr.mxu0 0.0
    %2895 = vmatpush1.msra.mxu0 0.0
    %2896 = vmatprep.subr.mxu0 0.0
    %2897 = vmatpush1.msra.mxu0 0.0
    %2898 = vmatprep.subr.mxu0 0.0
    %2899 = vmatpush1.msra.mxu0 0.0
    %2900 = vmatprep.subr.mxu0 0.0
    %2901 = vmatpush1.msra.mxu0 0.0
    %2902 = vmatprep.subr.mxu0 0.0
    %2903 = vmatpush1.msra.mxu0 0.0
    %2904 = vmatprep.subr.mxu0 0.0
    %2905 = vmatpush1.msra.mxu0 0.0
    %2906 = vmatprep.subr.mxu0 0.0
    %2907 = vmatpush1.msra.mxu0 0.0
    %2908 = vmatprep.mubr.f32.mxu0 0.0
    %2909 = vmatmul.mubr.f32.gmra.mrb[0].mxu0 %v2645
    %v2910 = vpop.f32.mrb[0].mxu0
    %v2911 = vadd.f32 0.0, %v2910
    %v2912 = vpop.f32.mrb[0].mxu0
    %v2913 = vadd.f32 0.0, %v2912
    %2914 = vdwg.mxu0
    %2915 = vmatprep.subr.mxu0 %v2783
    %2916 = vmatpush1.msra.mxu0 %v2782
    %2917 = vmatprep.subr.mxu0 %v2787
    %2918 = vmatpush1.msra.mxu0 %v2786
    %2919 = vmatprep.subr.mxu0 %v2791
    %2920 = vmatpush1.msra.mxu0 %v2790
    %2921 = vmatprep.subr.mxu0 %v2795
    %2922 = vmatpush1.msra.mxu0 %v2794
    %2923 = vmatprep.subr.mxu0 %v2799
    %2924 = vmatpush1.msra.mxu0 %v2798
    %2925 = vmatprep.subr.mxu0 %v2803
    %2926 = vmatpush1.msra.mxu0 %v2802
    %2927 = vmatprep.subr.mxu0 %v2807
    %2928 = vmatpush1.msra.mxu0 %v2806
    %2929 = vmatprep.subr.mxu0 %v2811
    %2930 = vmatpush1.msra.mxu0 %v2810
    %2931 = vmatprep.subr.mxu0 %v2815
    %2932 = vmatpush1.msra.mxu0 %v2814
    %2933 = vmatprep.subr.mxu0 %v2819
    %2934 = vmatpush1.msra.mxu0 %v2818
    %2935 = vmatprep.subr.mxu0 %v2823
    %2936 = vmatpush1.msra.mxu0 %v2822
    %2937 = vmatprep.subr.mxu0 %v2827
    %2938 = vmatpush1.msra.mxu0 %v2826
    %2939 = vmatprep.subr.mxu0 %v2831
    %2940 = vmatpush1.msra.mxu0 %v2830
    %2941 = vmatprep.subr.mxu0 %v2835
    %2942 = vmatpush1.msra.mxu0 %v2834
    %2943 = vmatprep.subr.mxu0 %v2839
    %2944 = vmatpush1.msra.mxu0 %v2838
    %2945 = vmatprep.subr.mxu0 %v2843
    %2946 = vmatpush1.msra.mxu0 %v2842
    %2947 = vmatprep.subr.mxu0 0.0
    %2948 = vmatpush1.msra.mxu0 0.0
    %2949 = vmatprep.subr.mxu0 0.0
    %2950 = vmatpush1.msra.mxu0 0.0
    %2951 = vmatprep.subr.mxu0 0.0
    %2952 = vmatpush1.msra.mxu0 0.0
    %2953 = vmatprep.subr.mxu0 0.0
    %2954 = vmatpush1.msra.mxu0 0.0
    %2955 = vmatprep.subr.mxu0 0.0
    %2956 = vmatpush1.msra.mxu0 0.0
    %2957 = vmatprep.subr.mxu0 0.0
    %2958 = vmatpush1.msra.mxu0 0.0
    %2959 = vmatprep.subr.mxu0 0.0
    %2960 = vmatpush1.msra.mxu0 0.0
    %2961 = vmatprep.subr.mxu0 0.0
    %2962 = vmatpush1.msra.mxu0 0.0
    %2963 = vmatprep.subr.mxu0 0.0
    %2964 = vmatpush1.msra.mxu0 0.0
    %2965 = vmatprep.subr.mxu0 0.0
    %2966 = vmatpush1.msra.mxu0 0.0
    %2967 = vmatprep.subr.mxu0 0.0
    %2968 = vmatpush1.msra.mxu0 0.0
    %2969 = vmatprep.subr.mxu0 0.0
    %2970 = vmatpush1.msra.mxu0 0.0
    %2971 = vmatprep.subr.mxu0 0.0
    %2972 = vmatpush1.msra.mxu0 0.0
    %2973 = vmatprep.subr.mxu0 0.0
    %2974 = vmatpush1.msra.mxu0 0.0
    %2975 = vmatprep.subr.mxu0 0.0
    %2976 = vmatpush1.msra.mxu0 0.0
    %2977 = vmatprep.subr.mxu0 0.0
    %2978 = vmatpush1.msra.mxu0 0.0
    %2979 = vmatprep.mubr.f32.mxu0 0.0
    %2980 = vmatmul.mubr.f32.gmra.mrb[0].mxu0 %v2645
    %v2981 = vpop.f32.mrb[0].mxu0
    %v2982 = vadd.f32 0.0, %v2981
    %v2983 = vpop.f32.mrb[0].mxu0
    %v2984 = vadd.f32 0.0, %v2983
    %2985 = vdwg.mxu0
    %v2986 = vadd.f32 %v2733, %v2911
    %v2987 = vadd.f32 %v2735, %v2913
    %v2988 = vadd.f32 %v2774, %v2982
    %v2989 = vadd.f32 %v2776, %v2984
    %v2990 = vmul.f32 %v2986, 0.5
    %v2991 = vtanh.pop %v2990
    %v2992 = vadd.f32 %v2991, 1.0
    %v2993 = vmul.f32 %v2992, 0.5
    %v2994 = vmul.f32 %v2987, 0.5
    %v2995 = vtanh.pop %v2994
    %v2996 = vadd.f32 %v2995, 1.0
    %v2997 = vmul.f32 %v2996, 0.5
    %v2998 = vtanh.pop %v2988
    %v2999 = vmul.f32 %v2989, 0.5
    %v3000 = vtanh.pop %v2999
    %v3001 = vadd.f32 %v3000, 1.0
    %v3002 = vmul.f32 %v3001, 0.5
    %v3003 = vmul.f32 %v2997, %v2646
    %v3004 = vmul.f32 %v2993, %v2998
    %v3005 = vadd.f32 %v3003, %v3004
    %v3006 = vtanh.pop %v3005
    %v3007 = vmul.f32 %v3002, %v3006
    %3008 = vst [vmem:[#allocation2] sm:$0xff] %v3007
    %3009 = vst [vmem:[#allocation3] sm:$0xff] %v3005
    %v3010 = vpack.c.bf16 %v3007, %v3007
    %s3011 = scalar_lea.vmem [#allocation10], 28
    %3012 = vst [vmem:[%s3011] sm:$0xf] %v3010
    // Predicated region
    $region34: #{tpu_custom_call.1} parent=1 // pred_check
      %p3013 = pneg %p64
    $region35: #{tpu_custom_call.1} parent=1 // pred_check_branch
      %3015 = sbr.rel (%p3013) target = $region37
    $region36: #{tpu_custom_call.1} parent=1 // pred_region
      %v3016 = vld [vmem:[#allocation2] sm:$0xff]
      %3017 = vst [vmem:[#allocation11] sm:$0xff] %v3016
      %v3018 = vld [vmem:[#allocation3] sm:$0xff]
      %3019 = vst [vmem:[#allocation13] sm:$0xff] %v3018
    $region37: #{tpu_custom_call.1} parent=1 // pred_fallthru
      _
    // Predicated region
    $region38: #{tpu_custom_call.1} parent=1 // pred_check
      _
    $region39: #{tpu_custom_call.1} parent=1 // pred_check_branch
      %3021 = sbr.rel (0) target = $region41
    $region40: #{tpu_custom_call.1} parent=1 // pred_region
      %s3023 = ssub.s32 512, 512
      %3024 = vsyncadd [#allocation6], %s3023
      %s3025 = sshll.u32 [#allocation10], 4
      %s3026 = int_to_ptr.vmem [resolvable:$true] %s3025
      %3031 = dma.vmem_to_hbm [thread:$0]  %s3026, 512, %s4, [#allocation6], 64, 64, 4
    $region41: #{tpu_custom_call.1} parent=1 // pred_fallthru
      _
    // Predicated region
    $region42: #{tpu_custom_call.1} parent=1 // pred_check
      _
    $region43: #{tpu_custom_call.1} parent=1 // pred_check_branch
      %3033 = sbr.rel (0) target = $region45
    $region44: #{tpu_custom_call.1} parent=1 // pred_region
      %s3035 = ssub.s32 128, 128
      %3036 = vsyncadd [#allocation12], %s3035
      %s3038 = sshll.u32 [#allocation11], 4
      %s3039 = int_to_ptr.vmem [resolvable:$true] %s3038
      %3041 = dma.vmem_to_hbm [thread:$0]  %s3039, 128, %s5, [#allocation12]
    $region45: #{tpu_custom_call.1} parent=1 // pred_fallthru
      _
    // Predicated region
    $region46: #{tpu_custom_call.1} parent=1 // pred_check
      _
    $region47: #{tpu_custom_call.1} parent=1 // pred_check_branch
      %3043 = sbr.rel (0) target = $region49
    $region48: #{tpu_custom_call.1} parent=1 // pred_region
      %s3045 = ssub.s32 128, 128
      %3046 = vsyncadd [#allocation12], %s3045
      %s3048 = sshll.u32 [#allocation13], 4
      %s3049 = int_to_ptr.vmem [resolvable:$true] %s3048
      %3051 = dma.vmem_to_hbm [thread:$0]  %s3049, 128, %s6, [#allocation12]
    $region49: #{tpu_custom_call.1} parent=1 // pred_fallthru
      _
    // Predicated region
    $region50: #{tpu_custom_call.1} parent=1 // pred_check
      _
    $region51: #{tpu_custom_call.1} parent=1 // pred_check_branch
      %3053 = sbr.rel (0) target = $region53
    $region52: #{tpu_custom_call.1} parent=1 // pred_region
      %3054 = dma.done [#allocation6], 512
    $region53: #{tpu_custom_call.1} parent=1 // pred_fallthru
      _
    // Predicated region
    $region54: #{tpu_custom_call.1} parent=1 // pred_check
      _
    $region55: #{tpu_custom_call.1} parent=1 // pred_check_branch
      %3056 = sbr.rel (0) target = $region57
    $region56: #{tpu_custom_call.1} parent=1 // pred_region
      %3057 = dma.done [#allocation12], 128
    $region57: #{tpu_custom_call.1} parent=1 // pred_fallthru
      _
    // Predicated region
    $region58: #{tpu_custom_call.1} parent=1 // pred_check
      _
    $region59: #{tpu_custom_call.1} parent=1 // pred_check_branch
      %3059 = sbr.rel (0) target = $region61
    $region60: #{tpu_custom_call.1} parent=1 // pred_region
      %3060 = dma.done [#allocation12], 128
    $region61: #{tpu_custom_call.1} parent=1 // pred_fallthru
      _
    %3061 = vsyncpa [#allocation5], 1
    %3062 = vsyncpa [#allocation8], 1
    %3063 = vsyncpa [#allocation6], 1
    %3064 = vsyncpa [#allocation12], 1

</llo_original>
